<compile_context>
chip_gen: v7x
topology: tpu7x:2x2x1
jax: 0.10.0
libtpu: 0.0.40
codegen_flags: <defaults>
</compile_context>

<pallas_src>
import math

import jax
import jax.numpy as jnp
from jax import lax
from jax.experimental import pallas as pl
from jax.experimental.pallas import tpu as pltpu  # noqa: F401  (kept for TPU backend)

B_J0 = 0.01   # b_j0
BETA = 1.8    # isAdapt=1
# R_m = 1, dt = 1


def _rup(n, m):
    return ((n + m - 1) // m) * m


def _alif(inp, mem, spk, b, c):
    """mem_update_adp forward semantics; c = [alpha; 1-alpha; ro; 1-ro] (4, D)."""
    alpha = c[0:1]
    one_m_alpha = c[1:2]
    ro = c[2:3]
    one_m_ro = c[3:4]
    b_new = ro * b + one_m_ro * spk
    Bth = B_J0 + BETA * b_new
    mem_new = mem * alpha + one_m_alpha * inp - Bth * spk
    spk_new = (mem_new - Bth > 0.0).astype(jnp.float32)   # ActFun_adp forward
    return mem_new, spk_new, b_new


def _snn_kernel(x_ref,
                w_ih_ref, b_ih_ref, w_hd_ref, b_hd_ref,
                w_de1_ref, b_de1_ref, w_d2o_ref, b_d2o_ref,
                c_r1_ref, c_r2_ref, c_d1_ref, c_o_ref,
                r1_init_ref, r2_init_ref, d1_init_ref, omem_init_ref,
                out_sum_ref, traces_ref):
    T = x_ref.shape[0]

    # Small loop-invariant constants hoisted into values once.
    c_r1 = c_r1_ref[...]
    c_r2 = c_r2_ref[...]
    c_d1 = c_d1_ref[...]
    c_o = c_o_ref[...]
    b_ih = b_ih_ref[...]
    b_hd = b_hd_ref[...]
    b_de1 = b_de1_ref[...]
    b_d2o = b_d2o_ref[...]

    # initial_neuron_states: mem == spike for the first three layers; out spike = 0.
    r1_m0 = r1_init_ref[...]
    r2_m0 = r2_init_ref[...]
    d1_m0 = d1_init_ref[...]
    o_m0 = omem_init_ref[...]

    carry0 = (
        r1_m0, r1_m0, jnp.full_like(r1_m0, B_J0),      # r1: mem, spike, b
        r2_m0, r2_m0, jnp.full_like(r2_m0, B_J0),      # r2
        d1_m0, d1_m0, jnp.full_like(d1_m0, B_J0),      # d1
        o_m0, jnp.zeros_like(o_m0), jnp.full_like(o_m0, B_J0),   # out layer
        jnp.zeros_like(o_m0),                          # output_sumspike
    )

    def step(t, carry):
        (r1_mem, r1_spk, b_r1,
         r2_mem, r2_spk, b_r2,
         d1_mem, d1_spk, b_d1,
         o_mem, o_spk, b_o, out_sum) = carry

        x_t = x_ref[t]                                  # (Bp, Dinp)

        # --- recurrent layer 1: fused [i2h | h2h] matmul ---
        h_in = jnp.dot(jnp.concatenate([x_t, r1_spk], axis=-1), w_ih_ref[...],
                       preferred_element_type=jnp.float32) + b_ih
        r1_mem, r1_spk, b_r1 = _alif(h_in, r1_mem, r1_spk, b_r1, c_r1)

        # --- recurrent layer 2: fused [h2d | d2d] (new r1 spike, old r2 spike) ---
        d_in = jnp.dot(jnp.concatenate([r1_spk, r2_spk], axis=-1), w_hd_ref[...],
                       preferred_element_type=jnp.float32) + b_hd
        r2_mem, r2_spk, b_r2 = _alif(d_in, r2_mem, r2_spk, b_r2, c_r2)

        # --- dense layer ---
        d1_in = jnp.dot(r2_spk, w_de1_ref[...],
                        preferred_element_type=jnp.float32) + b_de1
        d1_mem, d1_spk, b_d1 = _alif(d1_in, d1_mem, d1_spk, b_d1, c_d1)

        # --- output layer (DC_f = 'adp-spike') ---
        o_in = jnp.dot(d1_spk, w_d2o_ref[...],
                       preferred_element_type=jnp.float32) + b_d2o
        o_mem, o_spk, b_o = _alif(o_in, o_mem, o_spk, b_o, c_o)

        # output_sumspike accumulates only for t > 0 (matches the reference).
        out_sum = jnp.where(t > 0, out_sum + o_spk, out_sum)

        # One lane-dense packed store per step for all four spike traces.
        traces_ref[t] = jnp.concatenate([r1_spk, r2_spk, d1_spk, o_spk], axis=-1)

        return (r1_mem, r1_spk, b_r1, r2_mem, r2_spk, b_r2,
                d1_mem, d1_spk, b_d1, o_mem, o_spk, b_o, out_sum)

    carry = lax.fori_loop(0, T, step, carry0, unroll=bool(T <= 16))
    out_sum_ref[...] = carry[-1]


def rnn_custom_forward(x_btd, params, init_states):
    """x_btd: (B, T, D_in) float32, same layout as the PyTorch module input."""
    B, T, Din = x_btd.shape
    (w_i2h, b_i2h, w_h2h, b_h2h, w_h2d, b_h2d, w_d2d, b_d2d,
     w_de1, b_de1, w_d2o, b_d2o,
     ta_r1, tm_r1, ta_r2, tm_r2, ta_d1, tm_d1, ta_o, tm_o) = params
    r1_init, r2_init, d1_init, omem_init = init_states

    R1 = w_i2h.shape[1]
    R2 = w_h2d.shape[1]
    D1 = w_de1.shape[1]
    O = w_d2o.shape[1]

    # Tile-friendly padded sizes: sublane multiple of 8, lane multiple of 128.
    Bp = _rup(B, 8)
    Dinp = _rup(Din, 128)
    R1p = _rup(R1, 128)
    R2p = _rup(R2, 128)
    D1p = _rup(D1, 128)
    Op = _rup(O, 128)

    def pad2(a, r, c):
        return jnp.zeros((r, c), jnp.float32).at[:a.shape[0], :a.shape[1]].set(a)

    # Time-major, padded input (a few KB even at T=100 -> fully VMEM resident).
    x_p = jnp.zeros((T, Bp, Dinp), jnp.float32).at[:, :B, :Din].set(
        jnp.transpose(x_btd, (1, 0, 2)).astype(jnp.float32))

    # Fused + zero-padded weights (zero pad rows/cols isolate padded lanes).
    w_ih = jnp.concatenate([pad2(w_i2h, Dinp, R1p), pad2(w_h2h, R1p, R1p)], axis=0)
    b_ih = pad2(b_i2h + b_h2h, 1, R1p)
    w_hd = jnp.concatenate([pad2(w_h2d, R1p, R2p), pad2(w_d2d, R2p, R2p)], axis=0)
    b_hd = pad2(b_h2d + b_d2d, 1, R2p)
    w_de1p = pad2(w_de1, R2p, D1p)
    b_de1p = pad2(b_de1, 1, D1p)
    w_d2op = pad2(w_d2o, D1p, Op)
    b_d2op = pad2(b_d2o, 1, Op)

    # Host-precomputed ALIF constants per layer: [alpha; 1-alpha; ro; 1-ro].
    def alif_const(ta, tm, dimp):
        alpha = jnp.exp(-1.0 / tm)
        ro = jnp.exp(-1.0 / ta)
        c = jnp.concatenate([alpha, 1.0 - alpha, ro, 1.0 - ro], axis=0)  # (4, dim)
        return pad2(c, 4, dimp)

    c_r1 = alif_const(ta_r1, tm_r1, R1p)
    c_r2 = alif_const(ta_r2, tm_r2, R2p)
    c_d1 = alif_const(ta_d1, tm_d1, D1p)
    c_o = alif_const(ta_o, tm_o, Op)

    r1_i = pad2(r1_init, Bp, R1p)
    r2_i = pad2(r2_init, Bp, R2p)
    d1_i = pad2(d1_init, Bp, D1p)
    om_i = pad2(omem_init, Bp, Op)

    Ctot = R1p + R2p + D1p + Op
    out_shape = (
        jax.ShapeDtypeStruct((Bp, Op), jnp.float32),       # output_sumspike (padded)
        jax.ShapeDtypeStruct((T, Bp, Ctot), jnp.float32),  # packed spike traces
    )

    # Single invocation, no grid: all operands fully VMEM resident, time loop
    # runs inside the kernel.
    out_sum_p, traces = pl.pallas_call(
        _snn_kernel,
        out_shape=out_shape,
    )(x_p, w_ih, b_ih, w_hd, b_hd, w_de1p, b_de1p, w_d2op, b_d2op,
      c_r1, c_r2, c_d1, c_o, r1_i, r2_i, d1_i, om_i)

    # Slice the valid (unpadded) regions back out.
    out_sum = out_sum_p[:B, :O]
    l1 = traces[:, :B, :R1]
    l2 = traces[:, :B, R1p:R1p + R2]
    l3 = traces[:, :B, R1p + R2p:R1p + R2p + D1]
    lo = traces[:, :B, R1p + R2p + D1p:R1p + R2p + D1p + O]
    return out_sum, (l1, l2, l3, lo)   # traces are time-major (T, B, dim)


def _xavier_uniform(key, in_dim, out_dim):
    bound = math.sqrt(6.0 / (in_dim + out_dim))
    return jax.random.uniform(key, (in_dim, out_dim), jnp.float32, -bound, bound)


def make_params_and_states(key, batch, input_size, hidden_dims, output_size):
    r1, r2, d1 = hidden_dims
    ks = jax.random.split(key, 16)
    # Linear weights stored transposed: (in_dim, out_dim)
    w_i2h = _xavier_uniform(ks[0], input_size, r1)
    w_h2h = jnp.zeros((r1, r1), jnp.float32)            # nn.init.zeros_
    w_h2d = _xavier_uniform(ks[1], r1, r2)
    w_d2d = jnp.zeros((r2, r2), jnp.float32)            # nn.init.zeros_
    w_de1 = _xavier_uniform(ks[2], r2, d1)
    w_d2o = _xavier_uniform(ks[3], d1, output_size)
    # biases init to 0 ; kept as (1, dim) rows
    b_i2h = jnp.zeros((1, r1), jnp.float32)
    b_h2h = jnp.zeros((1, r1), jnp.float32)
    b_h2d = jnp.zeros((1, r2), jnp.float32)
    b_d2d = jnp.zeros((1, r2), jnp.float32)
    b_de1 = jnp.zeros((1, d1), jnp.float32)
    b_d2o = jnp.zeros((1, output_size), jnp.float32)
    # tau params: N(200, 25) / N(20, 5)
    ta_r1 = 200.0 + 25.0 * jax.random.normal(ks[4], (1, r1), jnp.float32)
    ta_r2 = 200.0 + 25.0 * jax.random.normal(ks[5], (1, r2), jnp.float32)
    ta_d1 = 200.0 + 25.0 * jax.random.normal(ks[6], (1, d1), jnp.float32)
    ta_o = 200.0 + 25.0 * jax.random.normal(ks[7], (1, output_size), jnp.float32)
    tm_r1 = 20.0 + 5.0 * jax.random.normal(ks[8], (1, r1), jnp.float32)
    tm_r2 = 20.0 + 5.0 * jax.random.normal(ks[9], (1, r2), jnp.float32)
    tm_d1 = 20.0 + 5.0 * jax.random.normal(ks[10], (1, d1), jnp.float32)
    tm_o = 20.0 + 5.0 * jax.random.normal(ks[11], (1, output_size), jnp.float32)
    # initial states: rand * b_j0 (mem == spike), output mem rand * b_j0
    r1_init = jax.random.uniform(ks[12], (batch, r1), jnp.float32) * B_J0
    r2_init = jax.random.uniform(ks[13], (batch, r2), jnp.float32) * B_J0
    d1_init = jax.random.uniform(ks[14], (batch, d1), jnp.float32) * B_J0
    omem_init = jax.random.uniform(ks[15], (batch, output_size), jnp.float32) * B_J0

    params = (w_i2h, b_i2h, w_h2h, b_h2h, w_h2d, b_h2d, w_d2d, b_d2d,
              w_de1, b_de1, w_d2o, b_d2o,
              ta_r1, tm_r1, ta_r2, tm_r2, ta_d1, tm_d1, ta_o, tm_o)
    states = (r1_init, r2_init, d1_init, omem_init)
    return params, states


if __name__ == "__main__":
    batch, seq, input_size = 2, 8, 16
    hidden_dims = (32, 32, 32)
    output_size = 10

    key = jax.random.PRNGKey(0)
    k_data, k_param = jax.random.split(key)
    # Same layout as the PyTorch module: (batch, seq, input_dim).
    x = jax.random.normal(k_data, (batch, seq, input_size), jnp.float32)

    params, states = make_params_and_states(
        k_param, batch, input_size, hidden_dims, output_size)

    out_sum, (l1_spk, l2_spk, l3_spk, o_spk) = rnn_custom_forward(x, params, states)
    jax.block_until_ready((out_sum, l1_spk, l2_spk, l3_spk, o_spk))
    print("KERNEL_OK")
</pallas_src>

<mosaic_0001>
module attributes {stable_mosaic.version = 11 : i64} {
  func.func @_snn_kernel(%arg0: memref<8x8x128xf32, #tpu.memory_space<vmem>>, %arg1: memref<256x128xf32, #tpu.memory_space<vmem>>, %arg2: memref<1x128xf32, #tpu.memory_space<vmem>>, %arg3: memref<256x128xf32, #tpu.memory_space<vmem>>, %arg4: memref<1x128xf32, #tpu.memory_space<vmem>>, %arg5: memref<128x128xf32, #tpu.memory_space<vmem>>, %arg6: memref<1x128xf32, #tpu.memory_space<vmem>>, %arg7: memref<128x128xf32, #tpu.memory_space<vmem>>, %arg8: memref<1x128xf32, #tpu.memory_space<vmem>>, %arg9: memref<4x128xf32, #tpu.memory_space<vmem>>, %arg10: memref<4x128xf32, #tpu.memory_space<vmem>>, %arg11: memref<4x128xf32, #tpu.memory_space<vmem>>, %arg12: memref<4x128xf32, #tpu.memory_space<vmem>>, %arg13: memref<8x128xf32, #tpu.memory_space<vmem>>, %arg14: memref<8x128xf32, #tpu.memory_space<vmem>>, %arg15: memref<8x128xf32, #tpu.memory_space<vmem>>, %arg16: memref<8x128xf32, #tpu.memory_space<vmem>>, %arg17: memref<8x128xf32, #tpu.memory_space<vmem>>, %arg18: memref<8x8x512xf32, #tpu.memory_space<vmem>>) attributes {dimension_semantics = [], scalar_prefetch = 0 : i64, scratch_operands = 0 : i64, tpu.core_type = #tpu.core_type<tc>} {
    %c0 = arith.constant 0 : index
    %c0_0 = arith.constant 0 : index
    %0 = vector.load %arg9[%c0, %c0_0] : memref<4x128xf32, #tpu.memory_space<vmem>>, vector<4x128xf32>
    %c0_1 = arith.constant 0 : index
    %c0_2 = arith.constant 0 : index
    %1 = vector.load %arg10[%c0_1, %c0_2] : memref<4x128xf32, #tpu.memory_space<vmem>>, vector<4x128xf32>
    %c0_3 = arith.constant 0 : index
    %c0_4 = arith.constant 0 : index
    %2 = vector.load %arg11[%c0_3, %c0_4] : memref<4x128xf32, #tpu.memory_space<vmem>>, vector<4x128xf32>
    %c0_5 = arith.constant 0 : index
    %c0_6 = arith.constant 0 : index
    %3 = vector.load %arg12[%c0_5, %c0_6] : memref<4x128xf32, #tpu.memory_space<vmem>>, vector<4x128xf32>
    %c0_7 = arith.constant 0 : index
    %c0_8 = arith.constant 0 : index
    %4 = vector.load %arg2[%c0_7, %c0_8] : memref<1x128xf32, #tpu.memory_space<vmem>>, vector<1x128xf32>
    %c0_9 = arith.constant 0 : index
    %c0_10 = arith.constant 0 : index
    %5 = vector.load %arg4[%c0_9, %c0_10] : memref<1x128xf32, #tpu.memory_space<vmem>>, vector<1x128xf32>
    %c0_11 = arith.constant 0 : index
    %c0_12 = arith.constant 0 : index
    %6 = vector.load %arg6[%c0_11, %c0_12] : memref<1x128xf32, #tpu.memory_space<vmem>>, vector<1x128xf32>
    %c0_13 = arith.constant 0 : index
    %c0_14 = arith.constant 0 : index
    %7 = vector.load %arg8[%c0_13, %c0_14] : memref<1x128xf32, #tpu.memory_space<vmem>>, vector<1x128xf32>
    %c0_15 = arith.constant 0 : index
    %c0_16 = arith.constant 0 : index
    %8 = vector.load %arg13[%c0_15, %c0_16] : memref<8x128xf32, #tpu.memory_space<vmem>>, vector<8x128xf32>
    %c0_17 = arith.constant 0 : index
    %c0_18 = arith.constant 0 : index
    %9 = vector.load %arg14[%c0_17, %c0_18] : memref<8x128xf32, #tpu.memory_space<vmem>>, vector<8x128xf32>
    %c0_19 = arith.constant 0 : index
    %c0_20 = arith.constant 0 : index
    %10 = vector.load %arg15[%c0_19, %c0_20] : memref<8x128xf32, #tpu.memory_space<vmem>>, vector<8x128xf32>
    %c0_21 = arith.constant 0 : index
    %c0_22 = arith.constant 0 : index
    %11 = vector.load %arg16[%c0_21, %c0_22] : memref<8x128xf32, #tpu.memory_space<vmem>>, vector<8x128xf32>
    %cst = arith.constant 0.00999999977 : f32
    %12 = vector.broadcast %cst : f32 to vector<8x128xf32>
    %cst_23 = arith.constant 0.00999999977 : f32
    %13 = vector.broadcast %cst_23 : f32 to vector<8x128xf32>
    %cst_24 = arith.constant 0.00999999977 : f32
    %14 = vector.broadcast %cst_24 : f32 to vector<8x128xf32>
    %cst_25 = arith.constant 0.000000e+00 : f32
    %15 = vector.broadcast %cst_25 : f32 to vector<8x128xf32>
    %cst_26 = arith.constant 0.00999999977 : f32
    %16 = vector.broadcast %cst_26 : f32 to vector<8x128xf32>
    %cst_27 = arith.constant 0.000000e+00 : f32
    %17 = vector.broadcast %cst_27 : f32 to vector<8x128xf32>
    %c0_i32 = arith.constant 0 : i32
    %18 = arith.index_cast %c0_i32 : i32 to index
    %c0_28 = arith.constant 0 : index
    %c0_29 = arith.constant 0 : index
    %19 = vector.load %arg0[%18, %c0_28, %c0_29] : memref<8x8x128xf32, #tpu.memory_space<vmem>>, vector<1x8x128xf32>
    %20 = vector.shape_cast %19 : vector<1x8x128xf32> to vector<8x128xf32>
    %21 = tpu.concatenate %20, %8 in 1 : vector<8x128xf32>, vector<8x128xf32> -> vector<8x256xf32>
    %c0_30 = arith.constant 0 : index
    %c0_31 = arith.constant 0 : index
    %22 = vector.load %arg1[%c0_30, %c0_31] : memref<256x128xf32, #tpu.memory_space<vmem>>, vector<256x128xf32>
    %cst_32 = arith.constant dense<0.000000e+00> : vector<8x128xf32>
    %23 = tpu.matmul %21, %22, %cst_32 {dimension_numbers = #tpu.dot_dimension_numbers<[1], [0], [0], [1], [0, 0, 1, 1], [], []>} : vector<8x256xf32>, vector<256x128xf32>, vector<8x128xf32> -> vector<8x128xf32>
    %24 = vector.broadcast %4 : vector<1x128xf32> to vector<8x128xf32>
    %25 = arith.addf %23, %24 : vector<8x128xf32>
    %26 = vector.extract_strided_slice %0 {offsets = [0, 0], sizes = [1, 128], strides = [1, 1]} : vector<4x128xf32> to vector<1x128xf32>
    %27 = vector.extract_strided_slice %0 {offsets = [1, 0], sizes = [1, 128], strides = [1, 1]} : vector<4x128xf32> to vector<1x128xf32>
    %28 = vector.extract_strided_slice %0 {offsets = [2, 0], sizes = [1, 128], strides = [1, 1]} : vector<4x128xf32> to vector<1x128xf32>
    %29 = vector.extract_strided_slice %0 {offsets = [3, 0], sizes = [1, 128], strides = [1, 1]} : vector<4x128xf32> to vector<1x128xf32>
    %30 = vector.broadcast %28 : vector<1x128xf32> to vector<8x128xf32>
    %31 = arith.mulf %30, %12 : vector<8x128xf32>
    %32 = vector.broadcast %29 : vector<1x128xf32> to vector<8x128xf32>
    %33 = arith.mulf %32, %8 : vector<8x128xf32>
    %34 = arith.addf %31, %33 : vector<8x128xf32>
    %cst_33 = arith.constant 1.800000e+00 : f32
    %35 = vector.broadcast %cst_33 : f32 to vector<8x128xf32>
    %36 = arith.mulf %35, %34 : vector<8x128xf32>
    %cst_34 = arith.constant 0.00999999977 : f32
    %37 = vector.broadcast %cst_34 : f32 to vector<8x128xf32>
    %38 = arith.addf %37, %36 : vector<8x128xf32>
    %39 = vector.broadcast %26 : vector<1x128xf32> to vector<8x128xf32>
    %40 = arith.mulf %8, %39 : vector<8x128xf32>
    %41 = vector.broadcast %27 : vector<1x128xf32> to vector<8x128xf32>
    %42 = arith.mulf %41, %25 : vector<8x128xf32>
    %43 = arith.addf %40, %42 : vector<8x128xf32>
    %44 = arith.mulf %38, %8 : vector<8x128xf32>
    %45 = arith.subf %43, %44 : vector<8x128xf32>
    %46 = arith.subf %45, %38 : vector<8x128xf32>
    %cst_35 = arith.constant 0.000000e+00 : f32
    %47 = vector.broadcast %cst_35 : f32 to vector<8x128xf32>
    %48 = arith.cmpf ogt, %46, %47 : vector<8x128xf32>
    %49 = arith.extui %48 : vector<8x128xi1> to vector<8x128xi32>
    %50 = arith.sitofp %49 : vector<8x128xi32> to vector<8x128xf32>
    %51 = tpu.concatenate %50, %9 in 1 : vector<8x128xf32>, vector<8x128xf32> -> vector<8x256xf32>
    %c0_36 = arith.constant 0 : index
    %c0_37 = arith.constant 0 : index
    %52 = vector.load %arg3[%c0_36, %c0_37] : memref<256x128xf32, #tpu.memory_space<vmem>>, vector<256x128xf32>
    %cst_38 = arith.constant dense<0.000000e+00> : vector<8x128xf32>
    %53 = tpu.matmul %51, %52, %cst_38 {dimension_numbers = #tpu.dot_dimension_numbers<[1], [0], [0], [1], [0, 0, 1, 1], [], []>} : vector<8x256xf32>, vector<256x128xf32>, vector<8x128xf32> -> vector<8x128xf32>
    %54 = vector.broadcast %5 : vector<1x128xf32> to vector<8x128xf32>
    %55 = arith.addf %53, %54 : vector<8x128xf32>
    %56 = vector.extract_strided_slice %1 {offsets = [0, 0], sizes = [1, 128], strides = [1, 1]} : vector<4x128xf32> to vector<1x128xf32>
    %57 = vector.extract_strided_slice %1 {offsets = [1, 0], sizes = [1, 128], strides = [1, 1]} : vector<4x128xf32> to vector<1x128xf32>
    %58 = vector.extract_strided_slice %1 {offsets = [2, 0], sizes = [1, 128], strides = [1, 1]} : vector<4x128xf32> to vector<1x128xf32>
    %59 = vector.extract_strided_slice %1 {offsets = [3, 0], sizes = [1, 128], strides = [1, 1]} : vector<4x128xf32> to vector<1x128xf32>
    %60 = vector.broadcast %58 : vector<1x128xf32> to vector<8x128xf32>
    %61 = arith.mulf %60, %13 : vector<8x128xf32>
    %62 = vector.broadcast %59 : vector<1x128xf32> to vector<8x128xf32>
    %63 = arith.mulf %62, %9 : vector<8x128xf32>
    %64 = arith.addf %61, %63 : vector<8x128xf32>
    %cst_39 = arith.constant 1.800000e+00 : f32
    %65 = vector.broadcast %cst_39 : f32 to vector<8x128xf32>
    %66 = arith.mulf %65, %64 : vector<8x128xf32>
    %cst_40 = arith.constant 0.00999999977 : f32
    %67 = vector.broadcast %cst_40 : f32 to vector<8x128xf32>
    %68 = arith.addf %67, %66 : vector<8x128xf32>
    %69 = vector.broadcast %56 : vector<1x128xf32> to vector<8x128xf32>
    %70 = arith.mulf %9, %69 : vector<8x128xf32>
    %71 = vector.broadcast %57 : vector<1x128xf32> to vector<8x128xf32>
    %72 = arith.mulf %71, %55 : vector<8x128xf32>
    %73 = arith.addf %70, %72 : vector<8x128xf32>
    %74 = arith.mulf %68, %9 : vector<8x128xf32>
    %75 = arith.subf %73, %74 : vector<8x128xf32>
    %76 = arith.subf %75, %68 : vector<8x128xf32>
    %cst_41 = arith.constant 0.000000e+00 : f32
    %77 = vector.broadcast %cst_41 : f32 to vector<8x128xf32>
    %78 = arith.cmpf ogt, %76, %77 : vector<8x128xf32>
    %79 = arith.extui %78 : vector<8x128xi1> to vector<8x128xi32>
    %80 = arith.sitofp %79 : vector<8x128xi32> to vector<8x128xf32>
    %c0_42 = arith.constant 0 : index
    %c0_43 = arith.constant 0 : index
    %81 = vector.load %arg5[%c0_42, %c0_43] : memref<128x128xf32, #tpu.memory_space<vmem>>, vector<128x128xf32>
    %cst_44 = arith.constant dense<0.000000e+00> : vector<8x128xf32>
    %82 = tpu.matmul %80, %81, %cst_44 {dimension_numbers = #tpu.dot_dimension_numbers<[1], [0], [0], [1], [0, 0, 1, 1], [], []>} : vector<8x128xf32>, vector<128x128xf32>, vector<8x128xf32> -> vector<8x128xf32>
    %83 = vector.broadcast %6 : vector<1x128xf32> to vector<8x128xf32>
    %84 = arith.addf %82, %83 : vector<8x128xf32>
    %85 = vector.extract_strided_slice %2 {offsets = [0, 0], sizes = [1, 128], strides = [1, 1]} : vector<4x128xf32> to vector<1x128xf32>
    %86 = vector.extract_strided_slice %2 {offsets = [1, 0], sizes = [1, 128], strides = [1, 1]} : vector<4x128xf32> to vector<1x128xf32>
    %87 = vector.extract_strided_slice %2 {offsets = [2, 0], sizes = [1, 128], strides = [1, 1]} : vector<4x128xf32> to vector<1x128xf32>
    %88 = vector.extract_strided_slice %2 {offsets = [3, 0], sizes = [1, 128], strides = [1, 1]} : vector<4x128xf32> to vector<1x128xf32>
    %89 = vector.broadcast %87 : vector<1x128xf32> to vector<8x128xf32>
    %90 = arith.mulf %89, %14 : vector<8x128xf32>
    %91 = vector.broadcast %88 : vector<1x128xf32> to vector<8x128xf32>
    %92 = arith.mulf %91, %10 : vector<8x128xf32>
    %93 = arith.addf %90, %92 : vector<8x128xf32>
    %cst_45 = arith.constant 1.800000e+00 : f32
    %94 = vector.broadcast %cst_45 : f32 to vector<8x128xf32>
    %95 = arith.mulf %94, %93 : vector<8x128xf32>
    %cst_46 = arith.constant 0.00999999977 : f32
    %96 = vector.broadcast %cst_46 : f32 to vector<8x128xf32>
    %97 = arith.addf %96, %95 : vector<8x128xf32>
    %98 = vector.broadcast %85 : vector<1x128xf32> to vector<8x128xf32>
    %99 = arith.mulf %10, %98 : vector<8x128xf32>
    %100 = vector.broadcast %86 : vector<1x128xf32> to vector<8x128xf32>
    %101 = arith.mulf %100, %84 : vector<8x128xf32>
    %102 = arith.addf %99, %101 : vector<8x128xf32>
    %103 = arith.mulf %97, %10 : vector<8x128xf32>
    %104 = arith.subf %102, %103 : vector<8x128xf32>
    %105 = arith.subf %104, %97 : vector<8x128xf32>
    %cst_47 = arith.constant 0.000000e+00 : f32
    %106 = vector.broadcast %cst_47 : f32 to vector<8x128xf32>
    %107 = arith.cmpf ogt, %105, %106 : vector<8x128xf32>
    %108 = arith.extui %107 : vector<8x128xi1> to vector<8x128xi32>
    %109 = arith.sitofp %108 : vector<8x128xi32> to vector<8x128xf32>
    %c0_48 = arith.constant 0 : index
    %c0_49 = arith.constant 0 : index
    %110 = vector.load %arg7[%c0_48, %c0_49] : memref<128x128xf32, #tpu.memory_space<vmem>>, vector<128x128xf32>
    %cst_50 = arith.constant dense<0.000000e+00> : vector<8x128xf32>
    %111 = tpu.matmul %109, %110, %cst_50 {dimension_numbers = #tpu.dot_dimension_numbers<[1], [0], [0], [1], [0, 0, 1, 1], [], []>} : vector<8x128xf32>, vector<128x128xf32>, vector<8x128xf32> -> vector<8x128xf32>
    %112 = vector.broadcast %7 : vector<1x128xf32> to vector<8x128xf32>
    %113 = arith.addf %111, %112 : vector<8x128xf32>
    %114 = vector.extract_strided_slice %3 {offsets = [0, 0], sizes = [1, 128], strides = [1, 1]} : vector<4x128xf32> to vector<1x128xf32>
    %115 = vector.extract_strided_slice %3 {offsets = [1, 0], sizes = [1, 128], strides = [1, 1]} : vector<4x128xf32> to vector<1x128xf32>
    %116 = vector.extract_strided_slice %3 {offsets = [2, 0], sizes = [1, 128], strides = [1, 1]} : vector<4x128xf32> to vector<1x128xf32>
    %117 = vector.extract_strided_slice %3 {offsets = [3, 0], sizes = [1, 128], strides = [1, 1]} : vector<4x128xf32> to vector<1x128xf32>
    %118 = vector.broadcast %116 : vector<1x128xf32> to vector<8x128xf32>
    %119 = arith.mulf %118, %16 : vector<8x128xf32>
    %120 = vector.broadcast %117 : vector<1x128xf32> to vector<8x128xf32>
    %121 = arith.mulf %120, %15 : vector<8x128xf32>
    %122 = arith.addf %119, %121 : vector<8x128xf32>
    %cst_51 = arith.constant 1.800000e+00 : f32
    %123 = vector.broadcast %cst_51 : f32 to vector<8x128xf32>
    %124 = arith.mulf %123, %122 : vector<8x128xf32>
    %cst_52 = arith.constant 0.00999999977 : f32
    %125 = vector.broadcast %cst_52 : f32 to vector<8x128xf32>
    %126 = arith.addf %125, %124 : vector<8x128xf32>
    %127 = vector.broadcast %114 : vector<1x128xf32> to vector<8x128xf32>
    %128 = arith.mulf %11, %127 : vector<8x128xf32>
    %129 = vector.broadcast %115 : vector<1x128xf32> to vector<8x128xf32>
    %130 = arith.mulf %129, %113 : vector<8x128xf32>
    %131 = arith.addf %128, %130 : vector<8x128xf32>
    %132 = arith.mulf %126, %15 : vector<8x128xf32>
    %133 = arith.subf %131, %132 : vector<8x128xf32>
    %134 = arith.subf %133, %126 : vector<8x128xf32>
    %cst_53 = arith.constant 0.000000e+00 : f32
    %135 = vector.broadcast %cst_53 : f32 to vector<8x128xf32>
    %136 = arith.cmpf ogt, %134, %135 : vector<8x128xf32>
    %137 = arith.extui %136 : vector<8x128xi1> to vector<8x128xi32>
    %138 = arith.sitofp %137 : vector<8x128xi32> to vector<8x128xf32>
    %c0_i32_54 = arith.constant 0 : i32
    %139 = arith.cmpi sgt, %c0_i32, %c0_i32_54 : i32
    %140 = arith.addf %17, %138 : vector<8x128xf32>
    %141 = arith.select %139, %140, %17 : vector<8x128xf32>
    %142 = tpu.concatenate %50, %80, %109, %138 in 1 : vector<8x128xf32>, vector<8x128xf32>, vector<8x128xf32>, vector<8x128xf32> -> vector<8x512xf32>
    %143 = arith.index_cast %c0_i32 : i32 to index
    %c0_55 = arith.constant 0 : index
    %c0_56 = arith.constant 0 : index
    %144 = vector.load %arg18[%143, %c0_55, %c0_56] : memref<8x8x512xf32, #tpu.memory_space<vmem>>, vector<1x8x512xf32>
    %145 = vector.shape_cast %144 : vector<1x8x512xf32> to vector<8x512xf32>
    %146 = vector.shape_cast %142 : vector<8x512xf32> to vector<1x8x512xf32>
    tpu.vector_store %arg18[%143, %c0_55, %c0_56], %146 {strides = array<i32>} : memref<8x8x512xf32, #tpu.memory_space<vmem>>, vector<1x8x512xf32>,
    %c1_i32 = arith.constant 1 : i32
    %147 = arith.index_cast %c1_i32 : i32 to index
    %c0_57 = arith.constant 0 : index
    %c0_58 = arith.constant 0 : index
    %148 = vector.load %arg0[%147, %c0_57, %c0_58] : memref<8x8x128xf32, #tpu.memory_space<vmem>>, vector<1x8x128xf32>
    %149 = vector.shape_cast %148 : vector<1x8x128xf32> to vector<8x128xf32>
    %150 = tpu.concatenate %149, %50 in 1 : vector<8x128xf32>, vector<8x128xf32> -> vector<8x256xf32>
    %c0_59 = arith.constant 0 : index
    %c0_60 = arith.constant 0 : index
    %151 = vector.load %arg1[%c0_59, %c0_60] : memref<256x128xf32, #tpu.memory_space<vmem>>, vector<256x128xf32>
    %cst_61 = arith.constant dense<0.000000e+00> : vector<8x128xf32>
    %152 = tpu.matmul %150, %151, %cst_61 {dimension_numbers = #tpu.dot_dimension_numbers<[1], [0], [0], [1], [0, 0, 1, 1], [], []>} : vector<8x256xf32>, vector<256x128xf32>, vector<8x128xf32> -> vector<8x128xf32>
    %153 = vector.broadcast %4 : vector<1x128xf32> to vector<8x128xf32>
    %154 = arith.addf %152, %153 : vector<8x128xf32>
    %155 = vector.extract_strided_slice %0 {offsets = [0, 0], sizes = [1, 128], strides = [1, 1]} : vector<4x128xf32> to vector<1x128xf32>
    %156 = vector.extract_strided_slice %0 {offsets = [1, 0], sizes = [1, 128], strides = [1, 1]} : vector<4x128xf32> to vector<1x128xf32>
    %157 = vector.extract_strided_slice %0 {offsets = [2, 0], sizes = [1, 128], strides = [1, 1]} : vector<4x128xf32> to vector<1x128xf32>
    %158 = vector.extract_strided_slice %0 {offsets = [3, 0], sizes = [1, 128], strides = [1, 1]} : vector<4x128xf32> to vector<1x128xf32>
    %159 = vector.broadcast %157 : vector<1x128xf32> to vector<8x128xf32>
    %160 = arith.mulf %159, %34 : vector<8x128xf32>
    %161 = vector.broadcast %158 : vector<1x128xf32> to vector<8x128xf32>
    %162 = arith.mulf %161, %50 : vector<8x128xf32>
    %163 = arith.addf %160, %162 : vector<8x128xf32>
    %cst_62 = arith.constant 1.800000e+00 : f32
    %164 = vector.broadcast %cst_62 : f32 to vector<8x128xf32>
    %165 = arith.mulf %164, %163 : vector<8x128xf32>
    %cst_63 = arith.constant 0.00999999977 : f32
    %166 = vector.broadcast %cst_63 : f32 to vector<8x128xf32>
    %167 = arith.addf %166, %165 : vector<8x128xf32>
    %168 = vector.broadcast %155 : vector<1x128xf32> to vector<8x128xf32>
    %169 = arith.mulf %45, %168 : vector<8x128xf32>
    %170 = vector.broadcast %156 : vector<1x128xf32> to vector<8x128xf32>
    %171 = arith.mulf %170, %154 : vector<8x128xf32>
    %172 = arith.addf %169, %171 : vector<8x128xf32>
    %173 = arith.mulf %167, %50 : vector<8x128xf32>
    %174 = arith.subf %172, %173 : vector<8x128xf32>
    %175 = arith.subf %174, %167 : vector<8x128xf32>
    %cst_64 = arith.constant 0.000000e+00 : f32
    %176 = vector.broadcast %cst_64 : f32 to vector<8x128xf32>
    %177 = arith.cmpf ogt, %175, %176 : vector<8x128xf32>
    %178 = arith.extui %177 : vector<8x128xi1> to vector<8x128xi32>
    %179 = arith.sitofp %178 : vector<8x128xi32> to vector<8x128xf32>
    %180 = tpu.concatenate %179, %80 in 1 : vector<8x128xf32>, vector<8x128xf32> -> vector<8x256xf32>
    %c0_65 = arith.constant 0 : index
    %c0_66 = arith.constant 0 : index
    %181 = vector.load %arg3[%c0_65, %c0_66] : memref<256x128xf32, #tpu.memory_space<vmem>>, vector<256x128xf32>
    %cst_67 = arith.constant dense<0.000000e+00> : vector<8x128xf32>
    %182 = tpu.matmul %180, %181, %cst_67 {dimension_numbers = #tpu.dot_dimension_numbers<[1], [0], [0], [1], [0, 0, 1, 1], [], []>} : vector<8x256xf32>, vector<256x128xf32>, vector<8x128xf32> -> vector<8x128xf32>
    %183 = vector.broadcast %5 : vector<1x128xf32> to vector<8x128xf32>
    %184 = arith.addf %182, %183 : vector<8x128xf32>
    %185 = vector.extract_strided_slice %1 {offsets = [0, 0], sizes = [1, 128], strides = [1, 1]} : vector<4x128xf32> to vector<1x128xf32>
    %186 = vector.extract_strided_slice %1 {offsets = [1, 0], sizes = [1, 128], strides = [1, 1]} : vector<4x128xf32> to vector<1x128xf32>
    %187 = vector.extract_strided_slice %1 {offsets = [2, 0], sizes = [1, 128], strides = [1, 1]} : vector<4x128xf32> to vector<1x128xf32>
    %188 = vector.extract_strided_slice %1 {offsets = [3, 0], sizes = [1, 128], strides = [1, 1]} : vector<4x128xf32> to vector<1x128xf32>
    %189 = vector.broadcast %187 : vector<1x128xf32> to vector<8x128xf32>
    %190 = arith.mulf %189, %64 : vector<8x128xf32>
    %191 = vector.broadcast %188 : vector<1x128xf32> to vector<8x128xf32>
    %192 = arith.mulf %191, %80 : vector<8x128xf32>
    %193 = arith.addf %190, %192 : vector<8x128xf32>
    %cst_68 = arith.constant 1.800000e+00 : f32
    %194 = vector.broadcast %cst_68 : f32 to vector<8x128xf32>
    %195 = arith.mulf %194, %193 : vector<8x128xf32>
    %cst_69 = arith.constant 0.00999999977 : f32
    %196 = vector.broadcast %cst_69 : f32 to vector<8x128xf32>
    %197 = arith.addf %196, %195 : vector<8x128xf32>
    %198 = vector.broadcast %185 : vector<1x128xf32> to vector<8x128xf32>
    %199 = arith.mulf %75, %198 : vector<8x128xf32>
    %200 = vector.broadcast %186 : vector<1x128xf32> to vector<8x128xf32>
    %201 = arith.mulf %200, %184 : vector<8x128xf32>
    %202 = arith.addf %199, %201 : vector<8x128xf32>
    %203 = arith.mulf %197, %80 : vector<8x128xf32>
    %204 = arith.subf %202, %203 : vector<8x128xf32>
    %205 = arith.subf %204, %197 : vector<8x128xf32>
    %cst_70 = arith.constant 0.000000e+00 : f32
    %206 = vector.broadcast %cst_70 : f32 to vector<8x128xf32>
    %207 = arith.cmpf ogt, %205, %206 : vector<8x128xf32>
    %208 = arith.extui %207 : vector<8x128xi1> to vector<8x128xi32>
    %209 = arith.sitofp %208 : vector<8x128xi32> to vector<8x128xf32>
    %c0_71 = arith.constant 0 : index
    %c0_72 = arith.constant 0 : index
    %210 = vector.load %arg5[%c0_71, %c0_72] : memref<128x128xf32, #tpu.memory_space<vmem>>, vector<128x128xf32>
    %cst_73 = arith.constant dense<0.000000e+00> : vector<8x128xf32>
    %211 = tpu.matmul %209, %210, %cst_73 {dimension_numbers = #tpu.dot_dimension_numbers<[1], [0], [0], [1], [0, 0, 1, 1], [], []>} : vector<8x128xf32>, vector<128x128xf32>, vector<8x128xf32> -> vector<8x128xf32>
    %212 = vector.broadcast %6 : vector<1x128xf32> to vector<8x128xf32>
    %213 = arith.addf %211, %212 : vector<8x128xf32>
    %214 = vector.extract_strided_slice %2 {offsets = [0, 0], sizes = [1, 128], strides = [1, 1]} : vector<4x128xf32> to vector<1x128xf32>
    %215 = vector.extract_strided_slice %2 {offsets = [1, 0], sizes = [1, 128], strides = [1, 1]} : vector<4x128xf32> to vector<1x128xf32>
    %216 = vector.extract_strided_slice %2 {offsets = [2, 0], sizes = [1, 128], strides = [1, 1]} : vector<4x128xf32> to vector<1x128xf32>
    %217 = vector.extract_strided_slice %2 {offsets = [3, 0], sizes = [1, 128], strides = [1, 1]} : vector<4x128xf32> to vector<1x128xf32>
    %218 = vector.broadcast %216 : vector<1x128xf32> to vector<8x128xf32>
    %219 = arith.mulf %218, %93 : vector<8x128xf32>
    %220 = vector.broadcast %217 : vector<1x128xf32> to vector<8x128xf32>
    %221 = arith.mulf %220, %109 : vector<8x128xf32>
    %222 = arith.addf %219, %221 : vector<8x128xf32>
    %cst_74 = arith.constant 1.800000e+00 : f32
    %223 = vector.broadcast %cst_74 : f32 to vector<8x128xf32>
    %224 = arith.mulf %223, %222 : vector<8x128xf32>
    %cst_75 = arith.constant 0.00999999977 : f32
    %225 = vector.broadcast %cst_75 : f32 to vector<8x128xf32>
    %226 = arith.addf %225, %224 : vector<8x128xf32>
    %227 = vector.broadcast %214 : vector<1x128xf32> to vector<8x128xf32>
    %228 = arith.mulf %104, %227 : vector<8x128xf32>
    %229 = vector.broadcast %215 : vector<1x128xf32> to vector<8x128xf32>
    %230 = arith.mulf %229, %213 : vector<8x128xf32>
    %231 = arith.addf %228, %230 : vector<8x128xf32>
    %232 = arith.mulf %226, %109 : vector<8x128xf32>
    %233 = arith.subf %231, %232 : vector<8x128xf32>
    %234 = arith.subf %233, %226 : vector<8x128xf32>
    %cst_76 = arith.constant 0.000000e+00 : f32
    %235 = vector.broadcast %cst_76 : f32 to vector<8x128xf32>
    %236 = arith.cmpf ogt, %234, %235 : vector<8x128xf32>
    %237 = arith.extui %236 : vector<8x128xi1> to vector<8x128xi32>
    %238 = arith.sitofp %237 : vector<8x128xi32> to vector<8x128xf32>
    %c0_77 = arith.constant 0 : index
    %c0_78 = arith.constant 0 : index
    %239 = vector.load %arg7[%c0_77, %c0_78] : memref<128x128xf32, #tpu.memory_space<vmem>>, vector<128x128xf32>
    %cst_79 = arith.constant dense<0.000000e+00> : vector<8x128xf32>
    %240 = tpu.matmul %238, %239, %cst_79 {dimension_numbers = #tpu.dot_dimension_numbers<[1], [0], [0], [1], [0, 0, 1, 1], [], []>} : vector<8x128xf32>, vector<128x128xf32>, vector<8x128xf32> -> vector<8x128xf32>
    %241 = vector.broadcast %7 : vector<1x128xf32> to vector<8x128xf32>
    %242 = arith.addf %240, %241 : vector<8x128xf32>
    %243 = vector.extract_strided_slice %3 {offsets = [0, 0], sizes = [1, 128], strides = [1, 1]} : vector<4x128xf32> to vector<1x128xf32>
    %244 = vector.extract_strided_slice %3 {offsets = [1, 0], sizes = [1, 128], strides = [1, 1]} : vector<4x128xf32> to vector<1x128xf32>
    %245 = vector.extract_strided_slice %3 {offsets = [2, 0], sizes = [1, 128], strides = [1, 1]} : vector<4x128xf32> to vector<1x128xf32>
    %246 = vector.extract_strided_slice %3 {offsets = [3, 0], sizes = [1, 128], strides = [1, 1]} : vector<4x128xf32> to vector<1x128xf32>
    %247 = vector.broadcast %245 : vector<1x128xf32> to vector<8x128xf32>
    %248 = arith.mulf %247, %122 : vector<8x128xf32>
    %249 = vector.broadcast %246 : vector<1x128xf32> to vector<8x128xf32>
    %250 = arith.mulf %249, %138 : vector<8x128xf32>
    %251 = arith.addf %248, %250 : vector<8x128xf32>
    %cst_80 = arith.constant 1.800000e+00 : f32
    %252 = vector.broadcast %cst_80 : f32 to vector<8x128xf32>
    %253 = arith.mulf %252, %251 : vector<8x128xf32>
    %cst_81 = arith.constant 0.00999999977 : f32
    %254 = vector.broadcast %cst_81 : f32 to vector<8x128xf32>
    %255 = arith.addf %254, %253 : vector<8x128xf32>
    %256 = vector.broadcast %243 : vector<1x128xf32> to vector<8x128xf32>
    %257 = arith.mulf %133, %256 : vector<8x128xf32>
    %258 = vector.broadcast %244 : vector<1x128xf32> to vector<8x128xf32>
    %259 = arith.mulf %258, %242 : vector<8x128xf32>
    %260 = arith.addf %257, %259 : vector<8x128xf32>
    %261 = arith.mulf %255, %138 : vector<8x128xf32>
    %262 = arith.subf %260, %261 : vector<8x128xf32>
    %263 = arith.subf %262, %255 : vector<8x128xf32>
    %cst_82 = arith.constant 0.000000e+00 : f32
    %264 = vector.broadcast %cst_82 : f32 to vector<8x128xf32>
    %265 = arith.cmpf ogt, %263, %264 : vector<8x128xf32>
    %266 = arith.extui %265 : vector<8x128xi1> to vector<8x128xi32>
    %267 = arith.sitofp %266 : vector<8x128xi32> to vector<8x128xf32>
    %c0_i32_83 = arith.constant 0 : i32
    %268 = arith.cmpi sgt, %c1_i32, %c0_i32_83 : i32
    %269 = arith.addf %141, %267 : vector<8x128xf32>
    %270 = arith.select %268, %269, %141 : vector<8x128xf32>
    %271 = tpu.concatenate %179, %209, %238, %267 in 1 : vector<8x128xf32>, vector<8x128xf32>, vector<8x128xf32>, vector<8x128xf32> -> vector<8x512xf32>
    %272 = arith.index_cast %c1_i32 : i32 to index
    %c0_84 = arith.constant 0 : index
    %c0_85 = arith.constant 0 : index
    %273 = vector.load %arg18[%272, %c0_84, %c0_85] : memref<8x8x512xf32, #tpu.memory_space<vmem>>, vector<1x8x512xf32>
    %274 = vector.shape_cast %273 : vector<1x8x512xf32> to vector<8x512xf32>
    %275 = vector.shape_cast %271 : vector<8x512xf32> to vector<1x8x512xf32>
    tpu.vector_store %arg18[%272, %c0_84, %c0_85], %275 {strides = array<i32>} : memref<8x8x512xf32, #tpu.memory_space<vmem>>, vector<1x8x512xf32>,
    %c2_i32 = arith.constant 2 : i32
    %276 = arith.index_cast %c2_i32 : i32 to index
    %c0_86 = arith.constant 0 : index
    %c0_87 = arith.constant 0 : index
    %277 = vector.load %arg0[%276, %c0_86, %c0_87] : memref<8x8x128xf32, #tpu.memory_space<vmem>>, vector<1x8x128xf32>
    %278 = vector.shape_cast %277 : vector<1x8x128xf32> to vector<8x128xf32>
    %279 = tpu.concatenate %278, %179 in 1 : vector<8x128xf32>, vector<8x128xf32> -> vector<8x256xf32>
    %c0_88 = arith.constant 0 : index
    %c0_89 = arith.constant 0 : index
    %280 = vector.load %arg1[%c0_88, %c0_89] : memref<256x128xf32, #tpu.memory_space<vmem>>, vector<256x128xf32>
    %cst_90 = arith.constant dense<0.000000e+00> : vector<8x128xf32>
    %281 = tpu.matmul %279, %280, %cst_90 {dimension_numbers = #tpu.dot_dimension_numbers<[1], [0], [0], [1], [0, 0, 1, 1], [], []>} : vector<8x256xf32>, vector<256x128xf32>, vector<8x128xf32> -> vector<8x128xf32>
    %282 = vector.broadcast %4 : vector<1x128xf32> to vector<8x128xf32>
    %283 = arith.addf %281, %282 : vector<8x128xf32>
    %284 = vector.extract_strided_slice %0 {offsets = [0, 0], sizes = [1, 128], strides = [1, 1]} : vector<4x128xf32> to vector<1x128xf32>
    %285 = vector.extract_strided_slice %0 {offsets = [1, 0], sizes = [1, 128], strides = [1, 1]} : vector<4x128xf32> to vector<1x128xf32>
    %286 = vector.extract_strided_slice %0 {offsets = [2, 0], sizes = [1, 128], strides = [1, 1]} : vector<4x128xf32> to vector<1x128xf32>
    %287 = vector.extract_strided_slice %0 {offsets = [3, 0], sizes = [1, 128], strides = [1, 1]} : vector<4x128xf32> to vector<1x128xf32>
    %288 = vector.broadcast %286 : vector<1x128xf32> to vector<8x128xf32>
    %289 = arith.mulf %288, %163 : vector<8x128xf32>
    %290 = vector.broadcast %287 : vector<1x128xf32> to vector<8x128xf32>
    %291 = arith.mulf %290, %179 : vector<8x128xf32>
    %292 = arith.addf %289, %291 : vector<8x128xf32>
    %cst_91 = arith.constant 1.800000e+00 : f32
    %293 = vector.broadcast %cst_91 : f32 to vector<8x128xf32>
    %294 = arith.mulf %293, %292 : vector<8x128xf32>
    %cst_92 = arith.constant 0.00999999977 : f32
    %295 = vector.broadcast %cst_92 : f32 to vector<8x128xf32>
    %296 = arith.addf %295, %294 : vector<8x128xf32>
    %297 = vector.broadcast %284 : vector<1x128xf32> to vector<8x128xf32>
    %298 = arith.mulf %174, %297 : vector<8x128xf32>
    %299 = vector.broadcast %285 : vector<1x128xf32> to vector<8x128xf32>
    %300 = arith.mulf %299, %283 : vector<8x128xf32>
    %301 = arith.addf %298, %300 : vector<8x128xf32>
    %302 = arith.mulf %296, %179 : vector<8x128xf32>
    %303 = arith.subf %301, %302 : vector<8x128xf32>
    %304 = arith.subf %303, %296 : vector<8x128xf32>
    %cst_93 = arith.constant 0.000000e+00 : f32
    %305 = vector.broadcast %cst_93 : f32 to vector<8x128xf32>
    %306 = arith.cmpf ogt, %304, %305 : vector<8x128xf32>
    %307 = arith.extui %306 : vector<8x128xi1> to vector<8x128xi32>
    %308 = arith.sitofp %307 : vector<8x128xi32> to vector<8x128xf32>
    %309 = tpu.concatenate %308, %209 in 1 : vector<8x128xf32>, vector<8x128xf32> -> vector<8x256xf32>
    %c0_94 = arith.constant 0 : index
    %c0_95 = arith.constant 0 : index
    %310 = vector.load %arg3[%c0_94, %c0_95] : memref<256x128xf32, #tpu.memory_space<vmem>>, vector<256x128xf32>
    %cst_96 = arith.constant dense<0.000000e+00> : vector<8x128xf32>
    %311 = tpu.matmul %309, %310, %cst_96 {dimension_numbers = #tpu.dot_dimension_numbers<[1], [0], [0], [1], [0, 0, 1, 1], [], []>} : vector<8x256xf32>, vector<256x128xf32>, vector<8x128xf32> -> vector<8x128xf32>
    %312 = vector.broadcast %5 : vector<1x128xf32> to vector<8x128xf32>
    %313 = arith.addf %311, %312 : vector<8x128xf32>
    %314 = vector.extract_strided_slice %1 {offsets = [0, 0], sizes = [1, 128], strides = [1, 1]} : vector<4x128xf32> to vector<1x128xf32>
    %315 = vector.extract_strided_slice %1 {offsets = [1, 0], sizes = [1, 128], strides = [1, 1]} : vector<4x128xf32> to vector<1x128xf32>
    %316 = vector.extract_strided_slice %1 {offsets = [2, 0], sizes = [1, 128], strides = [1, 1]} : vector<4x128xf32> to vector<1x128xf32>
    %317 = vector.extract_strided_slice %1 {offsets = [3, 0], sizes = [1, 128], strides = [1, 1]} : vector<4x128xf32> to vector<1x128xf32>
    %318 = vector.broadcast %316 : vector<1x128xf32> to vector<8x128xf32>
    %319 = arith.mulf %318, %193 : vector<8x128xf32>
    %320 = vector.broadcast %317 : vector<1x128xf32> to vector<8x128xf32>
    %321 = arith.mulf %320, %209 : vector<8x128xf32>
    %322 = arith.addf %319, %321 : vector<8x128xf32>
    %cst_97 = arith.constant 1.800000e+00 : f32
    %323 = vector.broadcast %cst_97 : f32 to vector<8x128xf32>
    %324 = arith.mulf %323, %322 : vector<8x128xf32>
    %cst_98 = arith.constant 0.00999999977 : f32
    %325 = vector.broadcast %cst_98 : f32 to vector<8x128xf32>
    %326 = arith.addf %325, %324 : vector<8x128xf32>
    %327 = vector.broadcast %314 : vector<1x128xf32> to vector<8x128xf32>
    %328 = arith.mulf %204, %327 : vector<8x128xf32>
    %329 = vector.broadcast %315 : vector<1x128xf32> to vector<8x128xf32>
    %330 = arith.mulf %329, %313 : vector<8x128xf32>
    %331 = arith.addf %328, %330 : vector<8x128xf32>
    %332 = arith.mulf %326, %209 : vector<8x128xf32>
    %333 = arith.subf %331, %332 : vector<8x128xf32>
    %334 = arith.subf %333, %326 : vector<8x128xf32>
    %cst_99 = arith.constant 0.000000e+00 : f32
    %335 = vector.broadcast %cst_99 : f32 to vector<8x128xf32>
    %336 = arith.cmpf ogt, %334, %335 : vector<8x128xf32>
    %337 = arith.extui %336 : vector<8x128xi1> to vector<8x128xi32>
    %338 = arith.sitofp %337 : vector<8x128xi32> to vector<8x128xf32>
    %c0_100 = arith.constant 0 : index
    %c0_101 = arith.constant 0 : index
    %339 = vector.load %arg5[%c0_100, %c0_101] : memref<128x128xf32, #tpu.memory_space<vmem>>, vector<128x128xf32>
    %cst_102 = arith.constant dense<0.000000e+00> : vector<8x128xf32>
    %340 = tpu.matmul %338, %339, %cst_102 {dimension_numbers = #tpu.dot_dimension_numbers<[1], [0], [0], [1], [0, 0, 1, 1], [], []>} : vector<8x128xf32>, vector<128x128xf32>, vector<8x128xf32> -> vector<8x128xf32>
    %341 = vector.broadcast %6 : vector<1x128xf32> to vector<8x128xf32>
    %342 = arith.addf %340, %341 : vector<8x128xf32>
    %343 = vector.extract_strided_slice %2 {offsets = [0, 0], sizes = [1, 128], strides = [1, 1]} : vector<4x128xf32> to vector<1x128xf32>
    %344 = vector.extract_strided_slice %2 {offsets = [1, 0], sizes = [1, 128], strides = [1, 1]} : vector<4x128xf32> to vector<1x128xf32>
    %345 = vector.extract_strided_slice %2 {offsets = [2, 0], sizes = [1, 128], strides = [1, 1]} : vector<4x128xf32> to vector<1x128xf32>
    %346 = vector.extract_strided_slice %2 {offsets = [3, 0], sizes = [1, 128], strides = [1, 1]} : vector<4x128xf32> to vector<1x128xf32>
    %347 = vector.broadcast %345 : vector<1x128xf32> to vector<8x128xf32>
    %348 = arith.mulf %347, %222 : vector<8x128xf32>
    %349 = vector.broadcast %346 : vector<1x128xf32> to vector<8x128xf32>
    %350 = arith.mulf %349, %238 : vector<8x128xf32>
    %351 = arith.addf %348, %350 : vector<8x128xf32>
    %cst_103 = arith.constant 1.800000e+00 : f32
    %352 = vector.broadcast %cst_103 : f32 to vector<8x128xf32>
    %353 = arith.mulf %352, %351 : vector<8x128xf32>
    %cst_104 = arith.constant 0.00999999977 : f32
    %354 = vector.broadcast %cst_104 : f32 to vector<8x128xf32>
    %355 = arith.addf %354, %353 : vector<8x128xf32>
    %356 = vector.broadcast %343 : vector<1x128xf32> to vector<8x128xf32>
    %357 = arith.mulf %233, %356 : vector<8x128xf32>
    %358 = vector.broadcast %344 : vector<1x128xf32> to vector<8x128xf32>
    %359 = arith.mulf %358, %342 : vector<8x128xf32>
    %360 = arith.addf %357, %359 : vector<8x128xf32>
    %361 = arith.mulf %355, %238 : vector<8x128xf32>
    %362 = arith.subf %360, %361 : vector<8x128xf32>
    %363 = arith.subf %362, %355 : vector<8x128xf32>
    %cst_105 = arith.constant 0.000000e+00 : f32
    %364 = vector.broadcast %cst_105 : f32 to vector<8x128xf32>
    %365 = arith.cmpf ogt, %363, %364 : vector<8x128xf32>
    %366 = arith.extui %365 : vector<8x128xi1> to vector<8x128xi32>
    %367 = arith.sitofp %366 : vector<8x128xi32> to vector<8x128xf32>
    %c0_106 = arith.constant 0 : index
    %c0_107 = arith.constant 0 : index
    %368 = vector.load %arg7[%c0_106, %c0_107] : memref<128x128xf32, #tpu.memory_space<vmem>>, vector<128x128xf32>
    %cst_108 = arith.constant dense<0.000000e+00> : vector<8x128xf32>
    %369 = tpu.matmul %367, %368, %cst_108 {dimension_numbers = #tpu.dot_dimension_numbers<[1], [0], [0], [1], [0, 0, 1, 1], [], []>} : vector<8x128xf32>, vector<128x128xf32>, vector<8x128xf32> -> vector<8x128xf32>
    %370 = vector.broadcast %7 : vector<1x128xf32> to vector<8x128xf32>
    %371 = arith.addf %369, %370 : vector<8x128xf32>
    %372 = vector.extract_strided_slice %3 {offsets = [0, 0], sizes = [1, 128], strides = [1, 1]} : vector<4x128xf32> to vector<1x128xf32>
    %373 = vector.extract_strided_slice %3 {offsets = [1, 0], sizes = [1, 128], strides = [1, 1]} : vector<4x128xf32> to vector<1x128xf32>
    %374 = vector.extract_strided_slice %3 {offsets = [2, 0], sizes = [1, 128], strides = [1, 1]} : vector<4x128xf32> to vector<1x128xf32>
    %375 = vector.extract_strided_slice %3 {offsets = [3, 0], sizes = [1, 128], strides = [1, 1]} : vector<4x128xf32> to vector<1x128xf32>
    %376 = vector.broadcast %374 : vector<1x128xf32> to vector<8x128xf32>
    %377 = arith.mulf %376, %251 : vector<8x128xf32>
    %378 = vector.broadcast %375 : vector<1x128xf32> to vector<8x128xf32>
    %379 = arith.mulf %378, %267 : vector<8x128xf32>
    %380 = arith.addf %377, %379 : vector<8x128xf32>
    %cst_109 = arith.constant 1.800000e+00 : f32
    %381 = vector.broadcast %cst_109 : f32 to vector<8x128xf32>
    %382 = arith.mulf %381, %380 : vector<8x128xf32>
    %cst_110 = arith.constant 0.00999999977 : f32
    %383 = vector.broadcast %cst_110 : f32 to vector<8x128xf32>
    %384 = arith.addf %383, %382 : vector<8x128xf32>
    %385 = vector.broadcast %372 : vector<1x128xf32> to vector<8x128xf32>
    %386 = arith.mulf %262, %385 : vector<8x128xf32>
    %387 = vector.broadcast %373 : vector<1x128xf32> to vector<8x128xf32>
    %388 = arith.mulf %387, %371 : vector<8x128xf32>
    %389 = arith.addf %386, %388 : vector<8x128xf32>
    %390 = arith.mulf %384, %267 : vector<8x128xf32>
    %391 = arith.subf %389, %390 : vector<8x128xf32>
    %392 = arith.subf %391, %384 : vector<8x128xf32>
    %cst_111 = arith.constant 0.000000e+00 : f32
    %393 = vector.broadcast %cst_111 : f32 to vector<8x128xf32>
    %394 = arith.cmpf ogt, %392, %393 : vector<8x128xf32>
    %395 = arith.extui %394 : vector<8x128xi1> to vector<8x128xi32>
    %396 = arith.sitofp %395 : vector<8x128xi32> to vector<8x128xf32>
    %c0_i32_112 = arith.constant 0 : i32
    %397 = arith.cmpi sgt, %c2_i32, %c0_i32_112 : i32
    %398 = arith.addf %270, %396 : vector<8x128xf32>
    %399 = arith.select %397, %398, %270 : vector<8x128xf32>
    %400 = tpu.concatenate %308, %338, %367, %396 in 1 : vector<8x128xf32>, vector<8x128xf32>, vector<8x128xf32>, vector<8x128xf32> -> vector<8x512xf32>
    %401 = arith.index_cast %c2_i32 : i32 to index
    %c0_113 = arith.constant 0 : index
    %c0_114 = arith.constant 0 : index
    %402 = vector.load %arg18[%401, %c0_113, %c0_114] : memref<8x8x512xf32, #tpu.memory_space<vmem>>, vector<1x8x512xf32>
    %403 = vector.shape_cast %402 : vector<1x8x512xf32> to vector<8x512xf32>
    %404 = vector.shape_cast %400 : vector<8x512xf32> to vector<1x8x512xf32>
    tpu.vector_store %arg18[%401, %c0_113, %c0_114], %404 {strides = array<i32>} : memref<8x8x512xf32, #tpu.memory_space<vmem>>, vector<1x8x512xf32>,
    %c3_i32 = arith.constant 3 : i32
    %405 = arith.index_cast %c3_i32 : i32 to index
    %c0_115 = arith.constant 0 : index
    %c0_116 = arith.constant 0 : index
    %406 = vector.load %arg0[%405, %c0_115, %c0_116] : memref<8x8x128xf32, #tpu.memory_space<vmem>>, vector<1x8x128xf32>
    %407 = vector.shape_cast %406 : vector<1x8x128xf32> to vector<8x128xf32>
    %408 = tpu.concatenate %407, %308 in 1 : vector<8x128xf32>, vector<8x128xf32> -> vector<8x256xf32>
    %c0_117 = arith.constant 0 : index
    %c0_118 = arith.constant 0 : index
    %409 = vector.load %arg1[%c0_117, %c0_118] : memref<256x128xf32, #tpu.memory_space<vmem>>, vector<256x128xf32>
    %cst_119 = arith.constant dense<0.000000e+00> : vector<8x128xf32>
    %410 = tpu.matmul %408, %409, %cst_119 {dimension_numbers = #tpu.dot_dimension_numbers<[1], [0], [0], [1], [0, 0, 1, 1], [], []>} : vector<8x256xf32>, vector<256x128xf32>, vector<8x128xf32> -> vector<8x128xf32>
    %411 = vector.broadcast %4 : vector<1x128xf32> to vector<8x128xf32>
    %412 = arith.addf %410, %411 : vector<8x128xf32>
    %413 = vector.extract_strided_slice %0 {offsets = [0, 0], sizes = [1, 128], strides = [1, 1]} : vector<4x128xf32> to vector<1x128xf32>
    %414 = vector.extract_strided_slice %0 {offsets = [1, 0], sizes = [1, 128], strides = [1, 1]} : vector<4x128xf32> to vector<1x128xf32>
    %415 = vector.extract_strided_slice %0 {offsets = [2, 0], sizes = [1, 128], strides = [1, 1]} : vector<4x128xf32> to vector<1x128xf32>
    %416 = vector.extract_strided_slice %0 {offsets = [3, 0], sizes = [1, 128], strides = [1, 1]} : vector<4x128xf32> to vector<1x128xf32>
    %417 = vector.broadcast %415 : vector<1x128xf32> to vector<8x128xf32>
    %418 = arith.mulf %417, %292 : vector<8x128xf32>
    %419 = vector.broadcast %416 : vector<1x128xf32> to vector<8x128xf32>
    %420 = arith.mulf %419, %308 : vector<8x128xf32>
    %421 = arith.addf %418, %420 : vector<8x128xf32>
    %cst_120 = arith.constant 1.800000e+00 : f32
    %422 = vector.broadcast %cst_120 : f32 to vector<8x128xf32>
    %423 = arith.mulf %422, %421 : vector<8x128xf32>
    %cst_121 = arith.constant 0.00999999977 : f32
    %424 = vector.broadcast %cst_121 : f32 to vector<8x128xf32>
    %425 = arith.addf %424, %423 : vector<8x128xf32>
    %426 = vector.broadcast %413 : vector<1x128xf32> to vector<8x128xf32>
    %427 = arith.mulf %303, %426 : vector<8x128xf32>
    %428 = vector.broadcast %414 : vector<1x128xf32> to vector<8x128xf32>
    %429 = arith.mulf %428, %412 : vector<8x128xf32>
    %430 = arith.addf %427, %429 : vector<8x128xf32>
    %431 = arith.mulf %425, %308 : vector<8x128xf32>
    %432 = arith.subf %430, %431 : vector<8x128xf32>
    %433 = arith.subf %432, %425 : vector<8x128xf32>
    %cst_122 = arith.constant 0.000000e+00 : f32
    %434 = vector.broadcast %cst_122 : f32 to vector<8x128xf32>
    %435 = arith.cmpf ogt, %433, %434 : vector<8x128xf32>
    %436 = arith.extui %435 : vector<8x128xi1> to vector<8x128xi32>
    %437 = arith.sitofp %436 : vector<8x128xi32> to vector<8x128xf32>
    %438 = tpu.concatenate %437, %338 in 1 : vector<8x128xf32>, vector<8x128xf32> -> vector<8x256xf32>
    %c0_123 = arith.constant 0 : index
    %c0_124 = arith.constant 0 : index
    %439 = vector.load %arg3[%c0_123, %c0_124] : memref<256x128xf32, #tpu.memory_space<vmem>>, vector<256x128xf32>
    %cst_125 = arith.constant dense<0.000000e+00> : vector<8x128xf32>
    %440 = tpu.matmul %438, %439, %cst_125 {dimension_numbers = #tpu.dot_dimension_numbers<[1], [0], [0], [1], [0, 0, 1, 1], [], []>} : vector<8x256xf32>, vector<256x128xf32>, vector<8x128xf32> -> vector<8x128xf32>
    %441 = vector.broadcast %5 : vector<1x128xf32> to vector<8x128xf32>
    %442 = arith.addf %440, %441 : vector<8x128xf32>
    %443 = vector.extract_strided_slice %1 {offsets = [0, 0], sizes = [1, 128], strides = [1, 1]} : vector<4x128xf32> to vector<1x128xf32>
    %444 = vector.extract_strided_slice %1 {offsets = [1, 0], sizes = [1, 128], strides = [1, 1]} : vector<4x128xf32> to vector<1x128xf32>
    %445 = vector.extract_strided_slice %1 {offsets = [2, 0], sizes = [1, 128], strides = [1, 1]} : vector<4x128xf32> to vector<1x128xf32>
    %446 = vector.extract_strided_slice %1 {offsets = [3, 0], sizes = [1, 128], strides = [1, 1]} : vector<4x128xf32> to vector<1x128xf32>
    %447 = vector.broadcast %445 : vector<1x128xf32> to vector<8x128xf32>
    %448 = arith.mulf %447, %322 : vector<8x128xf32>
    %449 = vector.broadcast %446 : vector<1x128xf32> to vector<8x128xf32>
    %450 = arith.mulf %449, %338 : vector<8x128xf32>
    %451 = arith.addf %448, %450 : vector<8x128xf32>
    %cst_126 = arith.constant 1.800000e+00 : f32
    %452 = vector.broadcast %cst_126 : f32 to vector<8x128xf32>
    %453 = arith.mulf %452, %451 : vector<8x128xf32>
    %cst_127 = arith.constant 0.00999999977 : f32
    %454 = vector.broadcast %cst_127 : f32 to vector<8x128xf32>
    %455 = arith.addf %454, %453 : vector<8x128xf32>
    %456 = vector.broadcast %443 : vector<1x128xf32> to vector<8x128xf32>
    %457 = arith.mulf %333, %456 : vector<8x128xf32>
    %458 = vector.broadcast %444 : vector<1x128xf32> to vector<8x128xf32>
    %459 = arith.mulf %458, %442 : vector<8x128xf32>
    %460 = arith.addf %457, %459 : vector<8x128xf32>
    %461 = arith.mulf %455, %338 : vector<8x128xf32>
    %462 = arith.subf %460, %461 : vector<8x128xf32>
    %463 = arith.subf %462, %455 : vector<8x128xf32>
    %cst_128 = arith.constant 0.000000e+00 : f32
    %464 = vector.broadcast %cst_128 : f32 to vector<8x128xf32>
    %465 = arith.cmpf ogt, %463, %464 : vector<8x128xf32>
    %466 = arith.extui %465 : vector<8x128xi1> to vector<8x128xi32>
    %467 = arith.sitofp %466 : vector<8x128xi32> to vector<8x128xf32>
    %c0_129 = arith.constant 0 : index
    %c0_130 = arith.constant 0 : index
    %468 = vector.load %arg5[%c0_129, %c0_130] : memref<128x128xf32, #tpu.memory_space<vmem>>, vector<128x128xf32>
    %cst_131 = arith.constant dense<0.000000e+00> : vector<8x128xf32>
    %469 = tpu.matmul %467, %468, %cst_131 {dimension_numbers = #tpu.dot_dimension_numbers<[1], [0], [0], [1], [0, 0, 1, 1], [], []>} : vector<8x128xf32>, vector<128x128xf32>, vector<8x128xf32> -> vector<8x128xf32>
    %470 = vector.broadcast %6 : vector<1x128xf32> to vector<8x128xf32>
    %471 = arith.addf %469, %470 : vector<8x128xf32>
    %472 = vector.extract_strided_slice %2 {offsets = [0, 0], sizes = [1, 128], strides = [1, 1]} : vector<4x128xf32> to vector<1x128xf32>
    %473 = vector.extract_strided_slice %2 {offsets = [1, 0], sizes = [1, 128], strides = [1, 1]} : vector<4x128xf32> to vector<1x128xf32>
    %474 = vector.extract_strided_slice %2 {offsets = [2, 0], sizes = [1, 128], strides = [1, 1]} : vector<4x128xf32> to vector<1x128xf32>
    %475 = vector.extract_strided_slice %2 {offsets = [3, 0], sizes = [1, 128], strides = [1, 1]} : vector<4x128xf32> to vector<1x128xf32>
    %476 = vector.broadcast %474 : vector<1x128xf32> to vector<8x128xf32>
    %477 = arith.mulf %476, %351 : vector<8x128xf32>
    %478 = vector.broadcast %475 : vector<1x128xf32> to vector<8x128xf32>
    %479 = arith.mulf %478, %367 : vector<8x128xf32>
    %480 = arith.addf %477, %479 : vector<8x128xf32>
    %cst_132 = arith.constant 1.800000e+00 : f32
    %481 = vector.broadcast %cst_132 : f32 to vector<8x128xf32>
    %482 = arith.mulf %481, %480 : vector<8x128xf32>
    %cst_133 = arith.constant 0.00999999977 : f32
    %483 = vector.broadcast %cst_133 : f32 to vector<8x128xf32>
    %484 = arith.addf %483, %482 : vector<8x128xf32>
    %485 = vector.broadcast %472 : vector<1x128xf32> to vector<8x128xf32>
    %486 = arith.mulf %362, %485 : vector<8x128xf32>
    %487 = vector.broadcast %473 : vector<1x128xf32> to vector<8x128xf32>
    %488 = arith.mulf %487, %471 : vector<8x128xf32>
    %489 = arith.addf %486, %488 : vector<8x128xf32>
    %490 = arith.mulf %484, %367 : vector<8x128xf32>
    %491 = arith.subf %489, %490 : vector<8x128xf32>
    %492 = arith.subf %491, %484 : vector<8x128xf32>
    %cst_134 = arith.constant 0.000000e+00 : f32
    %493 = vector.broadcast %cst_134 : f32 to vector<8x128xf32>
    %494 = arith.cmpf ogt, %492, %493 : vector<8x128xf32>
    %495 = arith.extui %494 : vector<8x128xi1> to vector<8x128xi32>
    %496 = arith.sitofp %495 : vector<8x128xi32> to vector<8x128xf32>
    %c0_135 = arith.constant 0 : index
    %c0_136 = arith.constant 0 : index
    %497 = vector.load %arg7[%c0_135, %c0_136] : memref<128x128xf32, #tpu.memory_space<vmem>>, vector<128x128xf32>
    %cst_137 = arith.constant dense<0.000000e+00> : vector<8x128xf32>
    %498 = tpu.matmul %496, %497, %cst_137 {dimension_numbers = #tpu.dot_dimension_numbers<[1], [0], [0], [1], [0, 0, 1, 1], [], []>} : vector<8x128xf32>, vector<128x128xf32>, vector<8x128xf32> -> vector<8x128xf32>
    %499 = vector.broadcast %7 : vector<1x128xf32> to vector<8x128xf32>
    %500 = arith.addf %498, %499 : vector<8x128xf32>
    %501 = vector.extract_strided_slice %3 {offsets = [0, 0], sizes = [1, 128], strides = [1, 1]} : vector<4x128xf32> to vector<1x128xf32>
    %502 = vector.extract_strided_slice %3 {offsets = [1, 0], sizes = [1, 128], strides = [1, 1]} : vector<4x128xf32> to vector<1x128xf32>
    %503 = vector.extract_strided_slice %3 {offsets = [2, 0], sizes = [1, 128], strides = [1, 1]} : vector<4x128xf32> to vector<1x128xf32>
    %504 = vector.extract_strided_slice %3 {offsets = [3, 0], sizes = [1, 128], strides = [1, 1]} : vector<4x128xf32> to vector<1x128xf32>
    %505 = vector.broadcast %503 : vector<1x128xf32> to vector<8x128xf32>
    %506 = arith.mulf %505, %380 : vector<8x128xf32>
    %507 = vector.broadcast %504 : vector<1x128xf32> to vector<8x128xf32>
    %508 = arith.mulf %507, %396 : vector<8x128xf32>
    %509 = arith.addf %506, %508 : vector<8x128xf32>
    %cst_138 = arith.constant 1.800000e+00 : f32
    %510 = vector.broadcast %cst_138 : f32 to vector<8x128xf32>
    %511 = arith.mulf %510, %509 : vector<8x128xf32>
    %cst_139 = arith.constant 0.00999999977 : f32
    %512 = vector.broadcast %cst_139 : f32 to vector<8x128xf32>
    %513 = arith.addf %512, %511 : vector<8x128xf32>
    %514 = vector.broadcast %501 : vector<1x128xf32> to vector<8x128xf32>
    %515 = arith.mulf %391, %514 : vector<8x128xf32>
    %516 = vector.broadcast %502 : vector<1x128xf32> to vector<8x128xf32>
    %517 = arith.mulf %516, %500 : vector<8x128xf32>
    %518 = arith.addf %515, %517 : vector<8x128xf32>
    %519 = arith.mulf %513, %396 : vector<8x128xf32>
    %520 = arith.subf %518, %519 : vector<8x128xf32>
    %521 = arith.subf %520, %513 : vector<8x128xf32>
    %cst_140 = arith.constant 0.000000e+00 : f32
    %522 = vector.broadcast %cst_140 : f32 to vector<8x128xf32>
    %523 = arith.cmpf ogt, %521, %522 : vector<8x128xf32>
    %524 = arith.extui %523 : vector<8x128xi1> to vector<8x128xi32>
    %525 = arith.sitofp %524 : vector<8x128xi32> to vector<8x128xf32>
    %c0_i32_141 = arith.constant 0 : i32
    %526 = arith.cmpi sgt, %c3_i32, %c0_i32_141 : i32
    %527 = arith.addf %399, %525 : vector<8x128xf32>
    %528 = arith.select %526, %527, %399 : vector<8x128xf32>
    %529 = tpu.concatenate %437, %467, %496, %525 in 1 : vector<8x128xf32>, vector<8x128xf32>, vector<8x128xf32>, vector<8x128xf32> -> vector<8x512xf32>
    %530 = arith.index_cast %c3_i32 : i32 to index
    %c0_142 = arith.constant 0 : index
    %c0_143 = arith.constant 0 : index
    %531 = vector.load %arg18[%530, %c0_142, %c0_143] : memref<8x8x512xf32, #tpu.memory_space<vmem>>, vector<1x8x512xf32>
    %532 = vector.shape_cast %531 : vector<1x8x512xf32> to vector<8x512xf32>
    %533 = vector.shape_cast %529 : vector<8x512xf32> to vector<1x8x512xf32>
    tpu.vector_store %arg18[%530, %c0_142, %c0_143], %533 {strides = array<i32>} : memref<8x8x512xf32, #tpu.memory_space<vmem>>, vector<1x8x512xf32>,
    %c4_i32 = arith.constant 4 : i32
    %534 = arith.index_cast %c4_i32 : i32 to index
    %c0_144 = arith.constant 0 : index
    %c0_145 = arith.constant 0 : index
    %535 = vector.load %arg0[%534, %c0_144, %c0_145] : memref<8x8x128xf32, #tpu.memory_space<vmem>>, vector<1x8x128xf32>
    %536 = vector.shape_cast %535 : vector<1x8x128xf32> to vector<8x128xf32>
    %537 = tpu.concatenate %536, %437 in 1 : vector<8x128xf32>, vector<8x128xf32> -> vector<8x256xf32>
    %c0_146 = arith.constant 0 : index
    %c0_147 = arith.constant 0 : index
    %538 = vector.load %arg1[%c0_146, %c0_147] : memref<256x128xf32, #tpu.memory_space<vmem>>, vector<256x128xf32>
    %cst_148 = arith.constant dense<0.000000e+00> : vector<8x128xf32>
    %539 = tpu.matmul %537, %538, %cst_148 {dimension_numbers = #tpu.dot_dimension_numbers<[1], [0], [0], [1], [0, 0, 1, 1], [], []>} : vector<8x256xf32>, vector<256x128xf32>, vector<8x128xf32> -> vector<8x128xf32>
    %540 = vector.broadcast %4 : vector<1x128xf32> to vector<8x128xf32>
    %541 = arith.addf %539, %540 : vector<8x128xf32>
    %542 = vector.extract_strided_slice %0 {offsets = [0, 0], sizes = [1, 128], strides = [1, 1]} : vector<4x128xf32> to vector<1x128xf32>
    %543 = vector.extract_strided_slice %0 {offsets = [1, 0], sizes = [1, 128], strides = [1, 1]} : vector<4x128xf32> to vector<1x128xf32>
    %544 = vector.extract_strided_slice %0 {offsets = [2, 0], sizes = [1, 128], strides = [1, 1]} : vector<4x128xf32> to vector<1x128xf32>
    %545 = vector.extract_strided_slice %0 {offsets = [3, 0], sizes = [1, 128], strides = [1, 1]} : vector<4x128xf32> to vector<1x128xf32>
    %546 = vector.broadcast %544 : vector<1x128xf32> to vector<8x128xf32>
    %547 = arith.mulf %546, %421 : vector<8x128xf32>
    %548 = vector.broadcast %545 : vector<1x128xf32> to vector<8x128xf32>
    %549 = arith.mulf %548, %437 : vector<8x128xf32>
    %550 = arith.addf %547, %549 : vector<8x128xf32>
    %cst_149 = arith.constant 1.800000e+00 : f32
    %551 = vector.broadcast %cst_149 : f32 to vector<8x128xf32>
    %552 = arith.mulf %551, %550 : vector<8x128xf32>
    %cst_150 = arith.constant 0.00999999977 : f32
    %553 = vector.broadcast %cst_150 : f32 to vector<8x128xf32>
    %554 = arith.addf %553, %552 : vector<8x128xf32>
    %555 = vector.broadcast %542 : vector<1x128xf32> to vector<8x128xf32>
    %556 = arith.mulf %432, %555 : vector<8x128xf32>
    %557 = vector.broadcast %543 : vector<1x128xf32> to vector<8x128xf32>
    %558 = arith.mulf %557, %541 : vector<8x128xf32>
    %559 = arith.addf %556, %558 : vector<8x128xf32>
    %560 = arith.mulf %554, %437 : vector<8x128xf32>
    %561 = arith.subf %559, %560 : vector<8x128xf32>
    %562 = arith.subf %561, %554 : vector<8x128xf32>
    %cst_151 = arith.constant 0.000000e+00 : f32
    %563 = vector.broadcast %cst_151 : f32 to vector<8x128xf32>
    %564 = arith.cmpf ogt, %562, %563 : vector<8x128xf32>
    %565 = arith.extui %564 : vector<8x128xi1> to vector<8x128xi32>
    %566 = arith.sitofp %565 : vector<8x128xi32> to vector<8x128xf32>
    %567 = tpu.concatenate %566, %467 in 1 : vector<8x128xf32>, vector<8x128xf32> -> vector<8x256xf32>
    %c0_152 = arith.constant 0 : index
    %c0_153 = arith.constant 0 : index
    %568 = vector.load %arg3[%c0_152, %c0_153] : memref<256x128xf32, #tpu.memory_space<vmem>>, vector<256x128xf32>
    %cst_154 = arith.constant dense<0.000000e+00> : vector<8x128xf32>
    %569 = tpu.matmul %567, %568, %cst_154 {dimension_numbers = #tpu.dot_dimension_numbers<[1], [0], [0], [1], [0, 0, 1, 1], [], []>} : vector<8x256xf32>, vector<256x128xf32>, vector<8x128xf32> -> vector<8x128xf32>
    %570 = vector.broadcast %5 : vector<1x128xf32> to vector<8x128xf32>
    %571 = arith.addf %569, %570 : vector<8x128xf32>
    %572 = vector.extract_strided_slice %1 {offsets = [0, 0], sizes = [1, 128], strides = [1, 1]} : vector<4x128xf32> to vector<1x128xf32>
    %573 = vector.extract_strided_slice %1 {offsets = [1, 0], sizes = [1, 128], strides = [1, 1]} : vector<4x128xf32> to vector<1x128xf32>
    %574 = vector.extract_strided_slice %1 {offsets = [2, 0], sizes = [1, 128], strides = [1, 1]} : vector<4x128xf32> to vector<1x128xf32>
    %575 = vector.extract_strided_slice %1 {offsets = [3, 0], sizes = [1, 128], strides = [1, 1]} : vector<4x128xf32> to vector<1x128xf32>
    %576 = vector.broadcast %574 : vector<1x128xf32> to vector<8x128xf32>
    %577 = arith.mulf %576, %451 : vector<8x128xf32>
    %578 = vector.broadcast %575 : vector<1x128xf32> to vector<8x128xf32>
    %579 = arith.mulf %578, %467 : vector<8x128xf32>
    %580 = arith.addf %577, %579 : vector<8x128xf32>
    %cst_155 = arith.constant 1.800000e+00 : f32
    %581 = vector.broadcast %cst_155 : f32 to vector<8x128xf32>
    %582 = arith.mulf %581, %580 : vector<8x128xf32>
    %cst_156 = arith.constant 0.00999999977 : f32
    %583 = vector.broadcast %cst_156 : f32 to vector<8x128xf32>
    %584 = arith.addf %583, %582 : vector<8x128xf32>
    %585 = vector.broadcast %572 : vector<1x128xf32> to vector<8x128xf32>
    %586 = arith.mulf %462, %585 : vector<8x128xf32>
    %587 = vector.broadcast %573 : vector<1x128xf32> to vector<8x128xf32>
    %588 = arith.mulf %587, %571 : vector<8x128xf32>
    %589 = arith.addf %586, %588 : vector<8x128xf32>
    %590 = arith.mulf %584, %467 : vector<8x128xf32>
    %591 = arith.subf %589, %590 : vector<8x128xf32>
    %592 = arith.subf %591, %584 : vector<8x128xf32>
    %cst_157 = arith.constant 0.000000e+00 : f32
    %593 = vector.broadcast %cst_157 : f32 to vector<8x128xf32>
    %594 = arith.cmpf ogt, %592, %593 : vector<8x128xf32>
    %595 = arith.extui %594 : vector<8x128xi1> to vector<8x128xi32>
    %596 = arith.sitofp %595 : vector<8x128xi32> to vector<8x128xf32>
    %c0_158 = arith.constant 0 : index
    %c0_159 = arith.constant 0 : index
    %597 = vector.load %arg5[%c0_158, %c0_159] : memref<128x128xf32, #tpu.memory_space<vmem>>, vector<128x128xf32>
    %cst_160 = arith.constant dense<0.000000e+00> : vector<8x128xf32>
    %598 = tpu.matmul %596, %597, %cst_160 {dimension_numbers = #tpu.dot_dimension_numbers<[1], [0], [0], [1], [0, 0, 1, 1], [], []>} : vector<8x128xf32>, vector<128x128xf32>, vector<8x128xf32> -> vector<8x128xf32>
    %599 = vector.broadcast %6 : vector<1x128xf32> to vector<8x128xf32>
    %600 = arith.addf %598, %599 : vector<8x128xf32>
    %601 = vector.extract_strided_slice %2 {offsets = [0, 0], sizes = [1, 128], strides = [1, 1]} : vector<4x128xf32> to vector<1x128xf32>
    %602 = vector.extract_strided_slice %2 {offsets = [1, 0], sizes = [1, 128], strides = [1, 1]} : vector<4x128xf32> to vector<1x128xf32>
    %603 = vector.extract_strided_slice %2 {offsets = [2, 0], sizes = [1, 128], strides = [1, 1]} : vector<4x128xf32> to vector<1x128xf32>
    %604 = vector.extract_strided_slice %2 {offsets = [3, 0], sizes = [1, 128], strides = [1, 1]} : vector<4x128xf32> to vector<1x128xf32>
    %605 = vector.broadcast %603 : vector<1x128xf32> to vector<8x128xf32>
    %606 = arith.mulf %605, %480 : vector<8x128xf32>
    %607 = vector.broadcast %604 : vector<1x128xf32> to vector<8x128xf32>
    %608 = arith.mulf %607, %496 : vector<8x128xf32>
    %609 = arith.addf %606, %608 : vector<8x128xf32>
    %cst_161 = arith.constant 1.800000e+00 : f32
    %610 = vector.broadcast %cst_161 : f32 to vector<8x128xf32>
    %611 = arith.mulf %610, %609 : vector<8x128xf32>
    %cst_162 = arith.constant 0.00999999977 : f32
    %612 = vector.broadcast %cst_162 : f32 to vector<8x128xf32>
    %613 = arith.addf %612, %611 : vector<8x128xf32>
    %614 = vector.broadcast %601 : vector<1x128xf32> to vector<8x128xf32>
    %615 = arith.mulf %491, %614 : vector<8x128xf32>
    %616 = vector.broadcast %602 : vector<1x128xf32> to vector<8x128xf32>
    %617 = arith.mulf %616, %600 : vector<8x128xf32>
    %618 = arith.addf %615, %617 : vector<8x128xf32>
    %619 = arith.mulf %613, %496 : vector<8x128xf32>
    %620 = arith.subf %618, %619 : vector<8x128xf32>
    %621 = arith.subf %620, %613 : vector<8x128xf32>
    %cst_163 = arith.constant 0.000000e+00 : f32
    %622 = vector.broadcast %cst_163 : f32 to vector<8x128xf32>
    %623 = arith.cmpf ogt, %621, %622 : vector<8x128xf32>
    %624 = arith.extui %623 : vector<8x128xi1> to vector<8x128xi32>
    %625 = arith.sitofp %624 : vector<8x128xi32> to vector<8x128xf32>
    %c0_164 = arith.constant 0 : index
    %c0_165 = arith.constant 0 : index
    %626 = vector.load %arg7[%c0_164, %c0_165] : memref<128x128xf32, #tpu.memory_space<vmem>>, vector<128x128xf32>
    %cst_166 = arith.constant dense<0.000000e+00> : vector<8x128xf32>
    %627 = tpu.matmul %625, %626, %cst_166 {dimension_numbers = #tpu.dot_dimension_numbers<[1], [0], [0], [1], [0, 0, 1, 1], [], []>} : vector<8x128xf32>, vector<128x128xf32>, vector<8x128xf32> -> vector<8x128xf32>
    %628 = vector.broadcast %7 : vector<1x128xf32> to vector<8x128xf32>
    %629 = arith.addf %627, %628 : vector<8x128xf32>
    %630 = vector.extract_strided_slice %3 {offsets = [0, 0], sizes = [1, 128], strides = [1, 1]} : vector<4x128xf32> to vector<1x128xf32>
    %631 = vector.extract_strided_slice %3 {offsets = [1, 0], sizes = [1, 128], strides = [1, 1]} : vector<4x128xf32> to vector<1x128xf32>
    %632 = vector.extract_strided_slice %3 {offsets = [2, 0], sizes = [1, 128], strides = [1, 1]} : vector<4x128xf32> to vector<1x128xf32>
    %633 = vector.extract_strided_slice %3 {offsets = [3, 0], sizes = [1, 128], strides = [1, 1]} : vector<4x128xf32> to vector<1x128xf32>
    %634 = vector.broadcast %632 : vector<1x128xf32> to vector<8x128xf32>
    %635 = arith.mulf %634, %509 : vector<8x128xf32>
    %636 = vector.broadcast %633 : vector<1x128xf32> to vector<8x128xf32>
    %637 = arith.mulf %636, %525 : vector<8x128xf32>
    %638 = arith.addf %635, %637 : vector<8x128xf32>
    %cst_167 = arith.constant 1.800000e+00 : f32
    %639 = vector.broadcast %cst_167 : f32 to vector<8x128xf32>
    %640 = arith.mulf %639, %638 : vector<8x128xf32>
    %cst_168 = arith.constant 0.00999999977 : f32
    %641 = vector.broadcast %cst_168 : f32 to vector<8x128xf32>
    %642 = arith.addf %641, %640 : vector<8x128xf32>
    %643 = vector.broadcast %630 : vector<1x128xf32> to vector<8x128xf32>
    %644 = arith.mulf %520, %643 : vector<8x128xf32>
    %645 = vector.broadcast %631 : vector<1x128xf32> to vector<8x128xf32>
    %646 = arith.mulf %645, %629 : vector<8x128xf32>
    %647 = arith.addf %644, %646 : vector<8x128xf32>
    %648 = arith.mulf %642, %525 : vector<8x128xf32>
    %649 = arith.subf %647, %648 : vector<8x128xf32>
    %650 = arith.subf %649, %642 : vector<8x128xf32>
    %cst_169 = arith.constant 0.000000e+00 : f32
    %651 = vector.broadcast %cst_169 : f32 to vector<8x128xf32>
    %652 = arith.cmpf ogt, %650, %651 : vector<8x128xf32>
    %653 = arith.extui %652 : vector<8x128xi1> to vector<8x128xi32>
    %654 = arith.sitofp %653 : vector<8x128xi32> to vector<8x128xf32>
    %c0_i32_170 = arith.constant 0 : i32
    %655 = arith.cmpi sgt, %c4_i32, %c0_i32_170 : i32
    %656 = arith.addf %528, %654 : vector<8x128xf32>
    %657 = arith.select %655, %656, %528 : vector<8x128xf32>
    %658 = tpu.concatenate %566, %596, %625, %654 in 1 : vector<8x128xf32>, vector<8x128xf32>, vector<8x128xf32>, vector<8x128xf32> -> vector<8x512xf32>
    %659 = arith.index_cast %c4_i32 : i32 to index
    %c0_171 = arith.constant 0 : index
    %c0_172 = arith.constant 0 : index
    %660 = vector.load %arg18[%659, %c0_171, %c0_172] : memref<8x8x512xf32, #tpu.memory_space<vmem>>, vector<1x8x512xf32>
    %661 = vector.shape_cast %660 : vector<1x8x512xf32> to vector<8x512xf32>
    %662 = vector.shape_cast %658 : vector<8x512xf32> to vector<1x8x512xf32>
    tpu.vector_store %arg18[%659, %c0_171, %c0_172], %662 {strides = array<i32>} : memref<8x8x512xf32, #tpu.memory_space<vmem>>, vector<1x8x512xf32>,
    %c5_i32 = arith.constant 5 : i32
    %663 = arith.index_cast %c5_i32 : i32 to index
    %c0_173 = arith.constant 0 : index
    %c0_174 = arith.constant 0 : index
    %664 = vector.load %arg0[%663, %c0_173, %c0_174] : memref<8x8x128xf32, #tpu.memory_space<vmem>>, vector<1x8x128xf32>
    %665 = vector.shape_cast %664 : vector<1x8x128xf32> to vector<8x128xf32>
    %666 = tpu.concatenate %665, %566 in 1 : vector<8x128xf32>, vector<8x128xf32> -> vector<8x256xf32>
    %c0_175 = arith.constant 0 : index
    %c0_176 = arith.constant 0 : index
    %667 = vector.load %arg1[%c0_175, %c0_176] : memref<256x128xf32, #tpu.memory_space<vmem>>, vector<256x128xf32>
    %cst_177 = arith.constant dense<0.000000e+00> : vector<8x128xf32>
    %668 = tpu.matmul %666, %667, %cst_177 {dimension_numbers = #tpu.dot_dimension_numbers<[1], [0], [0], [1], [0, 0, 1, 1], [], []>} : vector<8x256xf32>, vector<256x128xf32>, vector<8x128xf32> -> vector<8x128xf32>
    %669 = vector.broadcast %4 : vector<1x128xf32> to vector<8x128xf32>
    %670 = arith.addf %668, %669 : vector<8x128xf32>
    %671 = vector.extract_strided_slice %0 {offsets = [0, 0], sizes = [1, 128], strides = [1, 1]} : vector<4x128xf32> to vector<1x128xf32>
    %672 = vector.extract_strided_slice %0 {offsets = [1, 0], sizes = [1, 128], strides = [1, 1]} : vector<4x128xf32> to vector<1x128xf32>
    %673 = vector.extract_strided_slice %0 {offsets = [2, 0], sizes = [1, 128], strides = [1, 1]} : vector<4x128xf32> to vector<1x128xf32>
    %674 = vector.extract_strided_slice %0 {offsets = [3, 0], sizes = [1, 128], strides = [1, 1]} : vector<4x128xf32> to vector<1x128xf32>
    %675 = vector.broadcast %673 : vector<1x128xf32> to vector<8x128xf32>
    %676 = arith.mulf %675, %550 : vector<8x128xf32>
    %677 = vector.broadcast %674 : vector<1x128xf32> to vector<8x128xf32>
    %678 = arith.mulf %677, %566 : vector<8x128xf32>
    %679 = arith.addf %676, %678 : vector<8x128xf32>
    %cst_178 = arith.constant 1.800000e+00 : f32
    %680 = vector.broadcast %cst_178 : f32 to vector<8x128xf32>
    %681 = arith.mulf %680, %679 : vector<8x128xf32>
    %cst_179 = arith.constant 0.00999999977 : f32
    %682 = vector.broadcast %cst_179 : f32 to vector<8x128xf32>
    %683 = arith.addf %682, %681 : vector<8x128xf32>
    %684 = vector.broadcast %671 : vector<1x128xf32> to vector<8x128xf32>
    %685 = arith.mulf %561, %684 : vector<8x128xf32>
    %686 = vector.broadcast %672 : vector<1x128xf32> to vector<8x128xf32>
    %687 = arith.mulf %686, %670 : vector<8x128xf32>
    %688 = arith.addf %685, %687 : vector<8x128xf32>
    %689 = arith.mulf %683, %566 : vector<8x128xf32>
    %690 = arith.subf %688, %689 : vector<8x128xf32>
    %691 = arith.subf %690, %683 : vector<8x128xf32>
    %cst_180 = arith.constant 0.000000e+00 : f32
    %692 = vector.broadcast %cst_180 : f32 to vector<8x128xf32>
    %693 = arith.cmpf ogt, %691, %692 : vector<8x128xf32>
    %694 = arith.extui %693 : vector<8x128xi1> to vector<8x128xi32>
    %695 = arith.sitofp %694 : vector<8x128xi32> to vector<8x128xf32>
    %696 = tpu.concatenate %695, %596 in 1 : vector<8x128xf32>, vector<8x128xf32> -> vector<8x256xf32>
    %c0_181 = arith.constant 0 : index
    %c0_182 = arith.constant 0 : index
    %697 = vector.load %arg3[%c0_181, %c0_182] : memref<256x128xf32, #tpu.memory_space<vmem>>, vector<256x128xf32>
    %cst_183 = arith.constant dense<0.000000e+00> : vector<8x128xf32>
    %698 = tpu.matmul %696, %697, %cst_183 {dimension_numbers = #tpu.dot_dimension_numbers<[1], [0], [0], [1], [0, 0, 1, 1], [], []>} : vector<8x256xf32>, vector<256x128xf32>, vector<8x128xf32> -> vector<8x128xf32>
    %699 = vector.broadcast %5 : vector<1x128xf32> to vector<8x128xf32>
    %700 = arith.addf %698, %699 : vector<8x128xf32>
    %701 = vector.extract_strided_slice %1 {offsets = [0, 0], sizes = [1, 128], strides = [1, 1]} : vector<4x128xf32> to vector<1x128xf32>
    %702 = vector.extract_strided_slice %1 {offsets = [1, 0], sizes = [1, 128], strides = [1, 1]} : vector<4x128xf32> to vector<1x128xf32>
    %703 = vector.extract_strided_slice %1 {offsets = [2, 0], sizes = [1, 128], strides = [1, 1]} : vector<4x128xf32> to vector<1x128xf32>
    %704 = vector.extract_strided_slice %1 {offsets = [3, 0], sizes = [1, 128], strides = [1, 1]} : vector<4x128xf32> to vector<1x128xf32>
    %705 = vector.broadcast %703 : vector<1x128xf32> to vector<8x128xf32>
    %706 = arith.mulf %705, %580 : vector<8x128xf32>
    %707 = vector.broadcast %704 : vector<1x128xf32> to vector<8x128xf32>
    %708 = arith.mulf %707, %596 : vector<8x128xf32>
    %709 = arith.addf %706, %708 : vector<8x128xf32>
    %cst_184 = arith.constant 1.800000e+00 : f32
    %710 = vector.broadcast %cst_184 : f32 to vector<8x128xf32>
    %711 = arith.mulf %710, %709 : vector<8x128xf32>
    %cst_185 = arith.constant 0.00999999977 : f32
    %712 = vector.broadcast %cst_185 : f32 to vector<8x128xf32>
    %713 = arith.addf %712, %711 : vector<8x128xf32>
    %714 = vector.broadcast %701 : vector<1x128xf32> to vector<8x128xf32>
    %715 = arith.mulf %591, %714 : vector<8x128xf32>
    %716 = vector.broadcast %702 : vector<1x128xf32> to vector<8x128xf32>
    %717 = arith.mulf %716, %700 : vector<8x128xf32>
    %718 = arith.addf %715, %717 : vector<8x128xf32>
    %719 = arith.mulf %713, %596 : vector<8x128xf32>
    %720 = arith.subf %718, %719 : vector<8x128xf32>
    %721 = arith.subf %720, %713 : vector<8x128xf32>
    %cst_186 = arith.constant 0.000000e+00 : f32
    %722 = vector.broadcast %cst_186 : f32 to vector<8x128xf32>
    %723 = arith.cmpf ogt, %721, %722 : vector<8x128xf32>
    %724 = arith.extui %723 : vector<8x128xi1> to vector<8x128xi32>
    %725 = arith.sitofp %724 : vector<8x128xi32> to vector<8x128xf32>
    %c0_187 = arith.constant 0 : index
    %c0_188 = arith.constant 0 : index
    %726 = vector.load %arg5[%c0_187, %c0_188] : memref<128x128xf32, #tpu.memory_space<vmem>>, vector<128x128xf32>
    %cst_189 = arith.constant dense<0.000000e+00> : vector<8x128xf32>
    %727 = tpu.matmul %725, %726, %cst_189 {dimension_numbers = #tpu.dot_dimension_numbers<[1], [0], [0], [1], [0, 0, 1, 1], [], []>} : vector<8x128xf32>, vector<128x128xf32>, vector<8x128xf32> -> vector<8x128xf32>
    %728 = vector.broadcast %6 : vector<1x128xf32> to vector<8x128xf32>
    %729 = arith.addf %727, %728 : vector<8x128xf32>
    %730 = vector.extract_strided_slice %2 {offsets = [0, 0], sizes = [1, 128], strides = [1, 1]} : vector<4x128xf32> to vector<1x128xf32>
    %731 = vector.extract_strided_slice %2 {offsets = [1, 0], sizes = [1, 128], strides = [1, 1]} : vector<4x128xf32> to vector<1x128xf32>
    %732 = vector.extract_strided_slice %2 {offsets = [2, 0], sizes = [1, 128], strides = [1, 1]} : vector<4x128xf32> to vector<1x128xf32>
    %733 = vector.extract_strided_slice %2 {offsets = [3, 0], sizes = [1, 128], strides = [1, 1]} : vector<4x128xf32> to vector<1x128xf32>
    %734 = vector.broadcast %732 : vector<1x128xf32> to vector<8x128xf32>
    %735 = arith.mulf %734, %609 : vector<8x128xf32>
    %736 = vector.broadcast %733 : vector<1x128xf32> to vector<8x128xf32>
    %737 = arith.mulf %736, %625 : vector<8x128xf32>
    %738 = arith.addf %735, %737 : vector<8x128xf32>
    %cst_190 = arith.constant 1.800000e+00 : f32
    %739 = vector.broadcast %cst_190 : f32 to vector<8x128xf32>
    %740 = arith.mulf %739, %738 : vector<8x128xf32>
    %cst_191 = arith.constant 0.00999999977 : f32
    %741 = vector.broadcast %cst_191 : f32 to vector<8x128xf32>
    %742 = arith.addf %741, %740 : vector<8x128xf32>
    %743 = vector.broadcast %730 : vector<1x128xf32> to vector<8x128xf32>
    %744 = arith.mulf %620, %743 : vector<8x128xf32>
    %745 = vector.broadcast %731 : vector<1x128xf32> to vector<8x128xf32>
    %746 = arith.mulf %745, %729 : vector<8x128xf32>
    %747 = arith.addf %744, %746 : vector<8x128xf32>
    %748 = arith.mulf %742, %625 : vector<8x128xf32>
    %749 = arith.subf %747, %748 : vector<8x128xf32>
    %750 = arith.subf %749, %742 : vector<8x128xf32>
    %cst_192 = arith.constant 0.000000e+00 : f32
    %751 = vector.broadcast %cst_192 : f32 to vector<8x128xf32>
    %752 = arith.cmpf ogt, %750, %751 : vector<8x128xf32>
    %753 = arith.extui %752 : vector<8x128xi1> to vector<8x128xi32>
    %754 = arith.sitofp %753 : vector<8x128xi32> to vector<8x128xf32>
    %c0_193 = arith.constant 0 : index
    %c0_194 = arith.constant 0 : index
    %755 = vector.load %arg7[%c0_193, %c0_194] : memref<128x128xf32, #tpu.memory_space<vmem>>, vector<128x128xf32>
    %cst_195 = arith.constant dense<0.000000e+00> : vector<8x128xf32>
    %756 = tpu.matmul %754, %755, %cst_195 {dimension_numbers = #tpu.dot_dimension_numbers<[1], [0], [0], [1], [0, 0, 1, 1], [], []>} : vector<8x128xf32>, vector<128x128xf32>, vector<8x128xf32> -> vector<8x128xf32>
    %757 = vector.broadcast %7 : vector<1x128xf32> to vector<8x128xf32>
    %758 = arith.addf %756, %757 : vector<8x128xf32>
    %759 = vector.extract_strided_slice %3 {offsets = [0, 0], sizes = [1, 128], strides = [1, 1]} : vector<4x128xf32> to vector<1x128xf32>
    %760 = vector.extract_strided_slice %3 {offsets = [1, 0], sizes = [1, 128], strides = [1, 1]} : vector<4x128xf32> to vector<1x128xf32>
    %761 = vector.extract_strided_slice %3 {offsets = [2, 0], sizes = [1, 128], strides = [1, 1]} : vector<4x128xf32> to vector<1x128xf32>
    %762 = vector.extract_strided_slice %3 {offsets = [3, 0], sizes = [1, 128], strides = [1, 1]} : vector<4x128xf32> to vector<1x128xf32>
    %763 = vector.broadcast %761 : vector<1x128xf32> to vector<8x128xf32>
    %764 = arith.mulf %763, %638 : vector<8x128xf32>
    %765 = vector.broadcast %762 : vector<1x128xf32> to vector<8x128xf32>
    %766 = arith.mulf %765, %654 : vector<8x128xf32>
    %767 = arith.addf %764, %766 : vector<8x128xf32>
    %cst_196 = arith.constant 1.800000e+00 : f32
    %768 = vector.broadcast %cst_196 : f32 to vector<8x128xf32>
    %769 = arith.mulf %768, %767 : vector<8x128xf32>
    %cst_197 = arith.constant 0.00999999977 : f32
    %770 = vector.broadcast %cst_197 : f32 to vector<8x128xf32>
    %771 = arith.addf %770, %769 : vector<8x128xf32>
    %772 = vector.broadcast %759 : vector<1x128xf32> to vector<8x128xf32>
    %773 = arith.mulf %649, %772 : vector<8x128xf32>
    %774 = vector.broadcast %760 : vector<1x128xf32> to vector<8x128xf32>
    %775 = arith.mulf %774, %758 : vector<8x128xf32>
    %776 = arith.addf %773, %775 : vector<8x128xf32>
    %777 = arith.mulf %771, %654 : vector<8x128xf32>
    %778 = arith.subf %776, %777 : vector<8x128xf32>
    %779 = arith.subf %778, %771 : vector<8x128xf32>
    %cst_198 = arith.constant 0.000000e+00 : f32
    %780 = vector.broadcast %cst_198 : f32 to vector<8x128xf32>
    %781 = arith.cmpf ogt, %779, %780 : vector<8x128xf32>
    %782 = arith.extui %781 : vector<8x128xi1> to vector<8x128xi32>
    %783 = arith.sitofp %782 : vector<8x128xi32> to vector<8x128xf32>
    %c0_i32_199 = arith.constant 0 : i32
    %784 = arith.cmpi sgt, %c5_i32, %c0_i32_199 : i32
    %785 = arith.addf %657, %783 : vector<8x128xf32>
    %786 = arith.select %784, %785, %657 : vector<8x128xf32>
    %787 = tpu.concatenate %695, %725, %754, %783 in 1 : vector<8x128xf32>, vector<8x128xf32>, vector<8x128xf32>, vector<8x128xf32> -> vector<8x512xf32>
    %788 = arith.index_cast %c5_i32 : i32 to index
    %c0_200 = arith.constant 0 : index
    %c0_201 = arith.constant 0 : index
    %789 = vector.load %arg18[%788, %c0_200, %c0_201] : memref<8x8x512xf32, #tpu.memory_space<vmem>>, vector<1x8x512xf32>
    %790 = vector.shape_cast %789 : vector<1x8x512xf32> to vector<8x512xf32>
    %791 = vector.shape_cast %787 : vector<8x512xf32> to vector<1x8x512xf32>
    tpu.vector_store %arg18[%788, %c0_200, %c0_201], %791 {strides = array<i32>} : memref<8x8x512xf32, #tpu.memory_space<vmem>>, vector<1x8x512xf32>,
    %c6_i32 = arith.constant 6 : i32
    %792 = arith.index_cast %c6_i32 : i32 to index
    %c0_202 = arith.constant 0 : index
    %c0_203 = arith.constant 0 : index
    %793 = vector.load %arg0[%792, %c0_202, %c0_203] : memref<8x8x128xf32, #tpu.memory_space<vmem>>, vector<1x8x128xf32>
    %794 = vector.shape_cast %793 : vector<1x8x128xf32> to vector<8x128xf32>
    %795 = tpu.concatenate %794, %695 in 1 : vector<8x128xf32>, vector<8x128xf32> -> vector<8x256xf32>
    %c0_204 = arith.constant 0 : index
    %c0_205 = arith.constant 0 : index
    %796 = vector.load %arg1[%c0_204, %c0_205] : memref<256x128xf32, #tpu.memory_space<vmem>>, vector<256x128xf32>
    %cst_206 = arith.constant dense<0.000000e+00> : vector<8x128xf32>
    %797 = tpu.matmul %795, %796, %cst_206 {dimension_numbers = #tpu.dot_dimension_numbers<[1], [0], [0], [1], [0, 0, 1, 1], [], []>} : vector<8x256xf32>, vector<256x128xf32>, vector<8x128xf32> -> vector<8x128xf32>
    %798 = vector.broadcast %4 : vector<1x128xf32> to vector<8x128xf32>
    %799 = arith.addf %797, %798 : vector<8x128xf32>
    %800 = vector.extract_strided_slice %0 {offsets = [0, 0], sizes = [1, 128], strides = [1, 1]} : vector<4x128xf32> to vector<1x128xf32>
    %801 = vector.extract_strided_slice %0 {offsets = [1, 0], sizes = [1, 128], strides = [1, 1]} : vector<4x128xf32> to vector<1x128xf32>
    %802 = vector.extract_strided_slice %0 {offsets = [2, 0], sizes = [1, 128], strides = [1, 1]} : vector<4x128xf32> to vector<1x128xf32>
    %803 = vector.extract_strided_slice %0 {offsets = [3, 0], sizes = [1, 128], strides = [1, 1]} : vector<4x128xf32> to vector<1x128xf32>
    %804 = vector.broadcast %802 : vector<1x128xf32> to vector<8x128xf32>
    %805 = arith.mulf %804, %679 : vector<8x128xf32>
    %806 = vector.broadcast %803 : vector<1x128xf32> to vector<8x128xf32>
    %807 = arith.mulf %806, %695 : vector<8x128xf32>
    %808 = arith.addf %805, %807 : vector<8x128xf32>
    %cst_207 = arith.constant 1.800000e+00 : f32
    %809 = vector.broadcast %cst_207 : f32 to vector<8x128xf32>
    %810 = arith.mulf %809, %808 : vector<8x128xf32>
    %cst_208 = arith.constant 0.00999999977 : f32
    %811 = vector.broadcast %cst_208 : f32 to vector<8x128xf32>
    %812 = arith.addf %811, %810 : vector<8x128xf32>
    %813 = vector.broadcast %800 : vector<1x128xf32> to vector<8x128xf32>
    %814 = arith.mulf %690, %813 : vector<8x128xf32>
    %815 = vector.broadcast %801 : vector<1x128xf32> to vector<8x128xf32>
    %816 = arith.mulf %815, %799 : vector<8x128xf32>
    %817 = arith.addf %814, %816 : vector<8x128xf32>
    %818 = arith.mulf %812, %695 : vector<8x128xf32>
    %819 = arith.subf %817, %818 : vector<8x128xf32>
    %820 = arith.subf %819, %812 : vector<8x128xf32>
    %cst_209 = arith.constant 0.000000e+00 : f32
    %821 = vector.broadcast %cst_209 : f32 to vector<8x128xf32>
    %822 = arith.cmpf ogt, %820, %821 : vector<8x128xf32>
    %823 = arith.extui %822 : vector<8x128xi1> to vector<8x128xi32>
    %824 = arith.sitofp %823 : vector<8x128xi32> to vector<8x128xf32>
    %825 = tpu.concatenate %824, %725 in 1 : vector<8x128xf32>, vector<8x128xf32> -> vector<8x256xf32>
    %c0_210 = arith.constant 0 : index
    %c0_211 = arith.constant 0 : index
    %826 = vector.load %arg3[%c0_210, %c0_211] : memref<256x128xf32, #tpu.memory_space<vmem>>, vector<256x128xf32>
    %cst_212 = arith.constant dense<0.000000e+00> : vector<8x128xf32>
    %827 = tpu.matmul %825, %826, %cst_212 {dimension_numbers = #tpu.dot_dimension_numbers<[1], [0], [0], [1], [0, 0, 1, 1], [], []>} : vector<8x256xf32>, vector<256x128xf32>, vector<8x128xf32> -> vector<8x128xf32>
    %828 = vector.broadcast %5 : vector<1x128xf32> to vector<8x128xf32>
    %829 = arith.addf %827, %828 : vector<8x128xf32>
    %830 = vector.extract_strided_slice %1 {offsets = [0, 0], sizes = [1, 128], strides = [1, 1]} : vector<4x128xf32> to vector<1x128xf32>
    %831 = vector.extract_strided_slice %1 {offsets = [1, 0], sizes = [1, 128], strides = [1, 1]} : vector<4x128xf32> to vector<1x128xf32>
    %832 = vector.extract_strided_slice %1 {offsets = [2, 0], sizes = [1, 128], strides = [1, 1]} : vector<4x128xf32> to vector<1x128xf32>
    %833 = vector.extract_strided_slice %1 {offsets = [3, 0], sizes = [1, 128], strides = [1, 1]} : vector<4x128xf32> to vector<1x128xf32>
    %834 = vector.broadcast %832 : vector<1x128xf32> to vector<8x128xf32>
    %835 = arith.mulf %834, %709 : vector<8x128xf32>
    %836 = vector.broadcast %833 : vector<1x128xf32> to vector<8x128xf32>
    %837 = arith.mulf %836, %725 : vector<8x128xf32>
    %838 = arith.addf %835, %837 : vector<8x128xf32>
    %cst_213 = arith.constant 1.800000e+00 : f32
    %839 = vector.broadcast %cst_213 : f32 to vector<8x128xf32>
    %840 = arith.mulf %839, %838 : vector<8x128xf32>
    %cst_214 = arith.constant 0.00999999977 : f32
    %841 = vector.broadcast %cst_214 : f32 to vector<8x128xf32>
    %842 = arith.addf %841, %840 : vector<8x128xf32>
    %843 = vector.broadcast %830 : vector<1x128xf32> to vector<8x128xf32>
    %844 = arith.mulf %720, %843 : vector<8x128xf32>
    %845 = vector.broadcast %831 : vector<1x128xf32> to vector<8x128xf32>
    %846 = arith.mulf %845, %829 : vector<8x128xf32>
    %847 = arith.addf %844, %846 : vector<8x128xf32>
    %848 = arith.mulf %842, %725 : vector<8x128xf32>
    %849 = arith.subf %847, %848 : vector<8x128xf32>
    %850 = arith.subf %849, %842 : vector<8x128xf32>
    %cst_215 = arith.constant 0.000000e+00 : f32
    %851 = vector.broadcast %cst_215 : f32 to vector<8x128xf32>
    %852 = arith.cmpf ogt, %850, %851 : vector<8x128xf32>
    %853 = arith.extui %852 : vector<8x128xi1> to vector<8x128xi32>
    %854 = arith.sitofp %853 : vector<8x128xi32> to vector<8x128xf32>
    %c0_216 = arith.constant 0 : index
    %c0_217 = arith.constant 0 : index
    %855 = vector.load %arg5[%c0_216, %c0_217] : memref<128x128xf32, #tpu.memory_space<vmem>>, vector<128x128xf32>
    %cst_218 = arith.constant dense<0.000000e+00> : vector<8x128xf32>
    %856 = tpu.matmul %854, %855, %cst_218 {dimension_numbers = #tpu.dot_dimension_numbers<[1], [0], [0], [1], [0, 0, 1, 1], [], []>} : vector<8x128xf32>, vector<128x128xf32>, vector<8x128xf32> -> vector<8x128xf32>
    %857 = vector.broadcast %6 : vector<1x128xf32> to vector<8x128xf32>
    %858 = arith.addf %856, %857 : vector<8x128xf32>
    %859 = vector.extract_strided_slice %2 {offsets = [0, 0], sizes = [1, 128], strides = [1, 1]} : vector<4x128xf32> to vector<1x128xf32>
    %860 = vector.extract_strided_slice %2 {offsets = [1, 0], sizes = [1, 128], strides = [1, 1]} : vector<4x128xf32> to vector<1x128xf32>
    %861 = vector.extract_strided_slice %2 {offsets = [2, 0], sizes = [1, 128], strides = [1, 1]} : vector<4x128xf32> to vector<1x128xf32>
    %862 = vector.extract_strided_slice %2 {offsets = [3, 0], sizes = [1, 128], strides = [1, 1]} : vector<4x128xf32> to vector<1x128xf32>
    %863 = vector.broadcast %861 : vector<1x128xf32> to vector<8x128xf32>
    %864 = arith.mulf %863, %738 : vector<8x128xf32>
    %865 = vector.broadcast %862 : vector<1x128xf32> to vector<8x128xf32>
    %866 = arith.mulf %865, %754 : vector<8x128xf32>
    %867 = arith.addf %864, %866 : vector<8x128xf32>
    %cst_219 = arith.constant 1.800000e+00 : f32
    %868 = vector.broadcast %cst_219 : f32 to vector<8x128xf32>
    %869 = arith.mulf %868, %867 : vector<8x128xf32>
    %cst_220 = arith.constant 0.00999999977 : f32
    %870 = vector.broadcast %cst_220 : f32 to vector<8x128xf32>
    %871 = arith.addf %870, %869 : vector<8x128xf32>
    %872 = vector.broadcast %859 : vector<1x128xf32> to vector<8x128xf32>
    %873 = arith.mulf %749, %872 : vector<8x128xf32>
    %874 = vector.broadcast %860 : vector<1x128xf32> to vector<8x128xf32>
    %875 = arith.mulf %874, %858 : vector<8x128xf32>
    %876 = arith.addf %873, %875 : vector<8x128xf32>
    %877 = arith.mulf %871, %754 : vector<8x128xf32>
    %878 = arith.subf %876, %877 : vector<8x128xf32>
    %879 = arith.subf %878, %871 : vector<8x128xf32>
    %cst_221 = arith.constant 0.000000e+00 : f32
    %880 = vector.broadcast %cst_221 : f32 to vector<8x128xf32>
    %881 = arith.cmpf ogt, %879, %880 : vector<8x128xf32>
    %882 = arith.extui %881 : vector<8x128xi1> to vector<8x128xi32>
    %883 = arith.sitofp %882 : vector<8x128xi32> to vector<8x128xf32>
    %c0_222 = arith.constant 0 : index
    %c0_223 = arith.constant 0 : index
    %884 = vector.load %arg7[%c0_222, %c0_223] : memref<128x128xf32, #tpu.memory_space<vmem>>, vector<128x128xf32>
    %cst_224 = arith.constant dense<0.000000e+00> : vector<8x128xf32>
    %885 = tpu.matmul %883, %884, %cst_224 {dimension_numbers = #tpu.dot_dimension_numbers<[1], [0], [0], [1], [0, 0, 1, 1], [], []>} : vector<8x128xf32>, vector<128x128xf32>, vector<8x128xf32> -> vector<8x128xf32>
    %886 = vector.broadcast %7 : vector<1x128xf32> to vector<8x128xf32>
    %887 = arith.addf %885, %886 : vector<8x128xf32>
    %888 = vector.extract_strided_slice %3 {offsets = [0, 0], sizes = [1, 128], strides = [1, 1]} : vector<4x128xf32> to vector<1x128xf32>
    %889 = vector.extract_strided_slice %3 {offsets = [1, 0], sizes = [1, 128], strides = [1, 1]} : vector<4x128xf32> to vector<1x128xf32>
    %890 = vector.extract_strided_slice %3 {offsets = [2, 0], sizes = [1, 128], strides = [1, 1]} : vector<4x128xf32> to vector<1x128xf32>
    %891 = vector.extract_strided_slice %3 {offsets = [3, 0], sizes = [1, 128], strides = [1, 1]} : vector<4x128xf32> to vector<1x128xf32>
    %892 = vector.broadcast %890 : vector<1x128xf32> to vector<8x128xf32>
    %893 = arith.mulf %892, %767 : vector<8x128xf32>
    %894 = vector.broadcast %891 : vector<1x128xf32> to vector<8x128xf32>
    %895 = arith.mulf %894, %783 : vector<8x128xf32>
    %896 = arith.addf %893, %895 : vector<8x128xf32>
    %cst_225 = arith.constant 1.800000e+00 : f32
    %897 = vector.broadcast %cst_225 : f32 to vector<8x128xf32>
    %898 = arith.mulf %897, %896 : vector<8x128xf32>
    %cst_226 = arith.constant 0.00999999977 : f32
    %899 = vector.broadcast %cst_226 : f32 to vector<8x128xf32>
    %900 = arith.addf %899, %898 : vector<8x128xf32>
    %901 = vector.broadcast %888 : vector<1x128xf32> to vector<8x128xf32>
    %902 = arith.mulf %778, %901 : vector<8x128xf32>
    %903 = vector.broadcast %889 : vector<1x128xf32> to vector<8x128xf32>
    %904 = arith.mulf %903, %887 : vector<8x128xf32>
    %905 = arith.addf %902, %904 : vector<8x128xf32>
    %906 = arith.mulf %900, %783 : vector<8x128xf32>
    %907 = arith.subf %905, %906 : vector<8x128xf32>
    %908 = arith.subf %907, %900 : vector<8x128xf32>
    %cst_227 = arith.constant 0.000000e+00 : f32
    %909 = vector.broadcast %cst_227 : f32 to vector<8x128xf32>
    %910 = arith.cmpf ogt, %908, %909 : vector<8x128xf32>
    %911 = arith.extui %910 : vector<8x128xi1> to vector<8x128xi32>
    %912 = arith.sitofp %911 : vector<8x128xi32> to vector<8x128xf32>
    %c0_i32_228 = arith.constant 0 : i32
    %913 = arith.cmpi sgt, %c6_i32, %c0_i32_228 : i32
    %914 = arith.addf %786, %912 : vector<8x128xf32>
    %915 = arith.select %913, %914, %786 : vector<8x128xf32>
    %916 = tpu.concatenate %824, %854, %883, %912 in 1 : vector<8x128xf32>, vector<8x128xf32>, vector<8x128xf32>, vector<8x128xf32> -> vector<8x512xf32>
    %917 = arith.index_cast %c6_i32 : i32 to index
    %c0_229 = arith.constant 0 : index
    %c0_230 = arith.constant 0 : index
    %918 = vector.load %arg18[%917, %c0_229, %c0_230] : memref<8x8x512xf32, #tpu.memory_space<vmem>>, vector<1x8x512xf32>
    %919 = vector.shape_cast %918 : vector<1x8x512xf32> to vector<8x512xf32>
    %920 = vector.shape_cast %916 : vector<8x512xf32> to vector<1x8x512xf32>
    tpu.vector_store %arg18[%917, %c0_229, %c0_230], %920 {strides = array<i32>} : memref<8x8x512xf32, #tpu.memory_space<vmem>>, vector<1x8x512xf32>,
    %c7_i32 = arith.constant 7 : i32
    %921 = arith.index_cast %c7_i32 : i32 to index
    %c0_231 = arith.constant 0 : index
    %c0_232 = arith.constant 0 : index
    %922 = vector.load %arg0[%921, %c0_231, %c0_232] : memref<8x8x128xf32, #tpu.memory_space<vmem>>, vector<1x8x128xf32>
    %923 = vector.shape_cast %922 : vector<1x8x128xf32> to vector<8x128xf32>
    %924 = tpu.concatenate %923, %824 in 1 : vector<8x128xf32>, vector<8x128xf32> -> vector<8x256xf32>
    %c0_233 = arith.constant 0 : index
    %c0_234 = arith.constant 0 : index
    %925 = vector.load %arg1[%c0_233, %c0_234] : memref<256x128xf32, #tpu.memory_space<vmem>>, vector<256x128xf32>
    %cst_235 = arith.constant dense<0.000000e+00> : vector<8x128xf32>
    %926 = tpu.matmul %924, %925, %cst_235 {dimension_numbers = #tpu.dot_dimension_numbers<[1], [0], [0], [1], [0, 0, 1, 1], [], []>} : vector<8x256xf32>, vector<256x128xf32>, vector<8x128xf32> -> vector<8x128xf32>
    %927 = vector.broadcast %4 : vector<1x128xf32> to vector<8x128xf32>
    %928 = arith.addf %926, %927 : vector<8x128xf32>
    %929 = vector.extract_strided_slice %0 {offsets = [0, 0], sizes = [1, 128], strides = [1, 1]} : vector<4x128xf32> to vector<1x128xf32>
    %930 = vector.extract_strided_slice %0 {offsets = [1, 0], sizes = [1, 128], strides = [1, 1]} : vector<4x128xf32> to vector<1x128xf32>
    %931 = vector.extract_strided_slice %0 {offsets = [2, 0], sizes = [1, 128], strides = [1, 1]} : vector<4x128xf32> to vector<1x128xf32>
    %932 = vector.extract_strided_slice %0 {offsets = [3, 0], sizes = [1, 128], strides = [1, 1]} : vector<4x128xf32> to vector<1x128xf32>
    %933 = vector.broadcast %931 : vector<1x128xf32> to vector<8x128xf32>
    %934 = arith.mulf %933, %808 : vector<8x128xf32>
    %935 = vector.broadcast %932 : vector<1x128xf32> to vector<8x128xf32>
    %936 = arith.mulf %935, %824 : vector<8x128xf32>
    %937 = arith.addf %934, %936 : vector<8x128xf32>
    %cst_236 = arith.constant 1.800000e+00 : f32
    %938 = vector.broadcast %cst_236 : f32 to vector<8x128xf32>
    %939 = arith.mulf %938, %937 : vector<8x128xf32>
    %cst_237 = arith.constant 0.00999999977 : f32
    %940 = vector.broadcast %cst_237 : f32 to vector<8x128xf32>
    %941 = arith.addf %940, %939 : vector<8x128xf32>
    %942 = vector.broadcast %929 : vector<1x128xf32> to vector<8x128xf32>
    %943 = arith.mulf %819, %942 : vector<8x128xf32>
    %944 = vector.broadcast %930 : vector<1x128xf32> to vector<8x128xf32>
    %945 = arith.mulf %944, %928 : vector<8x128xf32>
    %946 = arith.addf %943, %945 : vector<8x128xf32>
    %947 = arith.mulf %941, %824 : vector<8x128xf32>
    %948 = arith.subf %946, %947 : vector<8x128xf32>
    %949 = arith.subf %948, %941 : vector<8x128xf32>
    %cst_238 = arith.constant 0.000000e+00 : f32
    %950 = vector.broadcast %cst_238 : f32 to vector<8x128xf32>
    %951 = arith.cmpf ogt, %949, %950 : vector<8x128xf32>
    %952 = arith.extui %951 : vector<8x128xi1> to vector<8x128xi32>
    %953 = arith.sitofp %952 : vector<8x128xi32> to vector<8x128xf32>
    %954 = tpu.concatenate %953, %854 in 1 : vector<8x128xf32>, vector<8x128xf32> -> vector<8x256xf32>
    %c0_239 = arith.constant 0 : index
    %c0_240 = arith.constant 0 : index
    %955 = vector.load %arg3[%c0_239, %c0_240] : memref<256x128xf32, #tpu.memory_space<vmem>>, vector<256x128xf32>
    %cst_241 = arith.constant dense<0.000000e+00> : vector<8x128xf32>
    %956 = tpu.matmul %954, %955, %cst_241 {dimension_numbers = #tpu.dot_dimension_numbers<[1], [0], [0], [1], [0, 0, 1, 1], [], []>} : vector<8x256xf32>, vector<256x128xf32>, vector<8x128xf32> -> vector<8x128xf32>
    %957 = vector.broadcast %5 : vector<1x128xf32> to vector<8x128xf32>
    %958 = arith.addf %956, %957 : vector<8x128xf32>
    %959 = vector.extract_strided_slice %1 {offsets = [0, 0], sizes = [1, 128], strides = [1, 1]} : vector<4x128xf32> to vector<1x128xf32>
    %960 = vector.extract_strided_slice %1 {offsets = [1, 0], sizes = [1, 128], strides = [1, 1]} : vector<4x128xf32> to vector<1x128xf32>
    %961 = vector.extract_strided_slice %1 {offsets = [2, 0], sizes = [1, 128], strides = [1, 1]} : vector<4x128xf32> to vector<1x128xf32>
    %962 = vector.extract_strided_slice %1 {offsets = [3, 0], sizes = [1, 128], strides = [1, 1]} : vector<4x128xf32> to vector<1x128xf32>
    %963 = vector.broadcast %961 : vector<1x128xf32> to vector<8x128xf32>
    %964 = arith.mulf %963, %838 : vector<8x128xf32>
    %965 = vector.broadcast %962 : vector<1x128xf32> to vector<8x128xf32>
    %966 = arith.mulf %965, %854 : vector<8x128xf32>
    %967 = arith.addf %964, %966 : vector<8x128xf32>
    %cst_242 = arith.constant 1.800000e+00 : f32
    %968 = vector.broadcast %cst_242 : f32 to vector<8x128xf32>
    %969 = arith.mulf %968, %967 : vector<8x128xf32>
    %cst_243 = arith.constant 0.00999999977 : f32
    %970 = vector.broadcast %cst_243 : f32 to vector<8x128xf32>
    %971 = arith.addf %970, %969 : vector<8x128xf32>
    %972 = vector.broadcast %959 : vector<1x128xf32> to vector<8x128xf32>
    %973 = arith.mulf %849, %972 : vector<8x128xf32>
    %974 = vector.broadcast %960 : vector<1x128xf32> to vector<8x128xf32>
    %975 = arith.mulf %974, %958 : vector<8x128xf32>
    %976 = arith.addf %973, %975 : vector<8x128xf32>
    %977 = arith.mulf %971, %854 : vector<8x128xf32>
    %978 = arith.subf %976, %977 : vector<8x128xf32>
    %979 = arith.subf %978, %971 : vector<8x128xf32>
    %cst_244 = arith.constant 0.000000e+00 : f32
    %980 = vector.broadcast %cst_244 : f32 to vector<8x128xf32>
    %981 = arith.cmpf ogt, %979, %980 : vector<8x128xf32>
    %982 = arith.extui %981 : vector<8x128xi1> to vector<8x128xi32>
    %983 = arith.sitofp %982 : vector<8x128xi32> to vector<8x128xf32>
    %c0_245 = arith.constant 0 : index
    %c0_246 = arith.constant 0 : index
    %984 = vector.load %arg5[%c0_245, %c0_246] : memref<128x128xf32, #tpu.memory_space<vmem>>, vector<128x128xf32>
    %cst_247 = arith.constant dense<0.000000e+00> : vector<8x128xf32>
    %985 = tpu.matmul %983, %984, %cst_247 {dimension_numbers = #tpu.dot_dimension_numbers<[1], [0], [0], [1], [0, 0, 1, 1], [], []>} : vector<8x128xf32>, vector<128x128xf32>, vector<8x128xf32> -> vector<8x128xf32>
    %986 = vector.broadcast %6 : vector<1x128xf32> to vector<8x128xf32>
    %987 = arith.addf %985, %986 : vector<8x128xf32>
    %988 = vector.extract_strided_slice %2 {offsets = [0, 0], sizes = [1, 128], strides = [1, 1]} : vector<4x128xf32> to vector<1x128xf32>
    %989 = vector.extract_strided_slice %2 {offsets = [1, 0], sizes = [1, 128], strides = [1, 1]} : vector<4x128xf32> to vector<1x128xf32>
    %990 = vector.extract_strided_slice %2 {offsets = [2, 0], sizes = [1, 128], strides = [1, 1]} : vector<4x128xf32> to vector<1x128xf32>
    %991 = vector.extract_strided_slice %2 {offsets = [3, 0], sizes = [1, 128], strides = [1, 1]} : vector<4x128xf32> to vector<1x128xf32>
    %992 = vector.broadcast %990 : vector<1x128xf32> to vector<8x128xf32>
    %993 = arith.mulf %992, %867 : vector<8x128xf32>
    %994 = vector.broadcast %991 : vector<1x128xf32> to vector<8x128xf32>
    %995 = arith.mulf %994, %883 : vector<8x128xf32>
    %996 = arith.addf %993, %995 : vector<8x128xf32>
    %cst_248 = arith.constant 1.800000e+00 : f32
    %997 = vector.broadcast %cst_248 : f32 to vector<8x128xf32>
    %998 = arith.mulf %997, %996 : vector<8x128xf32>
    %cst_249 = arith.constant 0.00999999977 : f32
    %999 = vector.broadcast %cst_249 : f32 to vector<8x128xf32>
    %1000 = arith.addf %999, %998 : vector<8x128xf32>
    %1001 = vector.broadcast %988 : vector<1x128xf32> to vector<8x128xf32>
    %1002 = arith.mulf %878, %1001 : vector<8x128xf32>
    %1003 = vector.broadcast %989 : vector<1x128xf32> to vector<8x128xf32>
    %1004 = arith.mulf %1003, %987 : vector<8x128xf32>
    %1005 = arith.addf %1002, %1004 : vector<8x128xf32>
    %1006 = arith.mulf %1000, %883 : vector<8x128xf32>
    %1007 = arith.subf %1005, %1006 : vector<8x128xf32>
    %1008 = arith.subf %1007, %1000 : vector<8x128xf32>
    %cst_250 = arith.constant 0.000000e+00 : f32
    %1009 = vector.broadcast %cst_250 : f32 to vector<8x128xf32>
    %1010 = arith.cmpf ogt, %1008, %1009 : vector<8x128xf32>
    %1011 = arith.extui %1010 : vector<8x128xi1> to vector<8x128xi32>
    %1012 = arith.sitofp %1011 : vector<8x128xi32> to vector<8x128xf32>
    %c0_251 = arith.constant 0 : index
    %c0_252 = arith.constant 0 : index
    %1013 = vector.load %arg7[%c0_251, %c0_252] : memref<128x128xf32, #tpu.memory_space<vmem>>, vector<128x128xf32>
    %cst_253 = arith.constant dense<0.000000e+00> : vector<8x128xf32>
    %1014 = tpu.matmul %1012, %1013, %cst_253 {dimension_numbers = #tpu.dot_dimension_numbers<[1], [0], [0], [1], [0, 0, 1, 1], [], []>} : vector<8x128xf32>, vector<128x128xf32>, vector<8x128xf32> -> vector<8x128xf32>
    %1015 = vector.broadcast %7 : vector<1x128xf32> to vector<8x128xf32>
    %1016 = arith.addf %1014, %1015 : vector<8x128xf32>
    %1017 = vector.extract_strided_slice %3 {offsets = [0, 0], sizes = [1, 128], strides = [1, 1]} : vector<4x128xf32> to vector<1x128xf32>
    %1018 = vector.extract_strided_slice %3 {offsets = [1, 0], sizes = [1, 128], strides = [1, 1]} : vector<4x128xf32> to vector<1x128xf32>
    %1019 = vector.extract_strided_slice %3 {offsets = [2, 0], sizes = [1, 128], strides = [1, 1]} : vector<4x128xf32> to vector<1x128xf32>
    %1020 = vector.extract_strided_slice %3 {offsets = [3, 0], sizes = [1, 128], strides = [1, 1]} : vector<4x128xf32> to vector<1x128xf32>
    %1021 = vector.broadcast %1019 : vector<1x128xf32> to vector<8x128xf32>
    %1022 = arith.mulf %1021, %896 : vector<8x128xf32>
    %1023 = vector.broadcast %1020 : vector<1x128xf32> to vector<8x128xf32>
    %1024 = arith.mulf %1023, %912 : vector<8x128xf32>
    %1025 = arith.addf %1022, %1024 : vector<8x128xf32>
    %cst_254 = arith.constant 1.800000e+00 : f32
    %1026 = vector.broadcast %cst_254 : f32 to vector<8x128xf32>
    %1027 = arith.mulf %1026, %1025 : vector<8x128xf32>
    %cst_255 = arith.constant 0.00999999977 : f32
    %1028 = vector.broadcast %cst_255 : f32 to vector<8x128xf32>
    %1029 = arith.addf %1028, %1027 : vector<8x128xf32>
    %1030 = vector.broadcast %1017 : vector<1x128xf32> to vector<8x128xf32>
    %1031 = arith.mulf %907, %1030 : vector<8x128xf32>
    %1032 = vector.broadcast %1018 : vector<1x128xf32> to vector<8x128xf32>
    %1033 = arith.mulf %1032, %1016 : vector<8x128xf32>
    %1034 = arith.addf %1031, %1033 : vector<8x128xf32>
    %1035 = arith.mulf %1029, %912 : vector<8x128xf32>
    %1036 = arith.subf %1034, %1035 : vector<8x128xf32>
    %1037 = arith.subf %1036, %1029 : vector<8x128xf32>
    %cst_256 = arith.constant 0.000000e+00 : f32
    %1038 = vector.broadcast %cst_256 : f32 to vector<8x128xf32>
    %1039 = arith.cmpf ogt, %1037, %1038 : vector<8x128xf32>
    %1040 = arith.extui %1039 : vector<8x128xi1> to vector<8x128xi32>
    %1041 = arith.sitofp %1040 : vector<8x128xi32> to vector<8x128xf32>
    %c0_i32_257 = arith.constant 0 : i32
    %1042 = arith.cmpi sgt, %c7_i32, %c0_i32_257 : i32
    %1043 = arith.addf %915, %1041 : vector<8x128xf32>
    %1044 = arith.select %1042, %1043, %915 : vector<8x128xf32>
    %1045 = tpu.concatenate %953, %983, %1012, %1041 in 1 : vector<8x128xf32>, vector<8x128xf32>, vector<8x128xf32>, vector<8x128xf32> -> vector<8x512xf32>
    %1046 = arith.index_cast %c7_i32 : i32 to index
    %c0_258 = arith.constant 0 : index
    %c0_259 = arith.constant 0 : index
    %1047 = vector.load %arg18[%1046, %c0_258, %c0_259] : memref<8x8x512xf32, #tpu.memory_space<vmem>>, vector<1x8x512xf32>
    %1048 = vector.shape_cast %1047 : vector<1x8x512xf32> to vector<8x512xf32>
    %1049 = vector.shape_cast %1045 : vector<8x512xf32> to vector<1x8x512xf32>
    tpu.vector_store %arg18[%1046, %c0_258, %c0_259], %1049 {strides = array<i32>} : memref<8x8x512xf32, #tpu.memory_space<vmem>>, vector<1x8x512xf32>,
    %c8_i32 = arith.constant 8 : i32
    %c0_260 = arith.constant 0 : index
    %c0_261 = arith.constant 0 : index
    %1050 = vector.load %arg17[%c0_260, %c0_261] : memref<8x128xf32, #tpu.memory_space<vmem>>, vector<8x128xf32>
    tpu.vector_store %arg17[%c0_260, %c0_261], %1044 {strides = array<i32>} : memref<8x128xf32, #tpu.memory_space<vmem>>, vector<8x128xf32>,
    return
  }
}

</mosaic_0001>

<llo_original>
// kernel: tpu_custom_call.1
$region0: #{tpu_custom_call.1}
  #allocation0 [shape = 'u32[]', space=smem, size = 0x4, offset = 0x4, fixed_abs, tag = 'smem constant byte address 0x4 - core index']
  #allocation1 [shape = 'u32[144,128]{1,0:T(1,128)}', space=vmem, size = 0x12000, scoped, tag = 'internal scratch']
  %s0 = inlined_call_operand.hbm [shape: f32[8,8,128], index: 0, kind: input, shape index: {}]
  %s1 = inlined_call_operand.hbm [shape: f32[256,128], index: 1, kind: input, shape index: {}]
  %s2 = inlined_call_operand.vmem [shape: f32[1,128], index: 2, kind: input, shape index: {}]
  %s3 = inlined_call_operand.hbm [shape: f32[256,128], index: 3, kind: input, shape index: {}]
  %s4 = inlined_call_operand.hbm [shape: f32[1,128], index: 4, kind: input, shape index: {}]
  %s5 = inlined_call_operand.hbm [shape: f32[128,128], index: 5, kind: input, shape index: {}]
  %s6 = inlined_call_operand.hbm [shape: f32[1,128], index: 6, kind: input, shape index: {}]
  %s7 = inlined_call_operand.hbm [shape: f32[128,128], index: 7, kind: input, shape index: {}]
  %s8 = inlined_call_operand.hbm [shape: f32[1,128], index: 8, kind: input, shape index: {}]
  %s9 = inlined_call_operand.hbm [shape: f32[4,128], index: 9, kind: input, shape index: {}]
  %s10 = inlined_call_operand.vmem [shape: f32[4,128], index: 10, kind: input, shape index: {}]
  %s11 = inlined_call_operand.vmem [shape: f32[4,128], index: 11, kind: input, shape index: {}]
  %s12 = inlined_call_operand.vmem [shape: f32[4,128], index: 12, kind: input, shape index: {}]
  %s13 = inlined_call_operand.vmem [shape: f32[8,128], index: 13, kind: input, shape index: {}]
  %s14 = inlined_call_operand.vmem [shape: f32[8,128], index: 14, kind: input, shape index: {}]
  %s15 = inlined_call_operand.vmem [shape: f32[8,128], index: 15, kind: input, shape index: {}]
  %s16 = inlined_call_operand.vmem [shape: f32[8,128], index: 16, kind: input, shape index: {}]
  %s17 = inlined_call_operand.hbm [shape: f32[8,128], index: 17, kind: output, shape index: {0}]
  %s18 = inlined_call_operand.hbm [shape: f32[8,8,512], index: 18, kind: output, shape index: {1}]
  %19 = xla_tuple %s17, %s18
  %s20 = sld [smem:[#allocation0]]
  $region122: #{tpu_custom_call.1} parent=0
    _
  %s22 = ssub.s32 1, %s20
  %s23 = scalar_select 0, %s22, %s20
  $region1: #{tpu_custom_call.1} parent=0
    #allocation2 [shape = 'u8[32768]{0}', space=vmem, size = 0x8000, scoped, tag = 'input window, operand 0, single buffered']
    #allocation3 [shape = 's32[1]{0}', space=sflag, size = 0x4, scoped, tag = 'scoped memory for tpu_custom_call.1']
    #allocation4 [shape = 's32[1]{0}', space=sflag, size = 0x4, scoped, tag = 'scoped memory for tpu_custom_call.1']
    #allocation5 [shape = 'u8[131072]{0}', space=vmem, size = 0x20000, scoped, tag = 'input window, operand 1, single buffered']
    #allocation6 [shape = 's32[1]{0}', space=sflag, size = 0x4, scoped, tag = 'scoped memory for tpu_custom_call.1']
    #allocation7 [shape = 'u8[131072]{0}', space=vmem, size = 0x20000, scoped, tag = 'input window, operand 3, single buffered']
    #allocation8 [shape = 'u8[512]{0}', space=vmem, size = 0x400, scoped, tag = 'input window, operand 4, single buffered']
    #allocation9 [shape = 's32[1]{0}', space=sflag, size = 0x4, scoped, tag = 'scoped memory for tpu_custom_call.1']
    #allocation10 [shape = 'u8[65536]{0}', space=vmem, size = 0x10000, scoped, tag = 'input window, operand 5, single buffered']
    #allocation11 [shape = 'u8[512]{0}', space=vmem, size = 0x400, scoped, tag = 'input window, operand 6, single buffered']
    #allocation12 [shape = 's32[1]{0}', space=sflag, size = 0x4, scoped, tag = 'scoped memory for tpu_custom_call.1']
    #allocation13 [shape = 'u8[65536]{0}', space=vmem, size = 0x10000, scoped, tag = 'input window, operand 7, single buffered']
    #allocation14 [shape = 'u8[512]{0}', space=vmem, size = 0x400, scoped, tag = 'input window, operand 8, single buffered']
    #allocation15 [shape = 's32[1]{0}', space=sflag, size = 0x4, scoped, tag = 'scoped memory for tpu_custom_call.1']
    #allocation16 [shape = 'u8[2048]{0}', space=vmem, size = 0x800, scoped, tag = 'input window, operand 9, single buffered']
    #allocation17 [shape = 'u8[4096]{0}', space=vmem, size = 0x1000, scoped, tag = 'output window, operand 0, single buffered']
    #allocation18 [shape = 'u8[131072]{0}', space=vmem, size = 0x20000, scoped, tag = 'output window, operand 1, single buffered']
    #allocation19 [shape = 's32[1]{0}', space=sflag, size = 0x4, scoped, tag = 'scoped memory for tpu_custom_call.1']
    %24 = vsyncpa [#allocation3], 0
    %25 = vsyncpa [#allocation6], 0
    %26 = vsyncpa [#allocation9], 0
    %27 = vsyncpa [#allocation12], 0
    %28 = vsyncpa [#allocation15], 0
    %29 = vsyncpa [#allocation4], 0
    %30 = vsyncpa [#allocation19], 0
    // Predicated region
    $region2: #{tpu_custom_call.1} parent=1 // pred_check
      _
    $region3: #{tpu_custom_call.1} parent=1 // pred_check_branch
      %32 = sbr.rel (0) target = $region5
    $region4: #{tpu_custom_call.1} parent=1 // pred_region
      %s34 = ssub.s32 1024, 1024
      %35 = vsyncadd [#allocation3], %s34
      %s36 = sshll.u32 [#allocation2], 4
      %s37 = int_to_ptr.vmem [resolvable:$true] %s36
      %42 = dma.hbm_to_vmem [thread:$0]  %s0, 1024, %s37, [#allocation3], 128, 128, 8
    $region5: #{tpu_custom_call.1} parent=1 // pred_fallthru
      _
    // Predicated region
    $region6: #{tpu_custom_call.1} parent=1 // pred_check
      _
    $region7: #{tpu_custom_call.1} parent=1 // pred_check_branch
      %44 = sbr.rel (0) target = $region9
    $region8: #{tpu_custom_call.1} parent=1 // pred_region
      %s46 = ssub.s32 4096, 4096
      %47 = vsyncadd [#allocation6], %s46
      %s48 = sshll.u32 [#allocation5], 4
      %s49 = int_to_ptr.vmem [resolvable:$true] %s48
      %54 = dma.hbm_to_vmem [thread:$0]  %s1, 4096, %s49, [#allocation6], 128, 128, 8
    $region9: #{tpu_custom_call.1} parent=1 // pred_fallthru
      _
    // Predicated region
    $region10: #{tpu_custom_call.1} parent=1 // pred_check
      _
    $region11: #{tpu_custom_call.1} parent=1 // pred_check_branch
      %56 = sbr.rel (0) target = $region13
    $region12: #{tpu_custom_call.1} parent=1 // pred_region
      _
    $region13: #{tpu_custom_call.1} parent=1 // pred_fallthru
      _
    // Predicated region
    $region14: #{tpu_custom_call.1} parent=1 // pred_check
      _
    $region15: #{tpu_custom_call.1} parent=1 // pred_check_branch
      %58 = sbr.rel (0) target = $region17
    $region16: #{tpu_custom_call.1} parent=1 // pred_region
      %s60 = ssub.s32 4096, 4096
      %61 = vsyncadd [#allocation6], %s60
      %s62 = sshll.u32 [#allocation7], 4
      %s63 = int_to_ptr.vmem [resolvable:$true] %s62
      %68 = dma.hbm_to_vmem [thread:$0]  %s3, 4096, %s63, [#allocation6], 128, 128, 8
    $region17: #{tpu_custom_call.1} parent=1 // pred_fallthru
      _
    // Predicated region
    $region18: #{tpu_custom_call.1} parent=1 // pred_check
      _
    $region19: #{tpu_custom_call.1} parent=1 // pred_check_branch
      %70 = sbr.rel (0) target = $region21
    $region20: #{tpu_custom_call.1} parent=1 // pred_region
      %s72 = ssub.s32 16, 16
      %73 = vsyncadd [#allocation9], %s72
      %s75 = sshll.u32 [#allocation8], 4
      %s76 = int_to_ptr.vmem [resolvable:$true] %s75
      %78 = dma.hbm_to_vmem [thread:$0]  %s4, 16, %s76, [#allocation9]
    $region21: #{tpu_custom_call.1} parent=1 // pred_fallthru
      _
    // Predicated region
    $region22: #{tpu_custom_call.1} parent=1 // pred_check
      _
    $region23: #{tpu_custom_call.1} parent=1 // pred_check_branch
      %80 = sbr.rel (0) target = $region25
    $region24: #{tpu_custom_call.1} parent=1 // pred_region
      %s82 = ssub.s32 2048, 2048
      %83 = vsyncadd [#allocation9], %s82
      %s84 = sshll.u32 [#allocation10], 4
      %s85 = int_to_ptr.vmem [resolvable:$true] %s84
      %90 = dma.hbm_to_vmem [thread:$0]  %s5, 2048, %s85, [#allocation9], 128, 128, 8
    $region25: #{tpu_custom_call.1} parent=1 // pred_fallthru
      _
    // Predicated region
    $region26: #{tpu_custom_call.1} parent=1 // pred_check
      _
    $region27: #{tpu_custom_call.1} parent=1 // pred_check_branch
      %92 = sbr.rel (0) target = $region29
    $region28: #{tpu_custom_call.1} parent=1 // pred_region
      %s94 = ssub.s32 16, 16
      %95 = vsyncadd [#allocation12], %s94
      %s97 = sshll.u32 [#allocation11], 4
      %s98 = int_to_ptr.vmem [resolvable:$true] %s97
      %100 = dma.hbm_to_vmem [thread:$0]  %s6, 16, %s98, [#allocation12]
    $region29: #{tpu_custom_call.1} parent=1 // pred_fallthru
      _
    // Predicated region
    $region30: #{tpu_custom_call.1} parent=1 // pred_check
      _
    $region31: #{tpu_custom_call.1} parent=1 // pred_check_branch
      %102 = sbr.rel (0) target = $region33
    $region32: #{tpu_custom_call.1} parent=1 // pred_region
      %s104 = ssub.s32 2048, 2048
      %105 = vsyncadd [#allocation12], %s104
      %s106 = sshll.u32 [#allocation13], 4
      %s107 = int_to_ptr.vmem [resolvable:$true] %s106
      %112 = dma.hbm_to_vmem [thread:$0]  %s7, 2048, %s107, [#allocation12], 128, 128, 8
    $region33: #{tpu_custom_call.1} parent=1 // pred_fallthru
      _
    // Predicated region
    $region34: #{tpu_custom_call.1} parent=1 // pred_check
      _
    $region35: #{tpu_custom_call.1} parent=1 // pred_check_branch
      %114 = sbr.rel (0) target = $region37
    $region36: #{tpu_custom_call.1} parent=1 // pred_region
      %s116 = ssub.s32 16, 16
      %117 = vsyncadd [#allocation15], %s116
      %s119 = sshll.u32 [#allocation14], 4
      %s120 = int_to_ptr.vmem [resolvable:$true] %s119
      %122 = dma.hbm_to_vmem [thread:$0]  %s8, 16, %s120, [#allocation15]
    $region37: #{tpu_custom_call.1} parent=1 // pred_fallthru
      _
    // Predicated region
    $region38: #{tpu_custom_call.1} parent=1 // pred_check
      _
    $region39: #{tpu_custom_call.1} parent=1 // pred_check_branch
      %124 = sbr.rel (0) target = $region41
    $region40: #{tpu_custom_call.1} parent=1 // pred_region
      %s126 = ssub.s32 64, 64
      %127 = vsyncadd [#allocation15], %s126
      %s129 = sshll.u32 [#allocation16], 4
      %s130 = int_to_ptr.vmem [resolvable:$true] %s129
      %132 = dma.hbm_to_vmem [thread:$0]  %s9, 64, %s130, [#allocation15]
    $region41: #{tpu_custom_call.1} parent=1 // pred_fallthru
      _
    // Predicated region
    $region42: #{tpu_custom_call.1} parent=1 // pred_check
      _
    $region43: #{tpu_custom_call.1} parent=1 // pred_check_branch
      %134 = sbr.rel (0) target = $region45
    $region44: #{tpu_custom_call.1} parent=1 // pred_region
      _
    $region45: #{tpu_custom_call.1} parent=1 // pred_fallthru
      _
    // Predicated region
    $region46: #{tpu_custom_call.1} parent=1 // pred_check
      _
    $region47: #{tpu_custom_call.1} parent=1 // pred_check_branch
      %136 = sbr.rel (0) target = $region49
    $region48: #{tpu_custom_call.1} parent=1 // pred_region
      _
    $region49: #{tpu_custom_call.1} parent=1 // pred_fallthru
      _
    // Predicated region
    $region50: #{tpu_custom_call.1} parent=1 // pred_check
      _
    $region51: #{tpu_custom_call.1} parent=1 // pred_check_branch
      %138 = sbr.rel (0) target = $region53
    $region52: #{tpu_custom_call.1} parent=1 // pred_region
      _
    $region53: #{tpu_custom_call.1} parent=1 // pred_fallthru
      _
    // Predicated region
    $region54: #{tpu_custom_call.1} parent=1 // pred_check
      _
    $region55: #{tpu_custom_call.1} parent=1 // pred_check_branch
      %140 = sbr.rel (0) target = $region57
    $region56: #{tpu_custom_call.1} parent=1 // pred_region
      _
    $region57: #{tpu_custom_call.1} parent=1 // pred_fallthru
      _
    // Predicated region
    $region58: #{tpu_custom_call.1} parent=1 // pred_check
      _
    $region59: #{tpu_custom_call.1} parent=1 // pred_check_branch
      %142 = sbr.rel (0) target = $region61
    $region60: #{tpu_custom_call.1} parent=1 // pred_region
      _
    $region61: #{tpu_custom_call.1} parent=1 // pred_fallthru
      _
    // Predicated region
    $region62: #{tpu_custom_call.1} parent=1 // pred_check
      _
    $region63: #{tpu_custom_call.1} parent=1 // pred_check_branch
      %144 = sbr.rel (0) target = $region65
    $region64: #{tpu_custom_call.1} parent=1 // pred_region
      _
    $region65: #{tpu_custom_call.1} parent=1 // pred_fallthru
      _
    // Predicated region
    $region66: #{tpu_custom_call.1} parent=1 // pred_check
      _
    $region67: #{tpu_custom_call.1} parent=1 // pred_check_branch
      %146 = sbr.rel (0) target = $region69
    $region68: #{tpu_custom_call.1} parent=1 // pred_region
      _
    $region69: #{tpu_custom_call.1} parent=1 // pred_fallthru
      _
    // Predicated region
    $region70: #{tpu_custom_call.1} parent=1 // pred_check
      _
    $region71: #{tpu_custom_call.1} parent=1 // pred_check_branch
      %148 = sbr.rel (0) target = $region73
    $region72: #{tpu_custom_call.1} parent=1 // pred_region
      %149 = dma.done [#allocation3], 1024
    $region73: #{tpu_custom_call.1} parent=1 // pred_fallthru
      _
    // Predicated region
    $region74: #{tpu_custom_call.1} parent=1 // pred_check
      _
    $region75: #{tpu_custom_call.1} parent=1 // pred_check_branch
      %151 = sbr.rel (0) target = $region77
    $region76: #{tpu_custom_call.1} parent=1 // pred_region
      %152 = dma.done [#allocation6], 4096
    $region77: #{tpu_custom_call.1} parent=1 // pred_fallthru
      _
    // Predicated region
    $region78: #{tpu_custom_call.1} parent=1 // pred_check
      _
    $region79: #{tpu_custom_call.1} parent=1 // pred_check_branch
      %154 = sbr.rel (0) target = $region81
    $region80: #{tpu_custom_call.1} parent=1 // pred_region
      %155 = dma.done [#allocation6], 4096
    $region81: #{tpu_custom_call.1} parent=1 // pred_fallthru
      _
    // Predicated region
    $region82: #{tpu_custom_call.1} parent=1 // pred_check
      _
    $region83: #{tpu_custom_call.1} parent=1 // pred_check_branch
      %157 = sbr.rel (0) target = $region85
    $region84: #{tpu_custom_call.1} parent=1 // pred_region
      %158 = dma.done [#allocation9], 16
    $region85: #{tpu_custom_call.1} parent=1 // pred_fallthru
      _
    // Predicated region
    $region86: #{tpu_custom_call.1} parent=1 // pred_check
      _
    $region87: #{tpu_custom_call.1} parent=1 // pred_check_branch
      %160 = sbr.rel (0) target = $region89
    $region88: #{tpu_custom_call.1} parent=1 // pred_region
      %161 = dma.done [#allocation9], 2048
    $region89: #{tpu_custom_call.1} parent=1 // pred_fallthru
      _
    // Predicated region
    $region90: #{tpu_custom_call.1} parent=1 // pred_check
      _
    $region91: #{tpu_custom_call.1} parent=1 // pred_check_branch
      %163 = sbr.rel (0) target = $region93
    $region92: #{tpu_custom_call.1} parent=1 // pred_region
      %164 = dma.done [#allocation12], 16
    $region93: #{tpu_custom_call.1} parent=1 // pred_fallthru
      _
    // Predicated region
    $region94: #{tpu_custom_call.1} parent=1 // pred_check
      _
    $region95: #{tpu_custom_call.1} parent=1 // pred_check_branch
      %166 = sbr.rel (0) target = $region97
    $region96: #{tpu_custom_call.1} parent=1 // pred_region
      %167 = dma.done [#allocation12], 2048
    $region97: #{tpu_custom_call.1} parent=1 // pred_fallthru
      _
    // Predicated region
    $region98: #{tpu_custom_call.1} parent=1 // pred_check
      _
    $region99: #{tpu_custom_call.1} parent=1 // pred_check_branch
      %169 = sbr.rel (0) target = $region101
    $region100: #{tpu_custom_call.1} parent=1 // pred_region
      %170 = dma.done [#allocation15], 16
    $region101: #{tpu_custom_call.1} parent=1 // pred_fallthru
      _
    // Predicated region
    $region102: #{tpu_custom_call.1} parent=1 // pred_check
      _
    $region103: #{tpu_custom_call.1} parent=1 // pred_check_branch
      %172 = sbr.rel (0) target = $region105
    $region104: #{tpu_custom_call.1} parent=1 // pred_region
      %173 = dma.done [#allocation15], 64
    $region105: #{tpu_custom_call.1} parent=1 // pred_fallthru
      _
    %v174 = vld [vmem:[#allocation16] sm:$0xf]
    %v175 = vld [vmem:[%s10] sm:$0xf]
    %v176 = vld [vmem:[%s11] sm:$0xf]
    %v177 = vld [vmem:[%s12] sm:$0xf]
    %v178 = vld [vmem:[%s2] sm:$0x1]
    %v179 = vld [vmem:[#allocation8] sm:$0x1]
    %v180 = vld [vmem:[#allocation11] sm:$0x1]
    %v181 = vld [vmem:[#allocation14] sm:$0x1]
    %v182 = vld [vmem:[%s13] sm:$0xff]
    %v183 = vld [vmem:[%s14] sm:$0xff]
    %v184 = vld [vmem:[%s15] sm:$0xff]
    %v185 = vld [vmem:[%s16] sm:$0xff]
    %v186 = vld [vmem:[#allocation2] sm:$0xff]
    %v187 = vld [vmem:[#allocation5] sm:$0xff]
    %v188 = vld [vmem:[#allocation5 + $0x8] sm:$0xff]
    %v189 = vld [vmem:[#allocation5 + $0x10] sm:$0xff]
    %v190 = vld [vmem:[#allocation5 + $0x18] sm:$0xff]
    %v191 = vld [vmem:[#allocation5 + $0x20] sm:$0xff]
    %v192 = vld [vmem:[#allocation5 + $0x28] sm:$0xff]
    %v193 = vld [vmem:[#allocation5 + $0x30] sm:$0xff]
    %v194 = vld [vmem:[#allocation5 + $0x38] sm:$0xff]
    %v195 = vld [vmem:[#allocation5 + $0x40] sm:$0xff]
    %v196 = vld [vmem:[#allocation5 + $0x48] sm:$0xff]
    %v197 = vld [vmem:[#allocation5 + $0x50] sm:$0xff]
    %v198 = vld [vmem:[#allocation5 + $0x58] sm:$0xff]
    %v199 = vld [vmem:[#allocation5 + $0x60] sm:$0xff]
    %v200 = vld [vmem:[#allocation5 + $0x68] sm:$0xff]
    %v201 = vld [vmem:[#allocation5 + $0x70] sm:$0xff]
    %v202 = vld [vmem:[#allocation5 + $0x78] sm:$0xff]
    %v203 = vld [vmem:[#allocation5 + $0x80] sm:$0xff]
    %v204 = vld [vmem:[#allocation5 + $0x88] sm:$0xff]
    %v205 = vld [vmem:[#allocation5 + $0x90] sm:$0xff]
    %v206 = vld [vmem:[#allocation5 + $0x98] sm:$0xff]
    %v207 = vld [vmem:[#allocation5 + $0xa0] sm:$0xff]
    %v208 = vld [vmem:[#allocation5 + $0xa8] sm:$0xff]
    %v209 = vld [vmem:[#allocation5 + $0xb0] sm:$0xff]
    %v210 = vld [vmem:[#allocation5 + $0xb8] sm:$0xff]
    %v211 = vld [vmem:[#allocation5 + $0xc0] sm:$0xff]
    %v212 = vld [vmem:[#allocation5 + $0xc8] sm:$0xff]
    %v213 = vld [vmem:[#allocation5 + $0xd0] sm:$0xff]
    %v214 = vld [vmem:[#allocation5 + $0xd8] sm:$0xff]
    %v215 = vld [vmem:[#allocation5 + $0xe0] sm:$0xff]
    %v216 = vld [vmem:[#allocation5 + $0xe8] sm:$0xff]
    %v217 = vld [vmem:[#allocation5 + $0xf0] sm:$0xff]
    %v218 = vld [vmem:[#allocation5 + $0xf8] sm:$0xff]
    %v220 = vlaneseq
    %v221 = vshrl.u32 %v220, 7
    %v222 = vsub.s32 0, %v221
    %v223 = vrot.slane %v178, %v222
    %225 = vmatprep.subr.mxu0 0.0
    %226 = vmatpush1.msra.mxu0 %v187
    %227 = vmatprep.subr.mxu0 0.0
    %228 = vmatpush1.msra.mxu0 %v188
    %229 = vmatprep.subr.mxu0 0.0
    %230 = vmatpush1.msra.mxu0 %v189
    %231 = vmatprep.subr.mxu0 0.0
    %232 = vmatpush1.msra.mxu0 %v190
    %233 = vmatprep.subr.mxu0 0.0
    %234 = vmatpush1.msra.mxu0 %v191
    %235 = vmatprep.subr.mxu0 0.0
    %236 = vmatpush1.msra.mxu0 %v192
    %237 = vmatprep.subr.mxu0 0.0
    %238 = vmatpush1.msra.mxu0 %v193
    %239 = vmatprep.subr.mxu0 0.0
    %240 = vmatpush1.msra.mxu0 %v194
    %241 = vmatprep.subr.mxu0 0.0
    %242 = vmatpush1.msra.mxu0 %v195
    %243 = vmatprep.subr.mxu0 0.0
    %244 = vmatpush1.msra.mxu0 %v196
    %245 = vmatprep.subr.mxu0 0.0
    %246 = vmatpush1.msra.mxu0 %v197
    %247 = vmatprep.subr.mxu0 0.0
    %248 = vmatpush1.msra.mxu0 %v198
    %249 = vmatprep.subr.mxu0 0.0
    %250 = vmatpush1.msra.mxu0 %v199
    %251 = vmatprep.subr.mxu0 0.0
    %252 = vmatpush1.msra.mxu0 %v200
    %253 = vmatprep.subr.mxu0 0.0
    %254 = vmatpush1.msra.mxu0 %v201
    %255 = vmatprep.subr.mxu0 0.0
    %256 = vmatpush1.msra.mxu0 %v202
    %257 = vmatprep.subr.mxu0 0.0
    %258 = vmatpush1.msra.mxu0 %v203
    %259 = vmatprep.subr.mxu0 0.0
    %260 = vmatpush1.msra.mxu0 %v204
    %261 = vmatprep.subr.mxu0 0.0
    %262 = vmatpush1.msra.mxu0 %v205
    %263 = vmatprep.subr.mxu0 0.0
    %264 = vmatpush1.msra.mxu0 %v206
    %265 = vmatprep.subr.mxu0 0.0
    %266 = vmatpush1.msra.mxu0 %v207
    %267 = vmatprep.subr.mxu0 0.0
    %268 = vmatpush1.msra.mxu0 %v208
    %269 = vmatprep.subr.mxu0 0.0
    %270 = vmatpush1.msra.mxu0 %v209
    %271 = vmatprep.subr.mxu0 0.0
    %272 = vmatpush1.msra.mxu0 %v210
    %273 = vmatprep.subr.mxu0 0.0
    %274 = vmatpush1.msra.mxu0 %v211
    %275 = vmatprep.subr.mxu0 0.0
    %276 = vmatpush1.msra.mxu0 %v212
    %277 = vmatprep.subr.mxu0 0.0
    %278 = vmatpush1.msra.mxu0 %v213
    %279 = vmatprep.subr.mxu0 0.0
    %280 = vmatpush1.msra.mxu0 %v214
    %281 = vmatprep.subr.mxu0 0.0
    %282 = vmatpush1.msra.mxu0 %v215
    %283 = vmatprep.subr.mxu0 0.0
    %284 = vmatpush1.msra.mxu0 %v216
    %285 = vmatprep.subr.mxu0 0.0
    %286 = vmatpush1.msra.mxu0 %v217
    %287 = vmatprep.subr.mxu0 0.0
    %288 = vmatpush1.msra.mxu0 %v218
    %289 = vmatprep.mubr.f32.mxu0 %v182
    %290 = vmatmul.mubr.f32.gmra.mrb[0].mxu0 %v186
    %v291 = vpop.f32.mrb[0].mxu0
    %v292 = vadd.f32 %v223, %v291
    %v293 = vpop.f32.mrb[0].mxu0
    %294 = vdwg.mxu0
    %v295 = vlaneseq
    %v296 = vshrl.u32 %v295, 7
    %v297 = vsub.s32 2, %v296
    %v298 = vrot.slane %v174, %v297
    %v299 = vmul.f32 %v298, 0.01
    %v300 = vlaneseq
    %v301 = vshrl.u32 %v300, 7
    %v302 = vsub.s32 3, %v301
    %v303 = vrot.slane %v174, %v302
    %v304 = vmul.f32 %v303, %v182
    %v305 = vadd.f32 %v299, %v304
    %v306 = vmul.f32 %v305, 1.8
    %v307 = vadd.f32 %v306, 0.01
    %v308 = vlaneseq
    %v309 = vshrl.u32 %v308, 7
    %v310 = vsub.s32 0, %v309
    %v311 = vrot.slane %v174, %v310
    %v312 = vmul.f32 %v182, %v311
    %v313 = vlaneseq
    %v314 = vshrl.u32 %v313, 7
    %v315 = vsub.s32 1, %v314
    %v316 = vrot.slane %v174, %v315
    %v317 = vmul.f32 %v316, %v292
    %v318 = vadd.f32 %v312, %v317
    %v319 = vmul.f32 %v307, %v182
    %v320 = vsub.f32 %v318, %v319
    %v321 = vsub.f32 %v320, %v307
    %vm322 = vcmp.gt.f32.partialorder %v321, 0.0
    %v323 = vsel %vm322, 1, 0
    %v324 = vcvt.s32.f32 %v323
    %v325 = vld [vmem:[#allocation7] sm:$0xff]
    %v326 = vld [vmem:[#allocation7 + $0x8] sm:$0xff]
    %v327 = vld [vmem:[#allocation7 + $0x10] sm:$0xff]
    %v328 = vld [vmem:[#allocation7 + $0x18] sm:$0xff]
    %v329 = vld [vmem:[#allocation7 + $0x20] sm:$0xff]
    %v330 = vld [vmem:[#allocation7 + $0x28] sm:$0xff]
    %v331 = vld [vmem:[#allocation7 + $0x30] sm:$0xff]
    %v332 = vld [vmem:[#allocation7 + $0x38] sm:$0xff]
    %v333 = vld [vmem:[#allocation7 + $0x40] sm:$0xff]
    %v334 = vld [vmem:[#allocation7 + $0x48] sm:$0xff]
    %v335 = vld [vmem:[#allocation7 + $0x50] sm:$0xff]
    %v336 = vld [vmem:[#allocation7 + $0x58] sm:$0xff]
    %v337 = vld [vmem:[#allocation7 + $0x60] sm:$0xff]
    %v338 = vld [vmem:[#allocation7 + $0x68] sm:$0xff]
    %v339 = vld [vmem:[#allocation7 + $0x70] sm:$0xff]
    %v340 = vld [vmem:[#allocation7 + $0x78] sm:$0xff]
    %v341 = vld [vmem:[#allocation7 + $0x80] sm:$0xff]
    %v342 = vld [vmem:[#allocation7 + $0x88] sm:$0xff]
    %v343 = vld [vmem:[#allocation7 + $0x90] sm:$0xff]
    %v344 = vld [vmem:[#allocation7 + $0x98] sm:$0xff]
    %v345 = vld [vmem:[#allocation7 + $0xa0] sm:$0xff]
    %v346 = vld [vmem:[#allocation7 + $0xa8] sm:$0xff]
    %v347 = vld [vmem:[#allocation7 + $0xb0] sm:$0xff]
    %v348 = vld [vmem:[#allocation7 + $0xb8] sm:$0xff]
    %v349 = vld [vmem:[#allocation7 + $0xc0] sm:$0xff]
    %v350 = vld [vmem:[#allocation7 + $0xc8] sm:$0xff]
    %v351 = vld [vmem:[#allocation7 + $0xd0] sm:$0xff]
    %v352 = vld [vmem:[#allocation7 + $0xd8] sm:$0xff]
    %v353 = vld [vmem:[#allocation7 + $0xe0] sm:$0xff]
    %v354 = vld [vmem:[#allocation7 + $0xe8] sm:$0xff]
    %v355 = vld [vmem:[#allocation7 + $0xf0] sm:$0xff]
    %v356 = vld [vmem:[#allocation7 + $0xf8] sm:$0xff]
    %v358 = vlaneseq
    %v359 = vshrl.u32 %v358, 7
    %v360 = vsub.s32 0, %v359
    %v361 = vrot.slane %v179, %v360
    %363 = vmatprep.subr.mxu0 0.0
    %364 = vmatpush1.msra.mxu0 %v325
    %365 = vmatprep.subr.mxu0 0.0
    %366 = vmatpush1.msra.mxu0 %v326
    %367 = vmatprep.subr.mxu0 0.0
    %368 = vmatpush1.msra.mxu0 %v327
    %369 = vmatprep.subr.mxu0 0.0
    %370 = vmatpush1.msra.mxu0 %v328
    %371 = vmatprep.subr.mxu0 0.0
    %372 = vmatpush1.msra.mxu0 %v329
    %373 = vmatprep.subr.mxu0 0.0
    %374 = vmatpush1.msra.mxu0 %v330
    %375 = vmatprep.subr.mxu0 0.0
    %376 = vmatpush1.msra.mxu0 %v331
    %377 = vmatprep.subr.mxu0 0.0
    %378 = vmatpush1.msra.mxu0 %v332
    %379 = vmatprep.subr.mxu0 0.0
    %380 = vmatpush1.msra.mxu0 %v333
    %381 = vmatprep.subr.mxu0 0.0
    %382 = vmatpush1.msra.mxu0 %v334
    %383 = vmatprep.subr.mxu0 0.0
    %384 = vmatpush1.msra.mxu0 %v335
    %385 = vmatprep.subr.mxu0 0.0
    %386 = vmatpush1.msra.mxu0 %v336
    %387 = vmatprep.subr.mxu0 0.0
    %388 = vmatpush1.msra.mxu0 %v337
    %389 = vmatprep.subr.mxu0 0.0
    %390 = vmatpush1.msra.mxu0 %v338
    %391 = vmatprep.subr.mxu0 0.0
    %392 = vmatpush1.msra.mxu0 %v339
    %393 = vmatprep.subr.mxu0 0.0
    %394 = vmatpush1.msra.mxu0 %v340
    %395 = vmatprep.subr.mxu0 0.0
    %396 = vmatpush1.msra.mxu0 %v341
    %397 = vmatprep.subr.mxu0 0.0
    %398 = vmatpush1.msra.mxu0 %v342
    %399 = vmatprep.subr.mxu0 0.0
    %400 = vmatpush1.msra.mxu0 %v343
    %401 = vmatprep.subr.mxu0 0.0
    %402 = vmatpush1.msra.mxu0 %v344
    %403 = vmatprep.subr.mxu0 0.0
    %404 = vmatpush1.msra.mxu0 %v345
    %405 = vmatprep.subr.mxu0 0.0
    %406 = vmatpush1.msra.mxu0 %v346
    %407 = vmatprep.subr.mxu0 0.0
    %408 = vmatpush1.msra.mxu0 %v347
    %409 = vmatprep.subr.mxu0 0.0
    %410 = vmatpush1.msra.mxu0 %v348
    %411 = vmatprep.subr.mxu0 0.0
    %412 = vmatpush1.msra.mxu0 %v349
    %413 = vmatprep.subr.mxu0 0.0
    %414 = vmatpush1.msra.mxu0 %v350
    %415 = vmatprep.subr.mxu0 0.0
    %416 = vmatpush1.msra.mxu0 %v351
    %417 = vmatprep.subr.mxu0 0.0
    %418 = vmatpush1.msra.mxu0 %v352
    %419 = vmatprep.subr.mxu0 0.0
    %420 = vmatpush1.msra.mxu0 %v353
    %421 = vmatprep.subr.mxu0 0.0
    %422 = vmatpush1.msra.mxu0 %v354
    %423 = vmatprep.subr.mxu0 0.0
    %424 = vmatpush1.msra.mxu0 %v355
    %425 = vmatprep.subr.mxu0 0.0
    %426 = vmatpush1.msra.mxu0 %v356
    %427 = vmatprep.mubr.f32.mxu0 %v183
    %428 = vmatmul.mubr.f32.gmra.mrb[0].mxu0 %v324
    %v429 = vpop.f32.mrb[0].mxu0
    %v430 = vadd.f32 %v361, %v429
    %v431 = vpop.f32.mrb[0].mxu0
    %432 = vdwg.mxu0
    %v433 = vlaneseq
    %v434 = vshrl.u32 %v433, 7
    %v435 = vsub.s32 2, %v434
    %v436 = vrot.slane %v175, %v435
    %v437 = vmul.f32 %v436, 0.01
    %v438 = vlaneseq
    %v439 = vshrl.u32 %v438, 7
    %v440 = vsub.s32 3, %v439
    %v441 = vrot.slane %v175, %v440
    %v442 = vmul.f32 %v441, %v183
    %v443 = vadd.f32 %v437, %v442
    %v444 = vmul.f32 %v443, 1.8
    %v445 = vadd.f32 %v444, 0.01
    %v446 = vlaneseq
    %v447 = vshrl.u32 %v446, 7
    %v448 = vsub.s32 0, %v447
    %v449 = vrot.slane %v175, %v448
    %v450 = vmul.f32 %v183, %v449
    %v451 = vlaneseq
    %v452 = vshrl.u32 %v451, 7
    %v453 = vsub.s32 1, %v452
    %v454 = vrot.slane %v175, %v453
    %v455 = vmul.f32 %v454, %v430
    %v456 = vadd.f32 %v450, %v455
    %v457 = vmul.f32 %v445, %v183
    %v458 = vsub.f32 %v456, %v457
    %v459 = vsub.f32 %v458, %v445
    %vm460 = vcmp.gt.f32.partialorder %v459, 0.0
    %v461 = vsel %vm460, 1, 0
    %v462 = vcvt.s32.f32 %v461
    %v463 = vld [vmem:[#allocation10] sm:$0xff]
    %v464 = vld [vmem:[#allocation10 + $0x8] sm:$0xff]
    %v465 = vld [vmem:[#allocation10 + $0x10] sm:$0xff]
    %v466 = vld [vmem:[#allocation10 + $0x18] sm:$0xff]
    %v467 = vld [vmem:[#allocation10 + $0x20] sm:$0xff]
    %v468 = vld [vmem:[#allocation10 + $0x28] sm:$0xff]
    %v469 = vld [vmem:[#allocation10 + $0x30] sm:$0xff]
    %v470 = vld [vmem:[#allocation10 + $0x38] sm:$0xff]
    %v471 = vld [vmem:[#allocation10 + $0x40] sm:$0xff]
    %v472 = vld [vmem:[#allocation10 + $0x48] sm:$0xff]
    %v473 = vld [vmem:[#allocation10 + $0x50] sm:$0xff]
    %v474 = vld [vmem:[#allocation10 + $0x58] sm:$0xff]
    %v475 = vld [vmem:[#allocation10 + $0x60] sm:$0xff]
    %v476 = vld [vmem:[#allocation10 + $0x68] sm:$0xff]
    %v477 = vld [vmem:[#allocation10 + $0x70] sm:$0xff]
    %v478 = vld [vmem:[#allocation10 + $0x78] sm:$0xff]
    %v480 = vlaneseq
    %v481 = vshrl.u32 %v480, 7
    %v482 = vsub.s32 0, %v481
    %v483 = vrot.slane %v180, %v482
    %485 = vmatprep.subr.mxu0 0.0
    %486 = vmatpush1.msra.mxu0 %v463
    %487 = vmatprep.subr.mxu0 0.0
    %488 = vmatpush1.msra.mxu0 %v464
    %489 = vmatprep.subr.mxu0 0.0
    %490 = vmatpush1.msra.mxu0 %v465
    %491 = vmatprep.subr.mxu0 0.0
    %492 = vmatpush1.msra.mxu0 %v466
    %493 = vmatprep.subr.mxu0 0.0
    %494 = vmatpush1.msra.mxu0 %v467
    %495 = vmatprep.subr.mxu0 0.0
    %496 = vmatpush1.msra.mxu0 %v468
    %497 = vmatprep.subr.mxu0 0.0
    %498 = vmatpush1.msra.mxu0 %v469
    %499 = vmatprep.subr.mxu0 0.0
    %500 = vmatpush1.msra.mxu0 %v470
    %501 = vmatprep.subr.mxu0 0.0
    %502 = vmatpush1.msra.mxu0 %v471
    %503 = vmatprep.subr.mxu0 0.0
    %504 = vmatpush1.msra.mxu0 %v472
    %505 = vmatprep.subr.mxu0 0.0
    %506 = vmatpush1.msra.mxu0 %v473
    %507 = vmatprep.subr.mxu0 0.0
    %508 = vmatpush1.msra.mxu0 %v474
    %509 = vmatprep.subr.mxu0 0.0
    %510 = vmatpush1.msra.mxu0 %v475
    %511 = vmatprep.subr.mxu0 0.0
    %512 = vmatpush1.msra.mxu0 %v476
    %513 = vmatprep.subr.mxu0 0.0
    %514 = vmatpush1.msra.mxu0 %v477
    %515 = vmatprep.subr.mxu0 0.0
    %516 = vmatpush1.msra.mxu0 %v478
    %517 = vmatprep.subr.mxu0 0.0
    %518 = vmatpush1.msra.mxu0 0.0
    %519 = vmatprep.subr.mxu0 0.0
    %520 = vmatpush1.msra.mxu0 0.0
    %521 = vmatprep.subr.mxu0 0.0
    %522 = vmatpush1.msra.mxu0 0.0
    %523 = vmatprep.subr.mxu0 0.0
    %524 = vmatpush1.msra.mxu0 0.0
    %525 = vmatprep.subr.mxu0 0.0
    %526 = vmatpush1.msra.mxu0 0.0
    %527 = vmatprep.subr.mxu0 0.0
    %528 = vmatpush1.msra.mxu0 0.0
    %529 = vmatprep.subr.mxu0 0.0
    %530 = vmatpush1.msra.mxu0 0.0
    %531 = vmatprep.subr.mxu0 0.0
    %532 = vmatpush1.msra.mxu0 0.0
    %533 = vmatprep.subr.mxu0 0.0
    %534 = vmatpush1.msra.mxu0 0.0
    %535 = vmatprep.subr.mxu0 0.0
    %536 = vmatpush1.msra.mxu0 0.0
    %537 = vmatprep.subr.mxu0 0.0
    %538 = vmatpush1.msra.mxu0 0.0
    %539 = vmatprep.subr.mxu0 0.0
    %540 = vmatpush1.msra.mxu0 0.0
    %541 = vmatprep.subr.mxu0 0.0
    %542 = vmatpush1.msra.mxu0 0.0
    %543 = vmatprep.subr.mxu0 0.0
    %544 = vmatpush1.msra.mxu0 0.0
    %545 = vmatprep.subr.mxu0 0.0
    %546 = vmatpush1.msra.mxu0 0.0
    %547 = vmatprep.subr.mxu0 0.0
    %548 = vmatpush1.msra.mxu0 0.0
    %549 = vmatprep.mubr.f32.mxu0 0.0
    %550 = vmatmul.mubr.f32.gmra.mrb[0].mxu0 %v462
    %v551 = vpop.f32.mrb[0].mxu0
    %v552 = vadd.f32 %v483, %v551
    %v553 = vpop.f32.mrb[0].mxu0
    %554 = vdwg.mxu0
    %v555 = vlaneseq
    %v556 = vshrl.u32 %v555, 7
    %v557 = vsub.s32 2, %v556
    %v558 = vrot.slane %v176, %v557
    %v559 = vmul.f32 %v558, 0.01
    %v560 = vlaneseq
    %v561 = vshrl.u32 %v560, 7
    %v562 = vsub.s32 3, %v561
    %v563 = vrot.slane %v176, %v562
    %v564 = vmul.f32 %v563, %v184
    %v565 = vadd.f32 %v559, %v564
    %v566 = vmul.f32 %v565, 1.8
    %v567 = vadd.f32 %v566, 0.01
    %v568 = vlaneseq
    %v569 = vshrl.u32 %v568, 7
    %v570 = vsub.s32 0, %v569
    %v571 = vrot.slane %v176, %v570
    %v572 = vmul.f32 %v184, %v571
    %v573 = vlaneseq
    %v574 = vshrl.u32 %v573, 7
    %v575 = vsub.s32 1, %v574
    %v576 = vrot.slane %v176, %v575
    %v577 = vmul.f32 %v576, %v552
    %v578 = vadd.f32 %v572, %v577
    %v579 = vmul.f32 %v567, %v184
    %v580 = vsub.f32 %v578, %v579
    %v581 = vsub.f32 %v580, %v567
    %vm582 = vcmp.gt.f32.partialorder %v581, 0.0
    %v583 = vsel %vm582, 1, 0
    %v584 = vcvt.s32.f32 %v583
    %v585 = vld [vmem:[#allocation13] sm:$0xff]
    %v586 = vld [vmem:[#allocation13 + $0x8] sm:$0xff]
    %v587 = vld [vmem:[#allocation13 + $0x10] sm:$0xff]
    %v588 = vld [vmem:[#allocation13 + $0x18] sm:$0xff]
    %v589 = vld [vmem:[#allocation13 + $0x20] sm:$0xff]
    %v590 = vld [vmem:[#allocation13 + $0x28] sm:$0xff]
    %v591 = vld [vmem:[#allocation13 + $0x30] sm:$0xff]
    %v592 = vld [vmem:[#allocation13 + $0x38] sm:$0xff]
    %v593 = vld [vmem:[#allocation13 + $0x40] sm:$0xff]
    %v594 = vld [vmem:[#allocation13 + $0x48] sm:$0xff]
    %v595 = vld [vmem:[#allocation13 + $0x50] sm:$0xff]
    %v596 = vld [vmem:[#allocation13 + $0x58] sm:$0xff]
    %v597 = vld [vmem:[#allocation13 + $0x60] sm:$0xff]
    %v598 = vld [vmem:[#allocation13 + $0x68] sm:$0xff]
    %v599 = vld [vmem:[#allocation13 + $0x70] sm:$0xff]
    %v600 = vld [vmem:[#allocation13 + $0x78] sm:$0xff]
    %v602 = vlaneseq
    %v603 = vshrl.u32 %v602, 7
    %v604 = vsub.s32 0, %v603
    %v605 = vrot.slane %v181, %v604
    %607 = vmatprep.subr.mxu0 0.0
    %608 = vmatpush1.msra.mxu0 %v585
    %609 = vmatprep.subr.mxu0 0.0
    %610 = vmatpush1.msra.mxu0 %v586
    %611 = vmatprep.subr.mxu0 0.0
    %612 = vmatpush1.msra.mxu0 %v587
    %613 = vmatprep.subr.mxu0 0.0
    %614 = vmatpush1.msra.mxu0 %v588
    %615 = vmatprep.subr.mxu0 0.0
    %616 = vmatpush1.msra.mxu0 %v589
    %617 = vmatprep.subr.mxu0 0.0
    %618 = vmatpush1.msra.mxu0 %v590
    %619 = vmatprep.subr.mxu0 0.0
    %620 = vmatpush1.msra.mxu0 %v591
    %621 = vmatprep.subr.mxu0 0.0
    %622 = vmatpush1.msra.mxu0 %v592
    %623 = vmatprep.subr.mxu0 0.0
    %624 = vmatpush1.msra.mxu0 %v593
    %625 = vmatprep.subr.mxu0 0.0
    %626 = vmatpush1.msra.mxu0 %v594
    %627 = vmatprep.subr.mxu0 0.0
    %628 = vmatpush1.msra.mxu0 %v595
    %629 = vmatprep.subr.mxu0 0.0
    %630 = vmatpush1.msra.mxu0 %v596
    %631 = vmatprep.subr.mxu0 0.0
    %632 = vmatpush1.msra.mxu0 %v597
    %633 = vmatprep.subr.mxu0 0.0
    %634 = vmatpush1.msra.mxu0 %v598
    %635 = vmatprep.subr.mxu0 0.0
    %636 = vmatpush1.msra.mxu0 %v599
    %637 = vmatprep.subr.mxu0 0.0
    %638 = vmatpush1.msra.mxu0 %v600
    %639 = vmatprep.subr.mxu0 0.0
    %640 = vmatpush1.msra.mxu0 0.0
    %641 = vmatprep.subr.mxu0 0.0
    %642 = vmatpush1.msra.mxu0 0.0
    %643 = vmatprep.subr.mxu0 0.0
    %644 = vmatpush1.msra.mxu0 0.0
    %645 = vmatprep.subr.mxu0 0.0
    %646 = vmatpush1.msra.mxu0 0.0
    %647 = vmatprep.subr.mxu0 0.0
    %648 = vmatpush1.msra.mxu0 0.0
    %649 = vmatprep.subr.mxu0 0.0
    %650 = vmatpush1.msra.mxu0 0.0
    %651 = vmatprep.subr.mxu0 0.0
    %652 = vmatpush1.msra.mxu0 0.0
    %653 = vmatprep.subr.mxu0 0.0
    %654 = vmatpush1.msra.mxu0 0.0
    %655 = vmatprep.subr.mxu0 0.0
    %656 = vmatpush1.msra.mxu0 0.0
    %657 = vmatprep.subr.mxu0 0.0
    %658 = vmatpush1.msra.mxu0 0.0
    %659 = vmatprep.subr.mxu0 0.0
    %660 = vmatpush1.msra.mxu0 0.0
    %661 = vmatprep.subr.mxu0 0.0
    %662 = vmatpush1.msra.mxu0 0.0
    %663 = vmatprep.subr.mxu0 0.0
    %664 = vmatpush1.msra.mxu0 0.0
    %665 = vmatprep.subr.mxu0 0.0
    %666 = vmatpush1.msra.mxu0 0.0
    %667 = vmatprep.subr.mxu0 0.0
    %668 = vmatpush1.msra.mxu0 0.0
    %669 = vmatprep.subr.mxu0 0.0
    %670 = vmatpush1.msra.mxu0 0.0
    %671 = vmatprep.mubr.f32.mxu0 0.0
    %672 = vmatmul.mubr.f32.gmra.mrb[0].mxu0 %v584
    %v673 = vpop.f32.mrb[0].mxu0
    %v674 = vadd.f32 %v605, %v673
    %v675 = vpop.f32.mrb[0].mxu0
    %676 = vdwg.mxu0
    %v677 = vlaneseq
    %v678 = vshrl.u32 %v677, 7
    %v679 = vsub.s32 2, %v678
    %v680 = vrot.slane %v177, %v679
    %v681 = vmul.f32 %v680, 0.01
    %v682 = vlaneseq
    %v683 = vshrl.u32 %v682, 7
    %v684 = vsub.s32 3, %v683
    %v685 = vrot.slane %v177, %v684
    %v686 = vmul.f32 %v685, 0.0
    %v687 = vadd.f32 %v681, %v686
    %v688 = vmul.f32 %v687, 1.8
    %v689 = vadd.f32 %v688, 0.01
    %v690 = vlaneseq
    %v691 = vshrl.u32 %v690, 7
    %v692 = vsub.s32 0, %v691
    %v693 = vrot.slane %v177, %v692
    %v694 = vmul.f32 %v185, %v693
    %v695 = vlaneseq
    %v696 = vshrl.u32 %v695, 7
    %v697 = vsub.s32 1, %v696
    %v698 = vrot.slane %v177, %v697
    %v699 = vmul.f32 %v698, %v674
    %v700 = vadd.f32 %v694, %v699
    %v701 = vmul.f32 %v689, 0.0
    %v702 = vsub.f32 %v700, %v701
    %v703 = vsub.f32 %v702, %v689
    %vm704 = vcmp.gt.f32.partialorder %v703, 0.0
    %v705 = vsel %vm704, 1, 0
    %v706 = vcvt.s32.f32 %v705
    %707 = vst [vmem:[#allocation18] sm:$0xff] %v324
    %708 = vst [vmem:[#allocation18 + $0x8] sm:$0xff] %v462
    %709 = vst [vmem:[#allocation18 + $0x10] sm:$0xff] %v584
    %710 = vst [vmem:[#allocation18 + $0x18] sm:$0xff] %v706
    %s711 = scalar_lea.vmem [#allocation2], 8
    %v712 = vld [vmem:[%s711] sm:$0xff]
    %v713 = vld [vmem:[#allocation5] sm:$0xff]
    %v714 = vld [vmem:[#allocation5 + $0x8] sm:$0xff]
    %v715 = vld [vmem:[#allocation5 + $0x10] sm:$0xff]
    %v716 = vld [vmem:[#allocation5 + $0x18] sm:$0xff]
    %v717 = vld [vmem:[#allocation5 + $0x20] sm:$0xff]
    %v718 = vld [vmem:[#allocation5 + $0x28] sm:$0xff]
    %v719 = vld [vmem:[#allocation5 + $0x30] sm:$0xff]
    %v720 = vld [vmem:[#allocation5 + $0x38] sm:$0xff]
    %v721 = vld [vmem:[#allocation5 + $0x40] sm:$0xff]
    %v722 = vld [vmem:[#allocation5 + $0x48] sm:$0xff]
    %v723 = vld [vmem:[#allocation5 + $0x50] sm:$0xff]
    %v724 = vld [vmem:[#allocation5 + $0x58] sm:$0xff]
    %v725 = vld [vmem:[#allocation5 + $0x60] sm:$0xff]
    %v726 = vld [vmem:[#allocation5 + $0x68] sm:$0xff]
    %v727 = vld [vmem:[#allocation5 + $0x70] sm:$0xff]
    %v728 = vld [vmem:[#allocation5 + $0x78] sm:$0xff]
    %v729 = vld [vmem:[#allocation5 + $0x80] sm:$0xff]
    %v730 = vld [vmem:[#allocation5 + $0x88] sm:$0xff]
    %v731 = vld [vmem:[#allocation5 + $0x90] sm:$0xff]
    %v732 = vld [vmem:[#allocation5 + $0x98] sm:$0xff]
    %v733 = vld [vmem:[#allocation5 + $0xa0] sm:$0xff]
    %v734 = vld [vmem:[#allocation5 + $0xa8] sm:$0xff]
    %v735 = vld [vmem:[#allocation5 + $0xb0] sm:$0xff]
    %v736 = vld [vmem:[#allocation5 + $0xb8] sm:$0xff]
    %v737 = vld [vmem:[#allocation5 + $0xc0] sm:$0xff]
    %v738 = vld [vmem:[#allocation5 + $0xc8] sm:$0xff]
    %v739 = vld [vmem:[#allocation5 + $0xd0] sm:$0xff]
    %v740 = vld [vmem:[#allocation5 + $0xd8] sm:$0xff]
    %v741 = vld [vmem:[#allocation5 + $0xe0] sm:$0xff]
    %v742 = vld [vmem:[#allocation5 + $0xe8] sm:$0xff]
    %v743 = vld [vmem:[#allocation5 + $0xf0] sm:$0xff]
    %v744 = vld [vmem:[#allocation5 + $0xf8] sm:$0xff]
    %745 = vmatprep.subr.mxu0 0.0
    %746 = vmatpush1.msra.mxu0 %v713
    %747 = vmatprep.subr.mxu0 0.0
    %748 = vmatpush1.msra.mxu0 %v714
    %749 = vmatprep.subr.mxu0 0.0
    %750 = vmatpush1.msra.mxu0 %v715
    %751 = vmatprep.subr.mxu0 0.0
    %752 = vmatpush1.msra.mxu0 %v716
    %753 = vmatprep.subr.mxu0 0.0
    %754 = vmatpush1.msra.mxu0 %v717
    %755 = vmatprep.subr.mxu0 0.0
    %756 = vmatpush1.msra.mxu0 %v718
    %757 = vmatprep.subr.mxu0 0.0
    %758 = vmatpush1.msra.mxu0 %v719
    %759 = vmatprep.subr.mxu0 0.0
    %760 = vmatpush1.msra.mxu0 %v720
    %761 = vmatprep.subr.mxu0 0.0
    %762 = vmatpush1.msra.mxu0 %v721
    %763 = vmatprep.subr.mxu0 0.0
    %764 = vmatpush1.msra.mxu0 %v722
    %765 = vmatprep.subr.mxu0 0.0
    %766 = vmatpush1.msra.mxu0 %v723
    %767 = vmatprep.subr.mxu0 0.0
    %768 = vmatpush1.msra.mxu0 %v724
    %769 = vmatprep.subr.mxu0 0.0
    %770 = vmatpush1.msra.mxu0 %v725
    %771 = vmatprep.subr.mxu0 0.0
    %772 = vmatpush1.msra.mxu0 %v726
    %773 = vmatprep.subr.mxu0 0.0
    %774 = vmatpush1.msra.mxu0 %v727
    %775 = vmatprep.subr.mxu0 0.0
    %776 = vmatpush1.msra.mxu0 %v728
    %777 = vmatprep.subr.mxu0 0.0
    %778 = vmatpush1.msra.mxu0 %v729
    %779 = vmatprep.subr.mxu0 0.0
    %780 = vmatpush1.msra.mxu0 %v730
    %781 = vmatprep.subr.mxu0 0.0
    %782 = vmatpush1.msra.mxu0 %v731
    %783 = vmatprep.subr.mxu0 0.0
    %784 = vmatpush1.msra.mxu0 %v732
    %785 = vmatprep.subr.mxu0 0.0
    %786 = vmatpush1.msra.mxu0 %v733
    %787 = vmatprep.subr.mxu0 0.0
    %788 = vmatpush1.msra.mxu0 %v734
    %789 = vmatprep.subr.mxu0 0.0
    %790 = vmatpush1.msra.mxu0 %v735
    %791 = vmatprep.subr.mxu0 0.0
    %792 = vmatpush1.msra.mxu0 %v736
    %793 = vmatprep.subr.mxu0 0.0
    %794 = vmatpush1.msra.mxu0 %v737
    %795 = vmatprep.subr.mxu0 0.0
    %796 = vmatpush1.msra.mxu0 %v738
    %797 = vmatprep.subr.mxu0 0.0
    %798 = vmatpush1.msra.mxu0 %v739
    %799 = vmatprep.subr.mxu0 0.0
    %800 = vmatpush1.msra.mxu0 %v740
    %801 = vmatprep.subr.mxu0 0.0
    %802 = vmatpush1.msra.mxu0 %v741
    %803 = vmatprep.subr.mxu0 0.0
    %804 = vmatpush1.msra.mxu0 %v742
    %805 = vmatprep.subr.mxu0 0.0
    %806 = vmatpush1.msra.mxu0 %v743
    %807 = vmatprep.subr.mxu0 0.0
    %808 = vmatpush1.msra.mxu0 %v744
    %809 = vmatprep.mubr.f32.mxu0 %v324
    %810 = vmatmul.mubr.f32.gmra.mrb[0].mxu0 %v712
    %v811 = vpop.f32.mrb[0].mxu0
    %v812 = vadd.f32 %v223, %v811
    %v813 = vpop.f32.mrb[0].mxu0
    %814 = vdwg.mxu0
    %v815 = vmul.f32 %v298, %v305
    %v816 = vmul.f32 %v303, %v324
    %v817 = vadd.f32 %v815, %v816
    %v818 = vmul.f32 %v817, 1.8
    %v819 = vadd.f32 %v818, 0.01
    %v820 = vmul.f32 %v320, %v311
    %v821 = vmul.f32 %v316, %v812
    %v822 = vadd.f32 %v820, %v821
    %v823 = vmul.f32 %v819, %v324
    %v824 = vsub.f32 %v822, %v823
    %v825 = vsub.f32 %v824, %v819
    %vm826 = vcmp.gt.f32.partialorder %v825, 0.0
    %v827 = vsel %vm826, 1, 0
    %v828 = vcvt.s32.f32 %v827
    %v829 = vld [vmem:[#allocation7] sm:$0xff]
    %v830 = vld [vmem:[#allocation7 + $0x8] sm:$0xff]
    %v831 = vld [vmem:[#allocation7 + $0x10] sm:$0xff]
    %v832 = vld [vmem:[#allocation7 + $0x18] sm:$0xff]
    %v833 = vld [vmem:[#allocation7 + $0x20] sm:$0xff]
    %v834 = vld [vmem:[#allocation7 + $0x28] sm:$0xff]
    %v835 = vld [vmem:[#allocation7 + $0x30] sm:$0xff]
    %v836 = vld [vmem:[#allocation7 + $0x38] sm:$0xff]
    %v837 = vld [vmem:[#allocation7 + $0x40] sm:$0xff]
    %v838 = vld [vmem:[#allocation7 + $0x48] sm:$0xff]
    %v839 = vld [vmem:[#allocation7 + $0x50] sm:$0xff]
    %v840 = vld [vmem:[#allocation7 + $0x58] sm:$0xff]
    %v841 = vld [vmem:[#allocation7 + $0x60] sm:$0xff]
    %v842 = vld [vmem:[#allocation7 + $0x68] sm:$0xff]
    %v843 = vld [vmem:[#allocation7 + $0x70] sm:$0xff]
    %v844 = vld [vmem:[#allocation7 + $0x78] sm:$0xff]
    %v845 = vld [vmem:[#allocation7 + $0x80] sm:$0xff]
    %v846 = vld [vmem:[#allocation7 + $0x88] sm:$0xff]
    %v847 = vld [vmem:[#allocation7 + $0x90] sm:$0xff]
    %v848 = vld [vmem:[#allocation7 + $0x98] sm:$0xff]
    %v849 = vld [vmem:[#allocation7 + $0xa0] sm:$0xff]
    %v850 = vld [vmem:[#allocation7 + $0xa8] sm:$0xff]
    %v851 = vld [vmem:[#allocation7 + $0xb0] sm:$0xff]
    %v852 = vld [vmem:[#allocation7 + $0xb8] sm:$0xff]
    %v853 = vld [vmem:[#allocation7 + $0xc0] sm:$0xff]
    %v854 = vld [vmem:[#allocation7 + $0xc8] sm:$0xff]
    %v855 = vld [vmem:[#allocation7 + $0xd0] sm:$0xff]
    %v856 = vld [vmem:[#allocation7 + $0xd8] sm:$0xff]
    %v857 = vld [vmem:[#allocation7 + $0xe0] sm:$0xff]
    %v858 = vld [vmem:[#allocation7 + $0xe8] sm:$0xff]
    %v859 = vld [vmem:[#allocation7 + $0xf0] sm:$0xff]
    %v860 = vld [vmem:[#allocation7 + $0xf8] sm:$0xff]
    %861 = vmatprep.subr.mxu0 0.0
    %862 = vmatpush1.msra.mxu0 %v829
    %863 = vmatprep.subr.mxu0 0.0
    %864 = vmatpush1.msra.mxu0 %v830
    %865 = vmatprep.subr.mxu0 0.0
    %866 = vmatpush1.msra.mxu0 %v831
    %867 = vmatprep.subr.mxu0 0.0
    %868 = vmatpush1.msra.mxu0 %v832
    %869 = vmatprep.subr.mxu0 0.0
    %870 = vmatpush1.msra.mxu0 %v833
    %871 = vmatprep.subr.mxu0 0.0
    %872 = vmatpush1.msra.mxu0 %v834
    %873 = vmatprep.subr.mxu0 0.0
    %874 = vmatpush1.msra.mxu0 %v835
    %875 = vmatprep.subr.mxu0 0.0
    %876 = vmatpush1.msra.mxu0 %v836
    %877 = vmatprep.subr.mxu0 0.0
    %878 = vmatpush1.msra.mxu0 %v837
    %879 = vmatprep.subr.mxu0 0.0
    %880 = vmatpush1.msra.mxu0 %v838
    %881 = vmatprep.subr.mxu0 0.0
    %882 = vmatpush1.msra.mxu0 %v839
    %883 = vmatprep.subr.mxu0 0.0
    %884 = vmatpush1.msra.mxu0 %v840
    %885 = vmatprep.subr.mxu0 0.0
    %886 = vmatpush1.msra.mxu0 %v841
    %887 = vmatprep.subr.mxu0 0.0
    %888 = vmatpush1.msra.mxu0 %v842
    %889 = vmatprep.subr.mxu0 0.0
    %890 = vmatpush1.msra.mxu0 %v843
    %891 = vmatprep.subr.mxu0 0.0
    %892 = vmatpush1.msra.mxu0 %v844
    %893 = vmatprep.subr.mxu0 0.0
    %894 = vmatpush1.msra.mxu0 %v845
    %895 = vmatprep.subr.mxu0 0.0
    %896 = vmatpush1.msra.mxu0 %v846
    %897 = vmatprep.subr.mxu0 0.0
    %898 = vmatpush1.msra.mxu0 %v847
    %899 = vmatprep.subr.mxu0 0.0
    %900 = vmatpush1.msra.mxu0 %v848
    %901 = vmatprep.subr.mxu0 0.0
    %902 = vmatpush1.msra.mxu0 %v849
    %903 = vmatprep.subr.mxu0 0.0
    %904 = vmatpush1.msra.mxu0 %v850
    %905 = vmatprep.subr.mxu0 0.0
    %906 = vmatpush1.msra.mxu0 %v851
    %907 = vmatprep.subr.mxu0 0.0
    %908 = vmatpush1.msra.mxu0 %v852
    %909 = vmatprep.subr.mxu0 0.0
    %910 = vmatpush1.msra.mxu0 %v853
    %911 = vmatprep.subr.mxu0 0.0
    %912 = vmatpush1.msra.mxu0 %v854
    %913 = vmatprep.subr.mxu0 0.0
    %914 = vmatpush1.msra.mxu0 %v855
    %915 = vmatprep.subr.mxu0 0.0
    %916 = vmatpush1.msra.mxu0 %v856
    %917 = vmatprep.subr.mxu0 0.0
    %918 = vmatpush1.msra.mxu0 %v857
    %919 = vmatprep.subr.mxu0 0.0
    %920 = vmatpush1.msra.mxu0 %v858
    %921 = vmatprep.subr.mxu0 0.0
    %922 = vmatpush1.msra.mxu0 %v859
    %923 = vmatprep.subr.mxu0 0.0
    %924 = vmatpush1.msra.mxu0 %v860
    %925 = vmatprep.mubr.f32.mxu0 %v462
    %926 = vmatmul.mubr.f32.gmra.mrb[0].mxu0 %v828
    %v927 = vpop.f32.mrb[0].mxu0
    %v928 = vadd.f32 %v361, %v927
    %v929 = vpop.f32.mrb[0].mxu0
    %930 = vdwg.mxu0
    %v931 = vmul.f32 %v436, %v443
    %v932 = vmul.f32 %v441, %v462
    %v933 = vadd.f32 %v931, %v932
    %v934 = vmul.f32 %v933, 1.8
    %v935 = vadd.f32 %v934, 0.01
    %v936 = vmul.f32 %v458, %v449
    %v937 = vmul.f32 %v454, %v928
    %v938 = vadd.f32 %v936, %v937
    %v939 = vmul.f32 %v935, %v462
    %v940 = vsub.f32 %v938, %v939
    %v941 = vsub.f32 %v940, %v935
    %vm942 = vcmp.gt.f32.partialorder %v941, 0.0
    %v943 = vsel %vm942, 1, 0
    %v944 = vcvt.s32.f32 %v943
    %v945 = vld [vmem:[#allocation10] sm:$0xff]
    %v946 = vld [vmem:[#allocation10 + $0x8] sm:$0xff]
    %v947 = vld [vmem:[#allocation10 + $0x10] sm:$0xff]
    %v948 = vld [vmem:[#allocation10 + $0x18] sm:$0xff]
    %v949 = vld [vmem:[#allocation10 + $0x20] sm:$0xff]
    %v950 = vld [vmem:[#allocation10 + $0x28] sm:$0xff]
    %v951 = vld [vmem:[#allocation10 + $0x30] sm:$0xff]
    %v952 = vld [vmem:[#allocation10 + $0x38] sm:$0xff]
    %v953 = vld [vmem:[#allocation10 + $0x40] sm:$0xff]
    %v954 = vld [vmem:[#allocation10 + $0x48] sm:$0xff]
    %v955 = vld [vmem:[#allocation10 + $0x50] sm:$0xff]
    %v956 = vld [vmem:[#allocation10 + $0x58] sm:$0xff]
    %v957 = vld [vmem:[#allocation10 + $0x60] sm:$0xff]
    %v958 = vld [vmem:[#allocation10 + $0x68] sm:$0xff]
    %v959 = vld [vmem:[#allocation10 + $0x70] sm:$0xff]
    %v960 = vld [vmem:[#allocation10 + $0x78] sm:$0xff]
    %961 = vmatprep.subr.mxu0 0.0
    %962 = vmatpush1.msra.mxu0 %v945
    %963 = vmatprep.subr.mxu0 0.0
    %964 = vmatpush1.msra.mxu0 %v946
    %965 = vmatprep.subr.mxu0 0.0
    %966 = vmatpush1.msra.mxu0 %v947
    %967 = vmatprep.subr.mxu0 0.0
    %968 = vmatpush1.msra.mxu0 %v948
    %969 = vmatprep.subr.mxu0 0.0
    %970 = vmatpush1.msra.mxu0 %v949
    %971 = vmatprep.subr.mxu0 0.0
    %972 = vmatpush1.msra.mxu0 %v950
    %973 = vmatprep.subr.mxu0 0.0
    %974 = vmatpush1.msra.mxu0 %v951
    %975 = vmatprep.subr.mxu0 0.0
    %976 = vmatpush1.msra.mxu0 %v952
    %977 = vmatprep.subr.mxu0 0.0
    %978 = vmatpush1.msra.mxu0 %v953
    %979 = vmatprep.subr.mxu0 0.0
    %980 = vmatpush1.msra.mxu0 %v954
    %981 = vmatprep.subr.mxu0 0.0
    %982 = vmatpush1.msra.mxu0 %v955
    %983 = vmatprep.subr.mxu0 0.0
    %984 = vmatpush1.msra.mxu0 %v956
    %985 = vmatprep.subr.mxu0 0.0
    %986 = vmatpush1.msra.mxu0 %v957
    %987 = vmatprep.subr.mxu0 0.0
    %988 = vmatpush1.msra.mxu0 %v958
    %989 = vmatprep.subr.mxu0 0.0
    %990 = vmatpush1.msra.mxu0 %v959
    %991 = vmatprep.subr.mxu0 0.0
    %992 = vmatpush1.msra.mxu0 %v960
    %993 = vmatprep.subr.mxu0 0.0
    %994 = vmatpush1.msra.mxu0 0.0
    %995 = vmatprep.subr.mxu0 0.0
    %996 = vmatpush1.msra.mxu0 0.0
    %997 = vmatprep.subr.mxu0 0.0
    %998 = vmatpush1.msra.mxu0 0.0
    %999 = vmatprep.subr.mxu0 0.0
    %1000 = vmatpush1.msra.mxu0 0.0
    %1001 = vmatprep.subr.mxu0 0.0
    %1002 = vmatpush1.msra.mxu0 0.0
    %1003 = vmatprep.subr.mxu0 0.0
    %1004 = vmatpush1.msra.mxu0 0.0
    %1005 = vmatprep.subr.mxu0 0.0
    %1006 = vmatpush1.msra.mxu0 0.0
    %1007 = vmatprep.subr.mxu0 0.0
    %1008 = vmatpush1.msra.mxu0 0.0
    %1009 = vmatprep.subr.mxu0 0.0
    %1010 = vmatpush1.msra.mxu0 0.0
    %1011 = vmatprep.subr.mxu0 0.0
    %1012 = vmatpush1.msra.mxu0 0.0
    %1013 = vmatprep.subr.mxu0 0.0
    %1014 = vmatpush1.msra.mxu0 0.0
    %1015 = vmatprep.subr.mxu0 0.0
    %1016 = vmatpush1.msra.mxu0 0.0
    %1017 = vmatprep.subr.mxu0 0.0
    %1018 = vmatpush1.msra.mxu0 0.0
    %1019 = vmatprep.subr.mxu0 0.0
    %1020 = vmatpush1.msra.mxu0 0.0
    %1021 = vmatprep.subr.mxu0 0.0
    %1022 = vmatpush1.msra.mxu0 0.0
    %1023 = vmatprep.subr.mxu0 0.0
    %1024 = vmatpush1.msra.mxu0 0.0
    %1025 = vmatprep.mubr.f32.mxu0 0.0
    %1026 = vmatmul.mubr.f32.gmra.mrb[0].mxu0 %v944
    %v1027 = vpop.f32.mrb[0].mxu0
    %v1028 = vadd.f32 %v483, %v1027
    %v1029 = vpop.f32.mrb[0].mxu0
    %1030 = vdwg.mxu0
    %v1031 = vmul.f32 %v558, %v565
    %v1032 = vmul.f32 %v563, %v584
    %v1033 = vadd.f32 %v1031, %v1032
    %v1034 = vmul.f32 %v1033, 1.8
    %v1035 = vadd.f32 %v1034, 0.01
    %v1036 = vmul.f32 %v580, %v571
    %v1037 = vmul.f32 %v576, %v1028
    %v1038 = vadd.f32 %v1036, %v1037
    %v1039 = vmul.f32 %v1035, %v584
    %v1040 = vsub.f32 %v1038, %v1039
    %v1041 = vsub.f32 %v1040, %v1035
    %vm1042 = vcmp.gt.f32.partialorder %v1041, 0.0
    %v1043 = vsel %vm1042, 1, 0
    %v1044 = vcvt.s32.f32 %v1043
    %v1045 = vld [vmem:[#allocation13] sm:$0xff]
    %v1046 = vld [vmem:[#allocation13 + $0x8] sm:$0xff]
    %v1047 = vld [vmem:[#allocation13 + $0x10] sm:$0xff]
    %v1048 = vld [vmem:[#allocation13 + $0x18] sm:$0xff]
    %v1049 = vld [vmem:[#allocation13 + $0x20] sm:$0xff]
    %v1050 = vld [vmem:[#allocation13 + $0x28] sm:$0xff]
    %v1051 = vld [vmem:[#allocation13 + $0x30] sm:$0xff]
    %v1052 = vld [vmem:[#allocation13 + $0x38] sm:$0xff]
    %v1053 = vld [vmem:[#allocation13 + $0x40] sm:$0xff]
    %v1054 = vld [vmem:[#allocation13 + $0x48] sm:$0xff]
    %v1055 = vld [vmem:[#allocation13 + $0x50] sm:$0xff]
    %v1056 = vld [vmem:[#allocation13 + $0x58] sm:$0xff]
    %v1057 = vld [vmem:[#allocation13 + $0x60] sm:$0xff]
    %v1058 = vld [vmem:[#allocation13 + $0x68] sm:$0xff]
    %v1059 = vld [vmem:[#allocation13 + $0x70] sm:$0xff]
    %v1060 = vld [vmem:[#allocation13 + $0x78] sm:$0xff]
    %1061 = vmatprep.subr.mxu0 0.0
    %1062 = vmatpush1.msra.mxu0 %v1045
    %1063 = vmatprep.subr.mxu0 0.0
    %1064 = vmatpush1.msra.mxu0 %v1046
    %1065 = vmatprep.subr.mxu0 0.0
    %1066 = vmatpush1.msra.mxu0 %v1047
    %1067 = vmatprep.subr.mxu0 0.0
    %1068 = vmatpush1.msra.mxu0 %v1048
    %1069 = vmatprep.subr.mxu0 0.0
    %1070 = vmatpush1.msra.mxu0 %v1049
    %1071 = vmatprep.subr.mxu0 0.0
    %1072 = vmatpush1.msra.mxu0 %v1050
    %1073 = vmatprep.subr.mxu0 0.0
    %1074 = vmatpush1.msra.mxu0 %v1051
    %1075 = vmatprep.subr.mxu0 0.0
    %1076 = vmatpush1.msra.mxu0 %v1052
    %1077 = vmatprep.subr.mxu0 0.0
    %1078 = vmatpush1.msra.mxu0 %v1053
    %1079 = vmatprep.subr.mxu0 0.0
    %1080 = vmatpush1.msra.mxu0 %v1054
    %1081 = vmatprep.subr.mxu0 0.0
    %1082 = vmatpush1.msra.mxu0 %v1055
    %1083 = vmatprep.subr.mxu0 0.0
    %1084 = vmatpush1.msra.mxu0 %v1056
    %1085 = vmatprep.subr.mxu0 0.0
    %1086 = vmatpush1.msra.mxu0 %v1057
    %1087 = vmatprep.subr.mxu0 0.0
    %1088 = vmatpush1.msra.mxu0 %v1058
    %1089 = vmatprep.subr.mxu0 0.0
    %1090 = vmatpush1.msra.mxu0 %v1059
    %1091 = vmatprep.subr.mxu0 0.0
    %1092 = vmatpush1.msra.mxu0 %v1060
    %1093 = vmatprep.subr.mxu0 0.0
    %1094 = vmatpush1.msra.mxu0 0.0
    %1095 = vmatprep.subr.mxu0 0.0
    %1096 = vmatpush1.msra.mxu0 0.0
    %1097 = vmatprep.subr.mxu0 0.0
    %1098 = vmatpush1.msra.mxu0 0.0
    %1099 = vmatprep.subr.mxu0 0.0
    %1100 = vmatpush1.msra.mxu0 0.0
    %1101 = vmatprep.subr.mxu0 0.0
    %1102 = vmatpush1.msra.mxu0 0.0
    %1103 = vmatprep.subr.mxu0 0.0
    %1104 = vmatpush1.msra.mxu0 0.0
    %1105 = vmatprep.subr.mxu0 0.0
    %1106 = vmatpush1.msra.mxu0 0.0
    %1107 = vmatprep.subr.mxu0 0.0
    %1108 = vmatpush1.msra.mxu0 0.0
    %1109 = vmatprep.subr.mxu0 0.0
    %1110 = vmatpush1.msra.mxu0 0.0
    %1111 = vmatprep.subr.mxu0 0.0
    %1112 = vmatpush1.msra.mxu0 0.0
    %1113 = vmatprep.subr.mxu0 0.0
    %1114 = vmatpush1.msra.mxu0 0.0
    %1115 = vmatprep.subr.mxu0 0.0
    %1116 = vmatpush1.msra.mxu0 0.0
    %1117 = vmatprep.subr.mxu0 0.0
    %1118 = vmatpush1.msra.mxu0 0.0
    %1119 = vmatprep.subr.mxu0 0.0
    %1120 = vmatpush1.msra.mxu0 0.0
    %1121 = vmatprep.subr.mxu0 0.0
    %1122 = vmatpush1.msra.mxu0 0.0
    %1123 = vmatprep.subr.mxu0 0.0
    %1124 = vmatpush1.msra.mxu0 0.0
    %1125 = vmatprep.mubr.f32.mxu0 0.0
    %1126 = vmatmul.mubr.f32.gmra.mrb[0].mxu0 %v1044
    %v1127 = vpop.f32.mrb[0].mxu0
    %v1128 = vadd.f32 %v605, %v1127
    %v1129 = vpop.f32.mrb[0].mxu0
    %1130 = vdwg.mxu0
    %v1131 = vmul.f32 %v680, %v687
    %v1132 = vmul.f32 %v685, %v706
    %v1133 = vadd.f32 %v1131, %v1132
    %v1134 = vmul.f32 %v1133, 1.8
    %v1135 = vadd.f32 %v1134, 0.01
    %v1136 = vmul.f32 %v702, %v693
    %v1137 = vmul.f32 %v698, %v1128
    %v1138 = vadd.f32 %v1136, %v1137
    %v1139 = vmul.f32 %v1135, %v706
    %v1140 = vsub.f32 %v1138, %v1139
    %v1141 = vsub.f32 %v1140, %v1135
    %vm1142 = vcmp.gt.f32.partialorder %v1141, 0.0
    %v1143 = vsel %vm1142, 1, 0
    %v1144 = vcvt.s32.f32 %v1143
    %v1145 = vadd.f32 %v1144, 0.0
    %s1146 = scalar_lea.vmem [#allocation18], 32
    %1147 = vst [vmem:[%s1146] sm:$0xff] %v828
    %1148 = vst [vmem:[%s1146 + $0x8] sm:$0xff] %v944
    %1149 = vst [vmem:[%s1146 + $0x10] sm:$0xff] %v1044
    %1150 = vst [vmem:[%s1146 + $0x18] sm:$0xff] %v1144
    %s1151 = scalar_lea.vmem [#allocation2], 16
    %v1152 = vld [vmem:[%s1151] sm:$0xff]
    %v1153 = vld [vmem:[#allocation5] sm:$0xff]
    %v1154 = vld [vmem:[#allocation5 + $0x8] sm:$0xff]
    %v1155 = vld [vmem:[#allocation5 + $0x10] sm:$0xff]
    %v1156 = vld [vmem:[#allocation5 + $0x18] sm:$0xff]
    %v1157 = vld [vmem:[#allocation5 + $0x20] sm:$0xff]
    %v1158 = vld [vmem:[#allocation5 + $0x28] sm:$0xff]
    %v1159 = vld [vmem:[#allocation5 + $0x30] sm:$0xff]
    %v1160 = vld [vmem:[#allocation5 + $0x38] sm:$0xff]
    %v1161 = vld [vmem:[#allocation5 + $0x40] sm:$0xff]
    %v1162 = vld [vmem:[#allocation5 + $0x48] sm:$0xff]
    %v1163 = vld [vmem:[#allocation5 + $0x50] sm:$0xff]
    %v1164 = vld [vmem:[#allocation5 + $0x58] sm:$0xff]
    %v1165 = vld [vmem:[#allocation5 + $0x60] sm:$0xff]
    %v1166 = vld [vmem:[#allocation5 + $0x68] sm:$0xff]
    %v1167 = vld [vmem:[#allocation5 + $0x70] sm:$0xff]
    %v1168 = vld [vmem:[#allocation5 + $0x78] sm:$0xff]
    %v1169 = vld [vmem:[#allocation5 + $0x80] sm:$0xff]
    %v1170 = vld [vmem:[#allocation5 + $0x88] sm:$0xff]
    %v1171 = vld [vmem:[#allocation5 + $0x90] sm:$0xff]
    %v1172 = vld [vmem:[#allocation5 + $0x98] sm:$0xff]
    %v1173 = vld [vmem:[#allocation5 + $0xa0] sm:$0xff]
    %v1174 = vld [vmem:[#allocation5 + $0xa8] sm:$0xff]
    %v1175 = vld [vmem:[#allocation5 + $0xb0] sm:$0xff]
    %v1176 = vld [vmem:[#allocation5 + $0xb8] sm:$0xff]
    %v1177 = vld [vmem:[#allocation5 + $0xc0] sm:$0xff]
    %v1178 = vld [vmem:[#allocation5 + $0xc8] sm:$0xff]
    %v1179 = vld [vmem:[#allocation5 + $0xd0] sm:$0xff]
    %v1180 = vld [vmem:[#allocation5 + $0xd8] sm:$0xff]
    %v1181 = vld [vmem:[#allocation5 + $0xe0] sm:$0xff]
    %v1182 = vld [vmem:[#allocation5 + $0xe8] sm:$0xff]
    %v1183 = vld [vmem:[#allocation5 + $0xf0] sm:$0xff]
    %v1184 = vld [vmem:[#allocation5 + $0xf8] sm:$0xff]
    %1185 = vmatprep.subr.mxu0 0.0
    %1186 = vmatpush1.msra.mxu0 %v1153
    %1187 = vmatprep.subr.mxu0 0.0
    %1188 = vmatpush1.msra.mxu0 %v1154
    %1189 = vmatprep.subr.mxu0 0.0
    %1190 = vmatpush1.msra.mxu0 %v1155
    %1191 = vmatprep.subr.mxu0 0.0
    %1192 = vmatpush1.msra.mxu0 %v1156
    %1193 = vmatprep.subr.mxu0 0.0
    %1194 = vmatpush1.msra.mxu0 %v1157
    %1195 = vmatprep.subr.mxu0 0.0
    %1196 = vmatpush1.msra.mxu0 %v1158
    %1197 = vmatprep.subr.mxu0 0.0
    %1198 = vmatpush1.msra.mxu0 %v1159
    %1199 = vmatprep.subr.mxu0 0.0
    %1200 = vmatpush1.msra.mxu0 %v1160
    %1201 = vmatprep.subr.mxu0 0.0
    %1202 = vmatpush1.msra.mxu0 %v1161
    %1203 = vmatprep.subr.mxu0 0.0
    %1204 = vmatpush1.msra.mxu0 %v1162
    %1205 = vmatprep.subr.mxu0 0.0
    %1206 = vmatpush1.msra.mxu0 %v1163
    %1207 = vmatprep.subr.mxu0 0.0
    %1208 = vmatpush1.msra.mxu0 %v1164
    %1209 = vmatprep.subr.mxu0 0.0
    %1210 = vmatpush1.msra.mxu0 %v1165
    %1211 = vmatprep.subr.mxu0 0.0
    %1212 = vmatpush1.msra.mxu0 %v1166
    %1213 = vmatprep.subr.mxu0 0.0
    %1214 = vmatpush1.msra.mxu0 %v1167
    %1215 = vmatprep.subr.mxu0 0.0
    %1216 = vmatpush1.msra.mxu0 %v1168
    %1217 = vmatprep.subr.mxu0 0.0
    %1218 = vmatpush1.msra.mxu0 %v1169
    %1219 = vmatprep.subr.mxu0 0.0
    %1220 = vmatpush1.msra.mxu0 %v1170
    %1221 = vmatprep.subr.mxu0 0.0
    %1222 = vmatpush1.msra.mxu0 %v1171
    %1223 = vmatprep.subr.mxu0 0.0
    %1224 = vmatpush1.msra.mxu0 %v1172
    %1225 = vmatprep.subr.mxu0 0.0
    %1226 = vmatpush1.msra.mxu0 %v1173
    %1227 = vmatprep.subr.mxu0 0.0
    %1228 = vmatpush1.msra.mxu0 %v1174
    %1229 = vmatprep.subr.mxu0 0.0
    %1230 = vmatpush1.msra.mxu0 %v1175
    %1231 = vmatprep.subr.mxu0 0.0
    %1232 = vmatpush1.msra.mxu0 %v1176
    %1233 = vmatprep.subr.mxu0 0.0
    %1234 = vmatpush1.msra.mxu0 %v1177
    %1235 = vmatprep.subr.mxu0 0.0
    %1236 = vmatpush1.msra.mxu0 %v1178
    %1237 = vmatprep.subr.mxu0 0.0
    %1238 = vmatpush1.msra.mxu0 %v1179
    %1239 = vmatprep.subr.mxu0 0.0
    %1240 = vmatpush1.msra.mxu0 %v1180
    %1241 = vmatprep.subr.mxu0 0.0
    %1242 = vmatpush1.msra.mxu0 %v1181
    %1243 = vmatprep.subr.mxu0 0.0
    %1244 = vmatpush1.msra.mxu0 %v1182
    %1245 = vmatprep.subr.mxu0 0.0
    %1246 = vmatpush1.msra.mxu0 %v1183
    %1247 = vmatprep.subr.mxu0 0.0
    %1248 = vmatpush1.msra.mxu0 %v1184
    %1249 = vmatprep.mubr.f32.mxu0 %v828
    %1250 = vmatmul.mubr.f32.gmra.mrb[0].mxu0 %v1152
    %v1251 = vpop.f32.mrb[0].mxu0
    %v1252 = vadd.f32 %v223, %v1251
    %v1253 = vpop.f32.mrb[0].mxu0
    %1254 = vdwg.mxu0
    %v1255 = vmul.f32 %v298, %v817
    %v1256 = vmul.f32 %v303, %v828
    %v1257 = vadd.f32 %v1255, %v1256
    %v1258 = vmul.f32 %v1257, 1.8
    %v1259 = vadd.f32 %v1258, 0.01
    %v1260 = vmul.f32 %v824, %v311
    %v1261 = vmul.f32 %v316, %v1252
    %v1262 = vadd.f32 %v1260, %v1261
    %v1263 = vmul.f32 %v1259, %v828
    %v1264 = vsub.f32 %v1262, %v1263
    %v1265 = vsub.f32 %v1264, %v1259
    %vm1266 = vcmp.gt.f32.partialorder %v1265, 0.0
    %v1267 = vsel %vm1266, 1, 0
    %v1268 = vcvt.s32.f32 %v1267
    %v1269 = vld [vmem:[#allocation7] sm:$0xff]
    %v1270 = vld [vmem:[#allocation7 + $0x8] sm:$0xff]
    %v1271 = vld [vmem:[#allocation7 + $0x10] sm:$0xff]
    %v1272 = vld [vmem:[#allocation7 + $0x18] sm:$0xff]
    %v1273 = vld [vmem:[#allocation7 + $0x20] sm:$0xff]
    %v1274 = vld [vmem:[#allocation7 + $0x28] sm:$0xff]
    %v1275 = vld [vmem:[#allocation7 + $0x30] sm:$0xff]
    %v1276 = vld [vmem:[#allocation7 + $0x38] sm:$0xff]
    %v1277 = vld [vmem:[#allocation7 + $0x40] sm:$0xff]
    %v1278 = vld [vmem:[#allocation7 + $0x48] sm:$0xff]
    %v1279 = vld [vmem:[#allocation7 + $0x50] sm:$0xff]
    %v1280 = vld [vmem:[#allocation7 + $0x58] sm:$0xff]
    %v1281 = vld [vmem:[#allocation7 + $0x60] sm:$0xff]
    %v1282 = vld [vmem:[#allocation7 + $0x68] sm:$0xff]
    %v1283 = vld [vmem:[#allocation7 + $0x70] sm:$0xff]
    %v1284 = vld [vmem:[#allocation7 + $0x78] sm:$0xff]
    %v1285 = vld [vmem:[#allocation7 + $0x80] sm:$0xff]
    %v1286 = vld [vmem:[#allocation7 + $0x88] sm:$0xff]
    %v1287 = vld [vmem:[#allocation7 + $0x90] sm:$0xff]
    %v1288 = vld [vmem:[#allocation7 + $0x98] sm:$0xff]
    %v1289 = vld [vmem:[#allocation7 + $0xa0] sm:$0xff]
    %v1290 = vld [vmem:[#allocation7 + $0xa8] sm:$0xff]
    %v1291 = vld [vmem:[#allocation7 + $0xb0] sm:$0xff]
    %v1292 = vld [vmem:[#allocation7 + $0xb8] sm:$0xff]
    %v1293 = vld [vmem:[#allocation7 + $0xc0] sm:$0xff]
    %v1294 = vld [vmem:[#allocation7 + $0xc8] sm:$0xff]
    %v1295 = vld [vmem:[#allocation7 + $0xd0] sm:$0xff]
    %v1296 = vld [vmem:[#allocation7 + $0xd8] sm:$0xff]
    %v1297 = vld [vmem:[#allocation7 + $0xe0] sm:$0xff]
    %v1298 = vld [vmem:[#allocation7 + $0xe8] sm:$0xff]
    %v1299 = vld [vmem:[#allocation7 + $0xf0] sm:$0xff]
    %v1300 = vld [vmem:[#allocation7 + $0xf8] sm:$0xff]
    %1301 = vmatprep.subr.mxu0 0.0
    %1302 = vmatpush1.msra.mxu0 %v1269
    %1303 = vmatprep.subr.mxu0 0.0
    %1304 = vmatpush1.msra.mxu0 %v1270
    %1305 = vmatprep.subr.mxu0 0.0
    %1306 = vmatpush1.msra.mxu0 %v1271
    %1307 = vmatprep.subr.mxu0 0.0
    %1308 = vmatpush1.msra.mxu0 %v1272
    %1309 = vmatprep.subr.mxu0 0.0
    %1310 = vmatpush1.msra.mxu0 %v1273
    %1311 = vmatprep.subr.mxu0 0.0
    %1312 = vmatpush1.msra.mxu0 %v1274
    %1313 = vmatprep.subr.mxu0 0.0
    %1314 = vmatpush1.msra.mxu0 %v1275
    %1315 = vmatprep.subr.mxu0 0.0
    %1316 = vmatpush1.msra.mxu0 %v1276
    %1317 = vmatprep.subr.mxu0 0.0
    %1318 = vmatpush1.msra.mxu0 %v1277
    %1319 = vmatprep.subr.mxu0 0.0
    %1320 = vmatpush1.msra.mxu0 %v1278
    %1321 = vmatprep.subr.mxu0 0.0
    %1322 = vmatpush1.msra.mxu0 %v1279
    %1323 = vmatprep.subr.mxu0 0.0
    %1324 = vmatpush1.msra.mxu0 %v1280
    %1325 = vmatprep.subr.mxu0 0.0
    %1326 = vmatpush1.msra.mxu0 %v1281
    %1327 = vmatprep.subr.mxu0 0.0
    %1328 = vmatpush1.msra.mxu0 %v1282
    %1329 = vmatprep.subr.mxu0 0.0
    %1330 = vmatpush1.msra.mxu0 %v1283
    %1331 = vmatprep.subr.mxu0 0.0
    %1332 = vmatpush1.msra.mxu0 %v1284
    %1333 = vmatprep.subr.mxu0 0.0
    %1334 = vmatpush1.msra.mxu0 %v1285
    %1335 = vmatprep.subr.mxu0 0.0
    %1336 = vmatpush1.msra.mxu0 %v1286
    %1337 = vmatprep.subr.mxu0 0.0
    %1338 = vmatpush1.msra.mxu0 %v1287
    %1339 = vmatprep.subr.mxu0 0.0
    %1340 = vmatpush1.msra.mxu0 %v1288
    %1341 = vmatprep.subr.mxu0 0.0
    %1342 = vmatpush1.msra.mxu0 %v1289
    %1343 = vmatprep.subr.mxu0 0.0
    %1344 = vmatpush1.msra.mxu0 %v1290
    %1345 = vmatprep.subr.mxu0 0.0
    %1346 = vmatpush1.msra.mxu0 %v1291
    %1347 = vmatprep.subr.mxu0 0.0
    %1348 = vmatpush1.msra.mxu0 %v1292
    %1349 = vmatprep.subr.mxu0 0.0
    %1350 = vmatpush1.msra.mxu0 %v1293
    %1351 = vmatprep.subr.mxu0 0.0
    %1352 = vmatpush1.msra.mxu0 %v1294
    %1353 = vmatprep.subr.mxu0 0.0
    %1354 = vmatpush1.msra.mxu0 %v1295
    %1355 = vmatprep.subr.mxu0 0.0
    %1356 = vmatpush1.msra.mxu0 %v1296
    %1357 = vmatprep.subr.mxu0 0.0
    %1358 = vmatpush1.msra.mxu0 %v1297
    %1359 = vmatprep.subr.mxu0 0.0
    %1360 = vmatpush1.msra.mxu0 %v1298
    %1361 = vmatprep.subr.mxu0 0.0
    %1362 = vmatpush1.msra.mxu0 %v1299
    %1363 = vmatprep.subr.mxu0 0.0
    %1364 = vmatpush1.msra.mxu0 %v1300
    %1365 = vmatprep.mubr.f32.mxu0 %v944
    %1366 = vmatmul.mubr.f32.gmra.mrb[0].mxu0 %v1268
    %v1367 = vpop.f32.mrb[0].mxu0
    %v1368 = vadd.f32 %v361, %v1367
    %v1369 = vpop.f32.mrb[0].mxu0
    %1370 = vdwg.mxu0
    %v1371 = vmul.f32 %v436, %v933
    %v1372 = vmul.f32 %v441, %v944
    %v1373 = vadd.f32 %v1371, %v1372
    %v1374 = vmul.f32 %v1373, 1.8
    %v1375 = vadd.f32 %v1374, 0.01
    %v1376 = vmul.f32 %v940, %v449
    %v1377 = vmul.f32 %v454, %v1368
    %v1378 = vadd.f32 %v1376, %v1377
    %v1379 = vmul.f32 %v1375, %v944
    %v1380 = vsub.f32 %v1378, %v1379
    %v1381 = vsub.f32 %v1380, %v1375
    %vm1382 = vcmp.gt.f32.partialorder %v1381, 0.0
    %v1383 = vsel %vm1382, 1, 0
    %v1384 = vcvt.s32.f32 %v1383
    %v1385 = vld [vmem:[#allocation10] sm:$0xff]
    %v1386 = vld [vmem:[#allocation10 + $0x8] sm:$0xff]
    %v1387 = vld [vmem:[#allocation10 + $0x10] sm:$0xff]
    %v1388 = vld [vmem:[#allocation10 + $0x18] sm:$0xff]
    %v1389 = vld [vmem:[#allocation10 + $0x20] sm:$0xff]
    %v1390 = vld [vmem:[#allocation10 + $0x28] sm:$0xff]
    %v1391 = vld [vmem:[#allocation10 + $0x30] sm:$0xff]
    %v1392 = vld [vmem:[#allocation10 + $0x38] sm:$0xff]
    %v1393 = vld [vmem:[#allocation10 + $0x40] sm:$0xff]
    %v1394 = vld [vmem:[#allocation10 + $0x48] sm:$0xff]
    %v1395 = vld [vmem:[#allocation10 + $0x50] sm:$0xff]
    %v1396 = vld [vmem:[#allocation10 + $0x58] sm:$0xff]
    %v1397 = vld [vmem:[#allocation10 + $0x60] sm:$0xff]
    %v1398 = vld [vmem:[#allocation10 + $0x68] sm:$0xff]
    %v1399 = vld [vmem:[#allocation10 + $0x70] sm:$0xff]
    %v1400 = vld [vmem:[#allocation10 + $0x78] sm:$0xff]
    %1401 = vmatprep.subr.mxu0 0.0
    %1402 = vmatpush1.msra.mxu0 %v1385
    %1403 = vmatprep.subr.mxu0 0.0
    %1404 = vmatpush1.msra.mxu0 %v1386
    %1405 = vmatprep.subr.mxu0 0.0
    %1406 = vmatpush1.msra.mxu0 %v1387
    %1407 = vmatprep.subr.mxu0 0.0
    %1408 = vmatpush1.msra.mxu0 %v1388
    %1409 = vmatprep.subr.mxu0 0.0
    %1410 = vmatpush1.msra.mxu0 %v1389
    %1411 = vmatprep.subr.mxu0 0.0
    %1412 = vmatpush1.msra.mxu0 %v1390
    %1413 = vmatprep.subr.mxu0 0.0
    %1414 = vmatpush1.msra.mxu0 %v1391
    %1415 = vmatprep.subr.mxu0 0.0
    %1416 = vmatpush1.msra.mxu0 %v1392
    %1417 = vmatprep.subr.mxu0 0.0
    %1418 = vmatpush1.msra.mxu0 %v1393
    %1419 = vmatprep.subr.mxu0 0.0
    %1420 = vmatpush1.msra.mxu0 %v1394
    %1421 = vmatprep.subr.mxu0 0.0
    %1422 = vmatpush1.msra.mxu0 %v1395
    %1423 = vmatprep.subr.mxu0 0.0
    %1424 = vmatpush1.msra.mxu0 %v1396
    %1425 = vmatprep.subr.mxu0 0.0
    %1426 = vmatpush1.msra.mxu0 %v1397
    %1427 = vmatprep.subr.mxu0 0.0
    %1428 = vmatpush1.msra.mxu0 %v1398
    %1429 = vmatprep.subr.mxu0 0.0
    %1430 = vmatpush1.msra.mxu0 %v1399
    %1431 = vmatprep.subr.mxu0 0.0
    %1432 = vmatpush1.msra.mxu0 %v1400
    %1433 = vmatprep.subr.mxu0 0.0
    %1434 = vmatpush1.msra.mxu0 0.0
    %1435 = vmatprep.subr.mxu0 0.0
    %1436 = vmatpush1.msra.mxu0 0.0
    %1437 = vmatprep.subr.mxu0 0.0
    %1438 = vmatpush1.msra.mxu0 0.0
    %1439 = vmatprep.subr.mxu0 0.0
    %1440 = vmatpush1.msra.mxu0 0.0
    %1441 = vmatprep.subr.mxu0 0.0
    %1442 = vmatpush1.msra.mxu0 0.0
    %1443 = vmatprep.subr.mxu0 0.0
    %1444 = vmatpush1.msra.mxu0 0.0
    %1445 = vmatprep.subr.mxu0 0.0
    %1446 = vmatpush1.msra.mxu0 0.0
    %1447 = vmatprep.subr.mxu0 0.0
    %1448 = vmatpush1.msra.mxu0 0.0
    %1449 = vmatprep.subr.mxu0 0.0
    %1450 = vmatpush1.msra.mxu0 0.0
    %1451 = vmatprep.subr.mxu0 0.0
    %1452 = vmatpush1.msra.mxu0 0.0
    %1453 = vmatprep.subr.mxu0 0.0
    %1454 = vmatpush1.msra.mxu0 0.0
    %1455 = vmatprep.subr.mxu0 0.0
    %1456 = vmatpush1.msra.mxu0 0.0
    %1457 = vmatprep.subr.mxu0 0.0
    %1458 = vmatpush1.msra.mxu0 0.0
    %1459 = vmatprep.subr.mxu0 0.0
    %1460 = vmatpush1.msra.mxu0 0.0
    %1461 = vmatprep.subr.mxu0 0.0
    %1462 = vmatpush1.msra.mxu0 0.0
    %1463 = vmatprep.subr.mxu0 0.0
    %1464 = vmatpush1.msra.mxu0 0.0
    %1465 = vmatprep.mubr.f32.mxu0 0.0
    %1466 = vmatmul.mubr.f32.gmra.mrb[0].mxu0 %v1384
    %v1467 = vpop.f32.mrb[0].mxu0
    %v1468 = vadd.f32 %v483, %v1467
    %v1469 = vpop.f32.mrb[0].mxu0
    %1470 = vdwg.mxu0
    %v1471 = vmul.f32 %v558, %v1033
    %v1472 = vmul.f32 %v563, %v1044
    %v1473 = vadd.f32 %v1471, %v1472
    %v1474 = vmul.f32 %v1473, 1.8
    %v1475 = vadd.f32 %v1474, 0.01
    %v1476 = vmul.f32 %v1040, %v571
    %v1477 = vmul.f32 %v576, %v1468
    %v1478 = vadd.f32 %v1476, %v1477
    %v1479 = vmul.f32 %v1475, %v1044
    %v1480 = vsub.f32 %v1478, %v1479
    %v1481 = vsub.f32 %v1480, %v1475
    %vm1482 = vcmp.gt.f32.partialorder %v1481, 0.0
    %v1483 = vsel %vm1482, 1, 0
    %v1484 = vcvt.s32.f32 %v1483
    %v1485 = vld [vmem:[#allocation13] sm:$0xff]
    %v1486 = vld [vmem:[#allocation13 + $0x8] sm:$0xff]
    %v1487 = vld [vmem:[#allocation13 + $0x10] sm:$0xff]
    %v1488 = vld [vmem:[#allocation13 + $0x18] sm:$0xff]
    %v1489 = vld [vmem:[#allocation13 + $0x20] sm:$0xff]
    %v1490 = vld [vmem:[#allocation13 + $0x28] sm:$0xff]
    %v1491 = vld [vmem:[#allocation13 + $0x30] sm:$0xff]
    %v1492 = vld [vmem:[#allocation13 + $0x38] sm:$0xff]
    %v1493 = vld [vmem:[#allocation13 + $0x40] sm:$0xff]
    %v1494 = vld [vmem:[#allocation13 + $0x48] sm:$0xff]
    %v1495 = vld [vmem:[#allocation13 + $0x50] sm:$0xff]
    %v1496 = vld [vmem:[#allocation13 + $0x58] sm:$0xff]
    %v1497 = vld [vmem:[#allocation13 + $0x60] sm:$0xff]
    %v1498 = vld [vmem:[#allocation13 + $0x68] sm:$0xff]
    %v1499 = vld [vmem:[#allocation13 + $0x70] sm:$0xff]
    %v1500 = vld [vmem:[#allocation13 + $0x78] sm:$0xff]
    %1501 = vmatprep.subr.mxu0 0.0
    %1502 = vmatpush1.msra.mxu0 %v1485
    %1503 = vmatprep.subr.mxu0 0.0
    %1504 = vmatpush1.msra.mxu0 %v1486
    %1505 = vmatprep.subr.mxu0 0.0
    %1506 = vmatpush1.msra.mxu0 %v1487
    %1507 = vmatprep.subr.mxu0 0.0
    %1508 = vmatpush1.msra.mxu0 %v1488
    %1509 = vmatprep.subr.mxu0 0.0
    %1510 = vmatpush1.msra.mxu0 %v1489
    %1511 = vmatprep.subr.mxu0 0.0
    %1512 = vmatpush1.msra.mxu0 %v1490
    %1513 = vmatprep.subr.mxu0 0.0
    %1514 = vmatpush1.msra.mxu0 %v1491
    %1515 = vmatprep.subr.mxu0 0.0
    %1516 = vmatpush1.msra.mxu0 %v1492
    %1517 = vmatprep.subr.mxu0 0.0
    %1518 = vmatpush1.msra.mxu0 %v1493
    %1519 = vmatprep.subr.mxu0 0.0
    %1520 = vmatpush1.msra.mxu0 %v1494
    %1521 = vmatprep.subr.mxu0 0.0
    %1522 = vmatpush1.msra.mxu0 %v1495
    %1523 = vmatprep.subr.mxu0 0.0
    %1524 = vmatpush1.msra.mxu0 %v1496
    %1525 = vmatprep.subr.mxu0 0.0
    %1526 = vmatpush1.msra.mxu0 %v1497
    %1527 = vmatprep.subr.mxu0 0.0
    %1528 = vmatpush1.msra.mxu0 %v1498
    %1529 = vmatprep.subr.mxu0 0.0
    %1530 = vmatpush1.msra.mxu0 %v1499
    %1531 = vmatprep.subr.mxu0 0.0
    %1532 = vmatpush1.msra.mxu0 %v1500
    %1533 = vmatprep.subr.mxu0 0.0
    %1534 = vmatpush1.msra.mxu0 0.0
    %1535 = vmatprep.subr.mxu0 0.0
    %1536 = vmatpush1.msra.mxu0 0.0
    %1537 = vmatprep.subr.mxu0 0.0
    %1538 = vmatpush1.msra.mxu0 0.0
    %1539 = vmatprep.subr.mxu0 0.0
    %1540 = vmatpush1.msra.mxu0 0.0
    %1541 = vmatprep.subr.mxu0 0.0
    %1542 = vmatpush1.msra.mxu0 0.0
    %1543 = vmatprep.subr.mxu0 0.0
    %1544 = vmatpush1.msra.mxu0 0.0
    %1545 = vmatprep.subr.mxu0 0.0
    %1546 = vmatpush1.msra.mxu0 0.0
    %1547 = vmatprep.subr.mxu0 0.0
    %1548 = vmatpush1.msra.mxu0 0.0
    %1549 = vmatprep.subr.mxu0 0.0
    %1550 = vmatpush1.msra.mxu0 0.0
    %1551 = vmatprep.subr.mxu0 0.0
    %1552 = vmatpush1.msra.mxu0 0.0
    %1553 = vmatprep.subr.mxu0 0.0
    %1554 = vmatpush1.msra.mxu0 0.0
    %1555 = vmatprep.subr.mxu0 0.0
    %1556 = vmatpush1.msra.mxu0 0.0
    %1557 = vmatprep.subr.mxu0 0.0
    %1558 = vmatpush1.msra.mxu0 0.0
    %1559 = vmatprep.subr.mxu0 0.0
    %1560 = vmatpush1.msra.mxu0 0.0
    %1561 = vmatprep.subr.mxu0 0.0
    %1562 = vmatpush1.msra.mxu0 0.0
    %1563 = vmatprep.subr.mxu0 0.0
    %1564 = vmatpush1.msra.mxu0 0.0
    %1565 = vmatprep.mubr.f32.mxu0 0.0
    %1566 = vmatmul.mubr.f32.gmra.mrb[0].mxu0 %v1484
    %v1567 = vpop.f32.mrb[0].mxu0
    %v1568 = vadd.f32 %v605, %v1567
    %v1569 = vpop.f32.mrb[0].mxu0
    %1570 = vdwg.mxu0
    %v1571 = vmul.f32 %v680, %v1133
    %v1572 = vmul.f32 %v685, %v1144
    %v1573 = vadd.f32 %v1571, %v1572
    %v1574 = vmul.f32 %v1573, 1.8
    %v1575 = vadd.f32 %v1574, 0.01
    %v1576 = vmul.f32 %v1140, %v693
    %v1577 = vmul.f32 %v698, %v1568
    %v1578 = vadd.f32 %v1576, %v1577
    %v1579 = vmul.f32 %v1575, %v1144
    %v1580 = vsub.f32 %v1578, %v1579
    %v1581 = vsub.f32 %v1580, %v1575
    %vm1582 = vcmp.gt.f32.partialorder %v1581, 0.0
    %v1583 = vsel %vm1582, 1, 0
    %v1584 = vcvt.s32.f32 %v1583
    %v1585 = vadd.f32 %v1145, %v1584
    %s1586 = scalar_lea.vmem [#allocation18], 64
    %1587 = vst [vmem:[%s1586] sm:$0xff] %v1268
    %1588 = vst [vmem:[%s1586 + $0x8] sm:$0xff] %v1384
    %1589 = vst [vmem:[%s1586 + $0x10] sm:$0xff] %v1484
    %1590 = vst [vmem:[%s1586 + $0x18] sm:$0xff] %v1584
    %s1591 = scalar_lea.vmem [#allocation2], 24
    %v1592 = vld [vmem:[%s1591] sm:$0xff]
    %v1593 = vld [vmem:[#allocation5] sm:$0xff]
    %v1594 = vld [vmem:[#allocation5 + $0x8] sm:$0xff]
    %v1595 = vld [vmem:[#allocation5 + $0x10] sm:$0xff]
    %v1596 = vld [vmem:[#allocation5 + $0x18] sm:$0xff]
    %v1597 = vld [vmem:[#allocation5 + $0x20] sm:$0xff]
    %v1598 = vld [vmem:[#allocation5 + $0x28] sm:$0xff]
    %v1599 = vld [vmem:[#allocation5 + $0x30] sm:$0xff]
    %v1600 = vld [vmem:[#allocation5 + $0x38] sm:$0xff]
    %v1601 = vld [vmem:[#allocation5 + $0x40] sm:$0xff]
    %v1602 = vld [vmem:[#allocation5 + $0x48] sm:$0xff]
    %v1603 = vld [vmem:[#allocation5 + $0x50] sm:$0xff]
    %v1604 = vld [vmem:[#allocation5 + $0x58] sm:$0xff]
    %v1605 = vld [vmem:[#allocation5 + $0x60] sm:$0xff]
    %v1606 = vld [vmem:[#allocation5 + $0x68] sm:$0xff]
    %v1607 = vld [vmem:[#allocation5 + $0x70] sm:$0xff]
    %v1608 = vld [vmem:[#allocation5 + $0x78] sm:$0xff]
    %v1609 = vld [vmem:[#allocation5 + $0x80] sm:$0xff]
    %v1610 = vld [vmem:[#allocation5 + $0x88] sm:$0xff]
    %v1611 = vld [vmem:[#allocation5 + $0x90] sm:$0xff]
    %v1612 = vld [vmem:[#allocation5 + $0x98] sm:$0xff]
    %v1613 = vld [vmem:[#allocation5 + $0xa0] sm:$0xff]
    %v1614 = vld [vmem:[#allocation5 + $0xa8] sm:$0xff]
    %v1615 = vld [vmem:[#allocation5 + $0xb0] sm:$0xff]
    %v1616 = vld [vmem:[#allocation5 + $0xb8] sm:$0xff]
    %v1617 = vld [vmem:[#allocation5 + $0xc0] sm:$0xff]
    %v1618 = vld [vmem:[#allocation5 + $0xc8] sm:$0xff]
    %v1619 = vld [vmem:[#allocation5 + $0xd0] sm:$0xff]
    %v1620 = vld [vmem:[#allocation5 + $0xd8] sm:$0xff]
    %v1621 = vld [vmem:[#allocation5 + $0xe0] sm:$0xff]
    %v1622 = vld [vmem:[#allocation5 + $0xe8] sm:$0xff]
    %v1623 = vld [vmem:[#allocation5 + $0xf0] sm:$0xff]
    %v1624 = vld [vmem:[#allocation5 + $0xf8] sm:$0xff]
    %1625 = vmatprep.subr.mxu0 0.0
    %1626 = vmatpush1.msra.mxu0 %v1593
    %1627 = vmatprep.subr.mxu0 0.0
    %1628 = vmatpush1.msra.mxu0 %v1594
    %1629 = vmatprep.subr.mxu0 0.0
    %1630 = vmatpush1.msra.mxu0 %v1595
    %1631 = vmatprep.subr.mxu0 0.0
    %1632 = vmatpush1.msra.mxu0 %v1596
    %1633 = vmatprep.subr.mxu0 0.0
    %1634 = vmatpush1.msra.mxu0 %v1597
    %1635 = vmatprep.subr.mxu0 0.0
    %1636 = vmatpush1.msra.mxu0 %v1598
    %1637 = vmatprep.subr.mxu0 0.0
    %1638 = vmatpush1.msra.mxu0 %v1599
    %1639 = vmatprep.subr.mxu0 0.0
    %1640 = vmatpush1.msra.mxu0 %v1600
    %1641 = vmatprep.subr.mxu0 0.0
    %1642 = vmatpush1.msra.mxu0 %v1601
    %1643 = vmatprep.subr.mxu0 0.0
    %1644 = vmatpush1.msra.mxu0 %v1602
    %1645 = vmatprep.subr.mxu0 0.0
    %1646 = vmatpush1.msra.mxu0 %v1603
    %1647 = vmatprep.subr.mxu0 0.0
    %1648 = vmatpush1.msra.mxu0 %v1604
    %1649 = vmatprep.subr.mxu0 0.0
    %1650 = vmatpush1.msra.mxu0 %v1605
    %1651 = vmatprep.subr.mxu0 0.0
    %1652 = vmatpush1.msra.mxu0 %v1606
    %1653 = vmatprep.subr.mxu0 0.0
    %1654 = vmatpush1.msra.mxu0 %v1607
    %1655 = vmatprep.subr.mxu0 0.0
    %1656 = vmatpush1.msra.mxu0 %v1608
    %1657 = vmatprep.subr.mxu0 0.0
    %1658 = vmatpush1.msra.mxu0 %v1609
    %1659 = vmatprep.subr.mxu0 0.0
    %1660 = vmatpush1.msra.mxu0 %v1610
    %1661 = vmatprep.subr.mxu0 0.0
    %1662 = vmatpush1.msra.mxu0 %v1611
    %1663 = vmatprep.subr.mxu0 0.0
    %1664 = vmatpush1.msra.mxu0 %v1612
    %1665 = vmatprep.subr.mxu0 0.0
    %1666 = vmatpush1.msra.mxu0 %v1613
    %1667 = vmatprep.subr.mxu0 0.0
    %1668 = vmatpush1.msra.mxu0 %v1614
    %1669 = vmatprep.subr.mxu0 0.0
    %1670 = vmatpush1.msra.mxu0 %v1615
    %1671 = vmatprep.subr.mxu0 0.0
    %1672 = vmatpush1.msra.mxu0 %v1616
    %1673 = vmatprep.subr.mxu0 0.0
    %1674 = vmatpush1.msra.mxu0 %v1617
    %1675 = vmatprep.subr.mxu0 0.0
    %1676 = vmatpush1.msra.mxu0 %v1618
    %1677 = vmatprep.subr.mxu0 0.0
    %1678 = vmatpush1.msra.mxu0 %v1619
    %1679 = vmatprep.subr.mxu0 0.0
    %1680 = vmatpush1.msra.mxu0 %v1620
    %1681 = vmatprep.subr.mxu0 0.0
    %1682 = vmatpush1.msra.mxu0 %v1621
    %1683 = vmatprep.subr.mxu0 0.0
    %1684 = vmatpush1.msra.mxu0 %v1622
    %1685 = vmatprep.subr.mxu0 0.0
    %1686 = vmatpush1.msra.mxu0 %v1623
    %1687 = vmatprep.subr.mxu0 0.0
    %1688 = vmatpush1.msra.mxu0 %v1624
    %1689 = vmatprep.mubr.f32.mxu0 %v1268
    %1690 = vmatmul.mubr.f32.gmra.mrb[0].mxu0 %v1592
    %v1691 = vpop.f32.mrb[0].mxu0
    %v1692 = vadd.f32 %v223, %v1691
    %v1693 = vpop.f32.mrb[0].mxu0
    %1694 = vdwg.mxu0
    %v1695 = vmul.f32 %v298, %v1257
    %v1696 = vmul.f32 %v303, %v1268
    %v1697 = vadd.f32 %v1695, %v1696
    %v1698 = vmul.f32 %v1697, 1.8
    %v1699 = vadd.f32 %v1698, 0.01
    %v1700 = vmul.f32 %v1264, %v311
    %v1701 = vmul.f32 %v316, %v1692
    %v1702 = vadd.f32 %v1700, %v1701
    %v1703 = vmul.f32 %v1699, %v1268
    %v1704 = vsub.f32 %v1702, %v1703
    %v1705 = vsub.f32 %v1704, %v1699
    %vm1706 = vcmp.gt.f32.partialorder %v1705, 0.0
    %v1707 = vsel %vm1706, 1, 0
    %v1708 = vcvt.s32.f32 %v1707
    %v1709 = vld [vmem:[#allocation7] sm:$0xff]
    %v1710 = vld [vmem:[#allocation7 + $0x8] sm:$0xff]
    %v1711 = vld [vmem:[#allocation7 + $0x10] sm:$0xff]
    %v1712 = vld [vmem:[#allocation7 + $0x18] sm:$0xff]
    %v1713 = vld [vmem:[#allocation7 + $0x20] sm:$0xff]
    %v1714 = vld [vmem:[#allocation7 + $0x28] sm:$0xff]
    %v1715 = vld [vmem:[#allocation7 + $0x30] sm:$0xff]
    %v1716 = vld [vmem:[#allocation7 + $0x38] sm:$0xff]
    %v1717 = vld [vmem:[#allocation7 + $0x40] sm:$0xff]
    %v1718 = vld [vmem:[#allocation7 + $0x48] sm:$0xff]
    %v1719 = vld [vmem:[#allocation7 + $0x50] sm:$0xff]
    %v1720 = vld [vmem:[#allocation7 + $0x58] sm:$0xff]
    %v1721 = vld [vmem:[#allocation7 + $0x60] sm:$0xff]
    %v1722 = vld [vmem:[#allocation7 + $0x68] sm:$0xff]
    %v1723 = vld [vmem:[#allocation7 + $0x70] sm:$0xff]
    %v1724 = vld [vmem:[#allocation7 + $0x78] sm:$0xff]
    %v1725 = vld [vmem:[#allocation7 + $0x80] sm:$0xff]
    %v1726 = vld [vmem:[#allocation7 + $0x88] sm:$0xff]
    %v1727 = vld [vmem:[#allocation7 + $0x90] sm:$0xff]
    %v1728 = vld [vmem:[#allocation7 + $0x98] sm:$0xff]
    %v1729 = vld [vmem:[#allocation7 + $0xa0] sm:$0xff]
    %v1730 = vld [vmem:[#allocation7 + $0xa8] sm:$0xff]
    %v1731 = vld [vmem:[#allocation7 + $0xb0] sm:$0xff]
    %v1732 = vld [vmem:[#allocation7 + $0xb8] sm:$0xff]
    %v1733 = vld [vmem:[#allocation7 + $0xc0] sm:$0xff]
    %v1734 = vld [vmem:[#allocation7 + $0xc8] sm:$0xff]
    %v1735 = vld [vmem:[#allocation7 + $0xd0] sm:$0xff]
    %v1736 = vld [vmem:[#allocation7 + $0xd8] sm:$0xff]
    %v1737 = vld [vmem:[#allocation7 + $0xe0] sm:$0xff]
    %v1738 = vld [vmem:[#allocation7 + $0xe8] sm:$0xff]
    %v1739 = vld [vmem:[#allocation7 + $0xf0] sm:$0xff]
    %v1740 = vld [vmem:[#allocation7 + $0xf8] sm:$0xff]
    %1741 = vmatprep.subr.mxu0 0.0
    %1742 = vmatpush1.msra.mxu0 %v1709
    %1743 = vmatprep.subr.mxu0 0.0
    %1744 = vmatpush1.msra.mxu0 %v1710
    %1745 = vmatprep.subr.mxu0 0.0
    %1746 = vmatpush1.msra.mxu0 %v1711
    %1747 = vmatprep.subr.mxu0 0.0
    %1748 = vmatpush1.msra.mxu0 %v1712
    %1749 = vmatprep.subr.mxu0 0.0
    %1750 = vmatpush1.msra.mxu0 %v1713
    %1751 = vmatprep.subr.mxu0 0.0
    %1752 = vmatpush1.msra.mxu0 %v1714
    %1753 = vmatprep.subr.mxu0 0.0
    %1754 = vmatpush1.msra.mxu0 %v1715
    %1755 = vmatprep.subr.mxu0 0.0
    %1756 = vmatpush1.msra.mxu0 %v1716
    %1757 = vmatprep.subr.mxu0 0.0
    %1758 = vmatpush1.msra.mxu0 %v1717
    %1759 = vmatprep.subr.mxu0 0.0
    %1760 = vmatpush1.msra.mxu0 %v1718
    %1761 = vmatprep.subr.mxu0 0.0
    %1762 = vmatpush1.msra.mxu0 %v1719
    %1763 = vmatprep.subr.mxu0 0.0
    %1764 = vmatpush1.msra.mxu0 %v1720
    %1765 = vmatprep.subr.mxu0 0.0
    %1766 = vmatpush1.msra.mxu0 %v1721
    %1767 = vmatprep.subr.mxu0 0.0
    %1768 = vmatpush1.msra.mxu0 %v1722
    %1769 = vmatprep.subr.mxu0 0.0
    %1770 = vmatpush1.msra.mxu0 %v1723
    %1771 = vmatprep.subr.mxu0 0.0
    %1772 = vmatpush1.msra.mxu0 %v1724
    %1773 = vmatprep.subr.mxu0 0.0
    %1774 = vmatpush1.msra.mxu0 %v1725
    %1775 = vmatprep.subr.mxu0 0.0
    %1776 = vmatpush1.msra.mxu0 %v1726
    %1777 = vmatprep.subr.mxu0 0.0
    %1778 = vmatpush1.msra.mxu0 %v1727
    %1779 = vmatprep.subr.mxu0 0.0
    %1780 = vmatpush1.msra.mxu0 %v1728
    %1781 = vmatprep.subr.mxu0 0.0
    %1782 = vmatpush1.msra.mxu0 %v1729
    %1783 = vmatprep.subr.mxu0 0.0
    %1784 = vmatpush1.msra.mxu0 %v1730
    %1785 = vmatprep.subr.mxu0 0.0
    %1786 = vmatpush1.msra.mxu0 %v1731
    %1787 = vmatprep.subr.mxu0 0.0
    %1788 = vmatpush1.msra.mxu0 %v1732
    %1789 = vmatprep.subr.mxu0 0.0
    %1790 = vmatpush1.msra.mxu0 %v1733
    %1791 = vmatprep.subr.mxu0 0.0
    %1792 = vmatpush1.msra.mxu0 %v1734
    %1793 = vmatprep.subr.mxu0 0.0
    %1794 = vmatpush1.msra.mxu0 %v1735
    %1795 = vmatprep.subr.mxu0 0.0
    %1796 = vmatpush1.msra.mxu0 %v1736
    %1797 = vmatprep.subr.mxu0 0.0
    %1798 = vmatpush1.msra.mxu0 %v1737
    %1799 = vmatprep.subr.mxu0 0.0
    %1800 = vmatpush1.msra.mxu0 %v1738
    %1801 = vmatprep.subr.mxu0 0.0
    %1802 = vmatpush1.msra.mxu0 %v1739
    %1803 = vmatprep.subr.mxu0 0.0
    %1804 = vmatpush1.msra.mxu0 %v1740
    %1805 = vmatprep.mubr.f32.mxu0 %v1384
    %1806 = vmatmul.mubr.f32.gmra.mrb[0].mxu0 %v1708
    %v1807 = vpop.f32.mrb[0].mxu0
    %v1808 = vadd.f32 %v361, %v1807
    %v1809 = vpop.f32.mrb[0].mxu0
    %1810 = vdwg.mxu0
    %v1811 = vmul.f32 %v436, %v1373
    %v1812 = vmul.f32 %v441, %v1384
    %v1813 = vadd.f32 %v1811, %v1812
    %v1814 = vmul.f32 %v1813, 1.8
    %v1815 = vadd.f32 %v1814, 0.01
    %v1816 = vmul.f32 %v1380, %v449
    %v1817 = vmul.f32 %v454, %v1808
    %v1818 = vadd.f32 %v1816, %v1817
    %v1819 = vmul.f32 %v1815, %v1384
    %v1820 = vsub.f32 %v1818, %v1819
    %v1821 = vsub.f32 %v1820, %v1815
    %vm1822 = vcmp.gt.f32.partialorder %v1821, 0.0
    %v1823 = vsel %vm1822, 1, 0
    %v1824 = vcvt.s32.f32 %v1823
    %v1825 = vld [vmem:[#allocation10] sm:$0xff]
    %v1826 = vld [vmem:[#allocation10 + $0x8] sm:$0xff]
    %v1827 = vld [vmem:[#allocation10 + $0x10] sm:$0xff]
    %v1828 = vld [vmem:[#allocation10 + $0x18] sm:$0xff]
    %v1829 = vld [vmem:[#allocation10 + $0x20] sm:$0xff]
    %v1830 = vld [vmem:[#allocation10 + $0x28] sm:$0xff]
    %v1831 = vld [vmem:[#allocation10 + $0x30] sm:$0xff]
    %v1832 = vld [vmem:[#allocation10 + $0x38] sm:$0xff]
    %v1833 = vld [vmem:[#allocation10 + $0x40] sm:$0xff]
    %v1834 = vld [vmem:[#allocation10 + $0x48] sm:$0xff]
    %v1835 = vld [vmem:[#allocation10 + $0x50] sm:$0xff]
    %v1836 = vld [vmem:[#allocation10 + $0x58] sm:$0xff]
    %v1837 = vld [vmem:[#allocation10 + $0x60] sm:$0xff]
    %v1838 = vld [vmem:[#allocation10 + $0x68] sm:$0xff]
    %v1839 = vld [vmem:[#allocation10 + $0x70] sm:$0xff]
    %v1840 = vld [vmem:[#allocation10 + $0x78] sm:$0xff]
    %1841 = vmatprep.subr.mxu0 0.0
    %1842 = vmatpush1.msra.mxu0 %v1825
    %1843 = vmatprep.subr.mxu0 0.0
    %1844 = vmatpush1.msra.mxu0 %v1826
    %1845 = vmatprep.subr.mxu0 0.0
    %1846 = vmatpush1.msra.mxu0 %v1827
    %1847 = vmatprep.subr.mxu0 0.0
    %1848 = vmatpush1.msra.mxu0 %v1828
    %1849 = vmatprep.subr.mxu0 0.0
    %1850 = vmatpush1.msra.mxu0 %v1829
    %1851 = vmatprep.subr.mxu0 0.0
    %1852 = vmatpush1.msra.mxu0 %v1830
    %1853 = vmatprep.subr.mxu0 0.0
    %1854 = vmatpush1.msra.mxu0 %v1831
    %1855 = vmatprep.subr.mxu0 0.0
    %1856 = vmatpush1.msra.mxu0 %v1832
    %1857 = vmatprep.subr.mxu0 0.0
    %1858 = vmatpush1.msra.mxu0 %v1833
    %1859 = vmatprep.subr.mxu0 0.0
    %1860 = vmatpush1.msra.mxu0 %v1834
    %1861 = vmatprep.subr.mxu0 0.0
    %1862 = vmatpush1.msra.mxu0 %v1835
    %1863 = vmatprep.subr.mxu0 0.0
    %1864 = vmatpush1.msra.mxu0 %v1836
    %1865 = vmatprep.subr.mxu0 0.0
    %1866 = vmatpush1.msra.mxu0 %v1837
    %1867 = vmatprep.subr.mxu0 0.0
    %1868 = vmatpush1.msra.mxu0 %v1838
    %1869 = vmatprep.subr.mxu0 0.0
    %1870 = vmatpush1.msra.mxu0 %v1839
    %1871 = vmatprep.subr.mxu0 0.0
    %1872 = vmatpush1.msra.mxu0 %v1840
    %1873 = vmatprep.subr.mxu0 0.0
    %1874 = vmatpush1.msra.mxu0 0.0
    %1875 = vmatprep.subr.mxu0 0.0
    %1876 = vmatpush1.msra.mxu0 0.0
    %1877 = vmatprep.subr.mxu0 0.0
    %1878 = vmatpush1.msra.mxu0 0.0
    %1879 = vmatprep.subr.mxu0 0.0
    %1880 = vmatpush1.msra.mxu0 0.0
    %1881 = vmatprep.subr.mxu0 0.0
    %1882 = vmatpush1.msra.mxu0 0.0
    %1883 = vmatprep.subr.mxu0 0.0
    %1884 = vmatpush1.msra.mxu0 0.0
    %1885 = vmatprep.subr.mxu0 0.0
    %1886 = vmatpush1.msra.mxu0 0.0
    %1887 = vmatprep.subr.mxu0 0.0
    %1888 = vmatpush1.msra.mxu0 0.0
    %1889 = vmatprep.subr.mxu0 0.0
    %1890 = vmatpush1.msra.mxu0 0.0
    %1891 = vmatprep.subr.mxu0 0.0
    %1892 = vmatpush1.msra.mxu0 0.0
    %1893 = vmatprep.subr.mxu0 0.0
    %1894 = vmatpush1.msra.mxu0 0.0
    %1895 = vmatprep.subr.mxu0 0.0
    %1896 = vmatpush1.msra.mxu0 0.0
    %1897 = vmatprep.subr.mxu0 0.0
    %1898 = vmatpush1.msra.mxu0 0.0
    %1899 = vmatprep.subr.mxu0 0.0
    %1900 = vmatpush1.msra.mxu0 0.0
    %1901 = vmatprep.subr.mxu0 0.0
    %1902 = vmatpush1.msra.mxu0 0.0
    %1903 = vmatprep.subr.mxu0 0.0
    %1904 = vmatpush1.msra.mxu0 0.0
    %1905 = vmatprep.mubr.f32.mxu0 0.0
    %1906 = vmatmul.mubr.f32.gmra.mrb[0].mxu0 %v1824
    %v1907 = vpop.f32.mrb[0].mxu0
    %v1908 = vadd.f32 %v483, %v1907
    %v1909 = vpop.f32.mrb[0].mxu0
    %1910 = vdwg.mxu0
    %v1911 = vmul.f32 %v558, %v1473
    %v1912 = vmul.f32 %v563, %v1484
    %v1913 = vadd.f32 %v1911, %v1912
    %v1914 = vmul.f32 %v1913, 1.8
    %v1915 = vadd.f32 %v1914, 0.01
    %v1916 = vmul.f32 %v1480, %v571
    %v1917 = vmul.f32 %v576, %v1908
    %v1918 = vadd.f32 %v1916, %v1917
    %v1919 = vmul.f32 %v1915, %v1484
    %v1920 = vsub.f32 %v1918, %v1919
    %v1921 = vsub.f32 %v1920, %v1915
    %vm1922 = vcmp.gt.f32.partialorder %v1921, 0.0
    %v1923 = vsel %vm1922, 1, 0
    %v1924 = vcvt.s32.f32 %v1923
    %v1925 = vld [vmem:[#allocation13] sm:$0xff]
    %v1926 = vld [vmem:[#allocation13 + $0x8] sm:$0xff]
    %v1927 = vld [vmem:[#allocation13 + $0x10] sm:$0xff]
    %v1928 = vld [vmem:[#allocation13 + $0x18] sm:$0xff]
    %v1929 = vld [vmem:[#allocation13 + $0x20] sm:$0xff]
    %v1930 = vld [vmem:[#allocation13 + $0x28] sm:$0xff]
    %v1931 = vld [vmem:[#allocation13 + $0x30] sm:$0xff]
    %v1932 = vld [vmem:[#allocation13 + $0x38] sm:$0xff]
    %v1933 = vld [vmem:[#allocation13 + $0x40] sm:$0xff]
    %v1934 = vld [vmem:[#allocation13 + $0x48] sm:$0xff]
    %v1935 = vld [vmem:[#allocation13 + $0x50] sm:$0xff]
    %v1936 = vld [vmem:[#allocation13 + $0x58] sm:$0xff]
    %v1937 = vld [vmem:[#allocation13 + $0x60] sm:$0xff]
    %v1938 = vld [vmem:[#allocation13 + $0x68] sm:$0xff]
    %v1939 = vld [vmem:[#allocation13 + $0x70] sm:$0xff]
    %v1940 = vld [vmem:[#allocation13 + $0x78] sm:$0xff]
    %1941 = vmatprep.subr.mxu0 0.0
    %1942 = vmatpush1.msra.mxu0 %v1925
    %1943 = vmatprep.subr.mxu0 0.0
    %1944 = vmatpush1.msra.mxu0 %v1926
    %1945 = vmatprep.subr.mxu0 0.0
    %1946 = vmatpush1.msra.mxu0 %v1927
    %1947 = vmatprep.subr.mxu0 0.0
    %1948 = vmatpush1.msra.mxu0 %v1928
    %1949 = vmatprep.subr.mxu0 0.0
    %1950 = vmatpush1.msra.mxu0 %v1929
    %1951 = vmatprep.subr.mxu0 0.0
    %1952 = vmatpush1.msra.mxu0 %v1930
    %1953 = vmatprep.subr.mxu0 0.0
    %1954 = vmatpush1.msra.mxu0 %v1931
    %1955 = vmatprep.subr.mxu0 0.0
    %1956 = vmatpush1.msra.mxu0 %v1932
    %1957 = vmatprep.subr.mxu0 0.0
    %1958 = vmatpush1.msra.mxu0 %v1933
    %1959 = vmatprep.subr.mxu0 0.0
    %1960 = vmatpush1.msra.mxu0 %v1934
    %1961 = vmatprep.subr.mxu0 0.0
    %1962 = vmatpush1.msra.mxu0 %v1935
    %1963 = vmatprep.subr.mxu0 0.0
    %1964 = vmatpush1.msra.mxu0 %v1936
    %1965 = vmatprep.subr.mxu0 0.0
    %1966 = vmatpush1.msra.mxu0 %v1937
    %1967 = vmatprep.subr.mxu0 0.0
    %1968 = vmatpush1.msra.mxu0 %v1938
    %1969 = vmatprep.subr.mxu0 0.0
    %1970 = vmatpush1.msra.mxu0 %v1939
    %1971 = vmatprep.subr.mxu0 0.0
    %1972 = vmatpush1.msra.mxu0 %v1940
    %1973 = vmatprep.subr.mxu0 0.0
    %1974 = vmatpush1.msra.mxu0 0.0
    %1975 = vmatprep.subr.mxu0 0.0
    %1976 = vmatpush1.msra.mxu0 0.0
    %1977 = vmatprep.subr.mxu0 0.0
    %1978 = vmatpush1.msra.mxu0 0.0
    %1979 = vmatprep.subr.mxu0 0.0
    %1980 = vmatpush1.msra.mxu0 0.0
    %1981 = vmatprep.subr.mxu0 0.0
    %1982 = vmatpush1.msra.mxu0 0.0
    %1983 = vmatprep.subr.mxu0 0.0
    %1984 = vmatpush1.msra.mxu0 0.0
    %1985 = vmatprep.subr.mxu0 0.0
    %1986 = vmatpush1.msra.mxu0 0.0
    %1987 = vmatprep.subr.mxu0 0.0
    %1988 = vmatpush1.msra.mxu0 0.0
    %1989 = vmatprep.subr.mxu0 0.0
    %1990 = vmatpush1.msra.mxu0 0.0
    %1991 = vmatprep.subr.mxu0 0.0
    %1992 = vmatpush1.msra.mxu0 0.0
    %1993 = vmatprep.subr.mxu0 0.0
    %1994 = vmatpush1.msra.mxu0 0.0
    %1995 = vmatprep.subr.mxu0 0.0
    %1996 = vmatpush1.msra.mxu0 0.0
    %1997 = vmatprep.subr.mxu0 0.0
    %1998 = vmatpush1.msra.mxu0 0.0
    %1999 = vmatprep.subr.mxu0 0.0
    %2000 = vmatpush1.msra.mxu0 0.0
    %2001 = vmatprep.subr.mxu0 0.0
    %2002 = vmatpush1.msra.mxu0 0.0
    %2003 = vmatprep.subr.mxu0 0.0
    %2004 = vmatpush1.msra.mxu0 0.0
    %2005 = vmatprep.mubr.f32.mxu0 0.0
    %2006 = vmatmul.mubr.f32.gmra.mrb[0].mxu0 %v1924
    %v2007 = vpop.f32.mrb[0].mxu0
    %v2008 = vadd.f32 %v605, %v2007
    %v2009 = vpop.f32.mrb[0].mxu0
    %2010 = vdwg.mxu0
    %v2011 = vmul.f32 %v680, %v1573
    %v2012 = vmul.f32 %v685, %v1584
    %v2013 = vadd.f32 %v2011, %v2012
    %v2014 = vmul.f32 %v2013, 1.8
    %v2015 = vadd.f32 %v2014, 0.01
    %v2016 = vmul.f32 %v1580, %v693
    %v2017 = vmul.f32 %v698, %v2008
    %v2018 = vadd.f32 %v2016, %v2017
    %v2019 = vmul.f32 %v2015, %v1584
    %v2020 = vsub.f32 %v2018, %v2019
    %v2021 = vsub.f32 %v2020, %v2015
    %vm2022 = vcmp.gt.f32.partialorder %v2021, 0.0
    %v2023 = vsel %vm2022, 1, 0
    %v2024 = vcvt.s32.f32 %v2023
    %v2025 = vadd.f32 %v1585, %v2024
    %s2026 = scalar_lea.vmem [#allocation18], 96
    %2027 = vst [vmem:[%s2026] sm:$0xff] %v1708
    %2028 = vst [vmem:[%s2026 + $0x8] sm:$0xff] %v1824
    %2029 = vst [vmem:[%s2026 + $0x10] sm:$0xff] %v1924
    %2030 = vst [vmem:[%s2026 + $0x18] sm:$0xff] %v2024
    %s2031 = scalar_lea.vmem [#allocation2], 32
    %v2032 = vld [vmem:[%s2031] sm:$0xff]
    %v2033 = vld [vmem:[#allocation5] sm:$0xff]
    %v2034 = vld [vmem:[#allocation5 + $0x8] sm:$0xff]
    %v2035 = vld [vmem:[#allocation5 + $0x10] sm:$0xff]
    %v2036 = vld [vmem:[#allocation5 + $0x18] sm:$0xff]
    %v2037 = vld [vmem:[#allocation5 + $0x20] sm:$0xff]
    %v2038 = vld [vmem:[#allocation5 + $0x28] sm:$0xff]
    %v2039 = vld [vmem:[#allocation5 + $0x30] sm:$0xff]
    %v2040 = vld [vmem:[#allocation5 + $0x38] sm:$0xff]
    %v2041 = vld [vmem:[#allocation5 + $0x40] sm:$0xff]
    %v2042 = vld [vmem:[#allocation5 + $0x48] sm:$0xff]
    %v2043 = vld [vmem:[#allocation5 + $0x50] sm:$0xff]
    %v2044 = vld [vmem:[#allocation5 + $0x58] sm:$0xff]
    %v2045 = vld [vmem:[#allocation5 + $0x60] sm:$0xff]
    %v2046 = vld [vmem:[#allocation5 + $0x68] sm:$0xff]
    %v2047 = vld [vmem:[#allocation5 + $0x70] sm:$0xff]
    %v2048 = vld [vmem:[#allocation5 + $0x78] sm:$0xff]
    %v2049 = vld [vmem:[#allocation5 + $0x80] sm:$0xff]
    %v2050 = vld [vmem:[#allocation5 + $0x88] sm:$0xff]
    %v2051 = vld [vmem:[#allocation5 + $0x90] sm:$0xff]
    %v2052 = vld [vmem:[#allocation5 + $0x98] sm:$0xff]
    %v2053 = vld [vmem:[#allocation5 + $0xa0] sm:$0xff]
    %v2054 = vld [vmem:[#allocation5 + $0xa8] sm:$0xff]
    %v2055 = vld [vmem:[#allocation5 + $0xb0] sm:$0xff]
    %v2056 = vld [vmem:[#allocation5 + $0xb8] sm:$0xff]
    %v2057 = vld [vmem:[#allocation5 + $0xc0] sm:$0xff]
    %v2058 = vld [vmem:[#allocation5 + $0xc8] sm:$0xff]
    %v2059 = vld [vmem:[#allocation5 + $0xd0] sm:$0xff]
    %v2060 = vld [vmem:[#allocation5 + $0xd8] sm:$0xff]
    %v2061 = vld [vmem:[#allocation5 + $0xe0] sm:$0xff]
    %v2062 = vld [vmem:[#allocation5 + $0xe8] sm:$0xff]
    %v2063 = vld [vmem:[#allocation5 + $0xf0] sm:$0xff]
    %v2064 = vld [vmem:[#allocation5 + $0xf8] sm:$0xff]
    %2065 = vmatprep.subr.mxu0 0.0
    %2066 = vmatpush1.msra.mxu0 %v2033
    %2067 = vmatprep.subr.mxu0 0.0
    %2068 = vmatpush1.msra.mxu0 %v2034
    %2069 = vmatprep.subr.mxu0 0.0
    %2070 = vmatpush1.msra.mxu0 %v2035
    %2071 = vmatprep.subr.mxu0 0.0
    %2072 = vmatpush1.msra.mxu0 %v2036
    %2073 = vmatprep.subr.mxu0 0.0
    %2074 = vmatpush1.msra.mxu0 %v2037
    %2075 = vmatprep.subr.mxu0 0.0
    %2076 = vmatpush1.msra.mxu0 %v2038
    %2077 = vmatprep.subr.mxu0 0.0
    %2078 = vmatpush1.msra.mxu0 %v2039
    %2079 = vmatprep.subr.mxu0 0.0
    %2080 = vmatpush1.msra.mxu0 %v2040
    %2081 = vmatprep.subr.mxu0 0.0
    %2082 = vmatpush1.msra.mxu0 %v2041
    %2083 = vmatprep.subr.mxu0 0.0
    %2084 = vmatpush1.msra.mxu0 %v2042
    %2085 = vmatprep.subr.mxu0 0.0
    %2086 = vmatpush1.msra.mxu0 %v2043
    %2087 = vmatprep.subr.mxu0 0.0
    %2088 = vmatpush1.msra.mxu0 %v2044
    %2089 = vmatprep.subr.mxu0 0.0
    %2090 = vmatpush1.msra.mxu0 %v2045
    %2091 = vmatprep.subr.mxu0 0.0
    %2092 = vmatpush1.msra.mxu0 %v2046
    %2093 = vmatprep.subr.mxu0 0.0
    %2094 = vmatpush1.msra.mxu0 %v2047
    %2095 = vmatprep.subr.mxu0 0.0
    %2096 = vmatpush1.msra.mxu0 %v2048
    %2097 = vmatprep.subr.mxu0 0.0
    %2098 = vmatpush1.msra.mxu0 %v2049
    %2099 = vmatprep.subr.mxu0 0.0
    %2100 = vmatpush1.msra.mxu0 %v2050
    %2101 = vmatprep.subr.mxu0 0.0
    %2102 = vmatpush1.msra.mxu0 %v2051
    %2103 = vmatprep.subr.mxu0 0.0
    %2104 = vmatpush1.msra.mxu0 %v2052
    %2105 = vmatprep.subr.mxu0 0.0
    %2106 = vmatpush1.msra.mxu0 %v2053
    %2107 = vmatprep.subr.mxu0 0.0
    %2108 = vmatpush1.msra.mxu0 %v2054
    %2109 = vmatprep.subr.mxu0 0.0
    %2110 = vmatpush1.msra.mxu0 %v2055
    %2111 = vmatprep.subr.mxu0 0.0
    %2112 = vmatpush1.msra.mxu0 %v2056
    %2113 = vmatprep.subr.mxu0 0.0
    %2114 = vmatpush1.msra.mxu0 %v2057
    %2115 = vmatprep.subr.mxu0 0.0
    %2116 = vmatpush1.msra.mxu0 %v2058
    %2117 = vmatprep.subr.mxu0 0.0
    %2118 = vmatpush1.msra.mxu0 %v2059
    %2119 = vmatprep.subr.mxu0 0.0
    %2120 = vmatpush1.msra.mxu0 %v2060
    %2121 = vmatprep.subr.mxu0 0.0
    %2122 = vmatpush1.msra.mxu0 %v2061
    %2123 = vmatprep.subr.mxu0 0.0
    %2124 = vmatpush1.msra.mxu0 %v2062
    %2125 = vmatprep.subr.mxu0 0.0
    %2126 = vmatpush1.msra.mxu0 %v2063
    %2127 = vmatprep.subr.mxu0 0.0
    %2128 = vmatpush1.msra.mxu0 %v2064
    %2129 = vmatprep.mubr.f32.mxu0 %v1708
    %2130 = vmatmul.mubr.f32.gmra.mrb[0].mxu0 %v2032
    %v2131 = vpop.f32.mrb[0].mxu0
    %v2132 = vadd.f32 %v223, %v2131
    %v2133 = vpop.f32.mrb[0].mxu0
    %2134 = vdwg.mxu0
    %v2135 = vmul.f32 %v298, %v1697
    %v2136 = vmul.f32 %v303, %v1708
    %v2137 = vadd.f32 %v2135, %v2136
    %v2138 = vmul.f32 %v2137, 1.8
    %v2139 = vadd.f32 %v2138, 0.01
    %v2140 = vmul.f32 %v1704, %v311
    %v2141 = vmul.f32 %v316, %v2132
    %v2142 = vadd.f32 %v2140, %v2141
    %v2143 = vmul.f32 %v2139, %v1708
    %v2144 = vsub.f32 %v2142, %v2143
    %v2145 = vsub.f32 %v2144, %v2139
    %vm2146 = vcmp.gt.f32.partialorder %v2145, 0.0
    %v2147 = vsel %vm2146, 1, 0
    %v2148 = vcvt.s32.f32 %v2147
    %v2149 = vld [vmem:[#allocation7] sm:$0xff]
    %v2150 = vld [vmem:[#allocation7 + $0x8] sm:$0xff]
    %v2151 = vld [vmem:[#allocation7 + $0x10] sm:$0xff]
    %v2152 = vld [vmem:[#allocation7 + $0x18] sm:$0xff]
    %v2153 = vld [vmem:[#allocation7 + $0x20] sm:$0xff]
    %v2154 = vld [vmem:[#allocation7 + $0x28] sm:$0xff]
    %v2155 = vld [vmem:[#allocation7 + $0x30] sm:$0xff]
    %v2156 = vld [vmem:[#allocation7 + $0x38] sm:$0xff]
    %v2157 = vld [vmem:[#allocation7 + $0x40] sm:$0xff]
    %v2158 = vld [vmem:[#allocation7 + $0x48] sm:$0xff]
    %v2159 = vld [vmem:[#allocation7 + $0x50] sm:$0xff]
    %v2160 = vld [vmem:[#allocation7 + $0x58] sm:$0xff]
    %v2161 = vld [vmem:[#allocation7 + $0x60] sm:$0xff]
    %v2162 = vld [vmem:[#allocation7 + $0x68] sm:$0xff]
    %v2163 = vld [vmem:[#allocation7 + $0x70] sm:$0xff]
    %v2164 = vld [vmem:[#allocation7 + $0x78] sm:$0xff]
    %v2165 = vld [vmem:[#allocation7 + $0x80] sm:$0xff]
    %v2166 = vld [vmem:[#allocation7 + $0x88] sm:$0xff]
    %v2167 = vld [vmem:[#allocation7 + $0x90] sm:$0xff]
    %v2168 = vld [vmem:[#allocation7 + $0x98] sm:$0xff]
    %v2169 = vld [vmem:[#allocation7 + $0xa0] sm:$0xff]
    %v2170 = vld [vmem:[#allocation7 + $0xa8] sm:$0xff]
    %v2171 = vld [vmem:[#allocation7 + $0xb0] sm:$0xff]
    %v2172 = vld [vmem:[#allocation7 + $0xb8] sm:$0xff]
    %v2173 = vld [vmem:[#allocation7 + $0xc0] sm:$0xff]
    %v2174 = vld [vmem:[#allocation7 + $0xc8] sm:$0xff]
    %v2175 = vld [vmem:[#allocation7 + $0xd0] sm:$0xff]
    %v2176 = vld [vmem:[#allocation7 + $0xd8] sm:$0xff]
    %v2177 = vld [vmem:[#allocation7 + $0xe0] sm:$0xff]
    %v2178 = vld [vmem:[#allocation7 + $0xe8] sm:$0xff]
    %v2179 = vld [vmem:[#allocation7 + $0xf0] sm:$0xff]
    %v2180 = vld [vmem:[#allocation7 + $0xf8] sm:$0xff]
    %2181 = vmatprep.subr.mxu0 0.0
    %2182 = vmatpush1.msra.mxu0 %v2149
    %2183 = vmatprep.subr.mxu0 0.0
    %2184 = vmatpush1.msra.mxu0 %v2150
    %2185 = vmatprep.subr.mxu0 0.0
    %2186 = vmatpush1.msra.mxu0 %v2151
    %2187 = vmatprep.subr.mxu0 0.0
    %2188 = vmatpush1.msra.mxu0 %v2152
    %2189 = vmatprep.subr.mxu0 0.0
    %2190 = vmatpush1.msra.mxu0 %v2153
    %2191 = vmatprep.subr.mxu0 0.0
    %2192 = vmatpush1.msra.mxu0 %v2154
    %2193 = vmatprep.subr.mxu0 0.0
    %2194 = vmatpush1.msra.mxu0 %v2155
    %2195 = vmatprep.subr.mxu0 0.0
    %2196 = vmatpush1.msra.mxu0 %v2156
    %2197 = vmatprep.subr.mxu0 0.0
    %2198 = vmatpush1.msra.mxu0 %v2157
    %2199 = vmatprep.subr.mxu0 0.0
    %2200 = vmatpush1.msra.mxu0 %v2158
    %2201 = vmatprep.subr.mxu0 0.0
    %2202 = vmatpush1.msra.mxu0 %v2159
    %2203 = vmatprep.subr.mxu0 0.0
    %2204 = vmatpush1.msra.mxu0 %v2160
    %2205 = vmatprep.subr.mxu0 0.0
    %2206 = vmatpush1.msra.mxu0 %v2161
    %2207 = vmatprep.subr.mxu0 0.0
    %2208 = vmatpush1.msra.mxu0 %v2162
    %2209 = vmatprep.subr.mxu0 0.0
    %2210 = vmatpush1.msra.mxu0 %v2163
    %2211 = vmatprep.subr.mxu0 0.0
    %2212 = vmatpush1.msra.mxu0 %v2164
    %2213 = vmatprep.subr.mxu0 0.0
    %2214 = vmatpush1.msra.mxu0 %v2165
    %2215 = vmatprep.subr.mxu0 0.0
    %2216 = vmatpush1.msra.mxu0 %v2166
    %2217 = vmatprep.subr.mxu0 0.0
    %2218 = vmatpush1.msra.mxu0 %v2167
    %2219 = vmatprep.subr.mxu0 0.0
    %2220 = vmatpush1.msra.mxu0 %v2168
    %2221 = vmatprep.subr.mxu0 0.0
    %2222 = vmatpush1.msra.mxu0 %v2169
    %2223 = vmatprep.subr.mxu0 0.0
    %2224 = vmatpush1.msra.mxu0 %v2170
    %2225 = vmatprep.subr.mxu0 0.0
    %2226 = vmatpush1.msra.mxu0 %v2171
    %2227 = vmatprep.subr.mxu0 0.0
    %2228 = vmatpush1.msra.mxu0 %v2172
    %2229 = vmatprep.subr.mxu0 0.0
    %2230 = vmatpush1.msra.mxu0 %v2173
    %2231 = vmatprep.subr.mxu0 0.0
    %2232 = vmatpush1.msra.mxu0 %v2174
    %2233 = vmatprep.subr.mxu0 0.0
    %2234 = vmatpush1.msra.mxu0 %v2175
    %2235 = vmatprep.subr.mxu0 0.0
    %2236 = vmatpush1.msra.mxu0 %v2176
    %2237 = vmatprep.subr.mxu0 0.0
    %2238 = vmatpush1.msra.mxu0 %v2177
    %2239 = vmatprep.subr.mxu0 0.0
    %2240 = vmatpush1.msra.mxu0 %v2178
    %2241 = vmatprep.subr.mxu0 0.0
    %2242 = vmatpush1.msra.mxu0 %v2179
    %2243 = vmatprep.subr.mxu0 0.0
    %2244 = vmatpush1.msra.mxu0 %v2180
    %2245 = vmatprep.mubr.f32.mxu0 %v1824
    %2246 = vmatmul.mubr.f32.gmra.mrb[0].mxu0 %v2148
    %v2247 = vpop.f32.mrb[0].mxu0
    %v2248 = vadd.f32 %v361, %v2247
    %v2249 = vpop.f32.mrb[0].mxu0
    %2250 = vdwg.mxu0
    %v2251 = vmul.f32 %v436, %v1813
    %v2252 = vmul.f32 %v441, %v1824
    %v2253 = vadd.f32 %v2251, %v2252
    %v2254 = vmul.f32 %v2253, 1.8
    %v2255 = vadd.f32 %v2254, 0.01
    %v2256 = vmul.f32 %v1820, %v449
    %v2257 = vmul.f32 %v454, %v2248
    %v2258 = vadd.f32 %v2256, %v2257
    %v2259 = vmul.f32 %v2255, %v1824
    %v2260 = vsub.f32 %v2258, %v2259
    %v2261 = vsub.f32 %v2260, %v2255
    %vm2262 = vcmp.gt.f32.partialorder %v2261, 0.0
    %v2263 = vsel %vm2262, 1, 0
    %v2264 = vcvt.s32.f32 %v2263
    %v2265 = vld [vmem:[#allocation10] sm:$0xff]
    %v2266 = vld [vmem:[#allocation10 + $0x8] sm:$0xff]
    %v2267 = vld [vmem:[#allocation10 + $0x10] sm:$0xff]
    %v2268 = vld [vmem:[#allocation10 + $0x18] sm:$0xff]
    %v2269 = vld [vmem:[#allocation10 + $0x20] sm:$0xff]
    %v2270 = vld [vmem:[#allocation10 + $0x28] sm:$0xff]
    %v2271 = vld [vmem:[#allocation10 + $0x30] sm:$0xff]
    %v2272 = vld [vmem:[#allocation10 + $0x38] sm:$0xff]
    %v2273 = vld [vmem:[#allocation10 + $0x40] sm:$0xff]
    %v2274 = vld [vmem:[#allocation10 + $0x48] sm:$0xff]
    %v2275 = vld [vmem:[#allocation10 + $0x50] sm:$0xff]
    %v2276 = vld [vmem:[#allocation10 + $0x58] sm:$0xff]
    %v2277 = vld [vmem:[#allocation10 + $0x60] sm:$0xff]
    %v2278 = vld [vmem:[#allocation10 + $0x68] sm:$0xff]
    %v2279 = vld [vmem:[#allocation10 + $0x70] sm:$0xff]
    %v2280 = vld [vmem:[#allocation10 + $0x78] sm:$0xff]
    %2281 = vmatprep.subr.mxu0 0.0
    %2282 = vmatpush1.msra.mxu0 %v2265
    %2283 = vmatprep.subr.mxu0 0.0
    %2284 = vmatpush1.msra.mxu0 %v2266
    %2285 = vmatprep.subr.mxu0 0.0
    %2286 = vmatpush1.msra.mxu0 %v2267
    %2287 = vmatprep.subr.mxu0 0.0
    %2288 = vmatpush1.msra.mxu0 %v2268
    %2289 = vmatprep.subr.mxu0 0.0
    %2290 = vmatpush1.msra.mxu0 %v2269
    %2291 = vmatprep.subr.mxu0 0.0
    %2292 = vmatpush1.msra.mxu0 %v2270
    %2293 = vmatprep.subr.mxu0 0.0
    %2294 = vmatpush1.msra.mxu0 %v2271
    %2295 = vmatprep.subr.mxu0 0.0
    %2296 = vmatpush1.msra.mxu0 %v2272
    %2297 = vmatprep.subr.mxu0 0.0
    %2298 = vmatpush1.msra.mxu0 %v2273
    %2299 = vmatprep.subr.mxu0 0.0
    %2300 = vmatpush1.msra.mxu0 %v2274
    %2301 = vmatprep.subr.mxu0 0.0
    %2302 = vmatpush1.msra.mxu0 %v2275
    %2303 = vmatprep.subr.mxu0 0.0
    %2304 = vmatpush1.msra.mxu0 %v2276
    %2305 = vmatprep.subr.mxu0 0.0
    %2306 = vmatpush1.msra.mxu0 %v2277
    %2307 = vmatprep.subr.mxu0 0.0
    %2308 = vmatpush1.msra.mxu0 %v2278
    %2309 = vmatprep.subr.mxu0 0.0
    %2310 = vmatpush1.msra.mxu0 %v2279
    %2311 = vmatprep.subr.mxu0 0.0
    %2312 = vmatpush1.msra.mxu0 %v2280
    %2313 = vmatprep.subr.mxu0 0.0
    %2314 = vmatpush1.msra.mxu0 0.0
    %2315 = vmatprep.subr.mxu0 0.0
    %2316 = vmatpush1.msra.mxu0 0.0
    %2317 = vmatprep.subr.mxu0 0.0
    %2318 = vmatpush1.msra.mxu0 0.0
    %2319 = vmatprep.subr.mxu0 0.0
    %2320 = vmatpush1.msra.mxu0 0.0
    %2321 = vmatprep.subr.mxu0 0.0
    %2322 = vmatpush1.msra.mxu0 0.0
    %2323 = vmatprep.subr.mxu0 0.0
    %2324 = vmatpush1.msra.mxu0 0.0
    %2325 = vmatprep.subr.mxu0 0.0
    %2326 = vmatpush1.msra.mxu0 0.0
    %2327 = vmatprep.subr.mxu0 0.0
    %2328 = vmatpush1.msra.mxu0 0.0
    %2329 = vmatprep.subr.mxu0 0.0
    %2330 = vmatpush1.msra.mxu0 0.0
    %2331 = vmatprep.subr.mxu0 0.0
    %2332 = vmatpush1.msra.mxu0 0.0
    %2333 = vmatprep.subr.mxu0 0.0
    %2334 = vmatpush1.msra.mxu0 0.0
    %2335 = vmatprep.subr.mxu0 0.0
    %2336 = vmatpush1.msra.mxu0 0.0
    %2337 = vmatprep.subr.mxu0 0.0
    %2338 = vmatpush1.msra.mxu0 0.0
    %2339 = vmatprep.subr.mxu0 0.0
    %2340 = vmatpush1.msra.mxu0 0.0
    %2341 = vmatprep.subr.mxu0 0.0
    %2342 = vmatpush1.msra.mxu0 0.0
    %2343 = vmatprep.subr.mxu0 0.0
    %2344 = vmatpush1.msra.mxu0 0.0
    %2345 = vmatprep.mubr.f32.mxu0 0.0
    %2346 = vmatmul.mubr.f32.gmra.mrb[0].mxu0 %v2264
    %v2347 = vpop.f32.mrb[0].mxu0
    %v2348 = vadd.f32 %v483, %v2347
    %v2349 = vpop.f32.mrb[0].mxu0
    %2350 = vdwg.mxu0
    %v2351 = vmul.f32 %v558, %v1913
    %v2352 = vmul.f32 %v563, %v1924
    %v2353 = vadd.f32 %v2351, %v2352
    %v2354 = vmul.f32 %v2353, 1.8
    %v2355 = vadd.f32 %v2354, 0.01
    %v2356 = vmul.f32 %v1920, %v571
    %v2357 = vmul.f32 %v576, %v2348
    %v2358 = vadd.f32 %v2356, %v2357
    %v2359 = vmul.f32 %v2355, %v1924
    %v2360 = vsub.f32 %v2358, %v2359
    %v2361 = vsub.f32 %v2360, %v2355
    %vm2362 = vcmp.gt.f32.partialorder %v2361, 0.0
    %v2363 = vsel %vm2362, 1, 0
    %v2364 = vcvt.s32.f32 %v2363
    %v2365 = vld [vmem:[#allocation13] sm:$0xff]
    %v2366 = vld [vmem:[#allocation13 + $0x8] sm:$0xff]
    %v2367 = vld [vmem:[#allocation13 + $0x10] sm:$0xff]
    %v2368 = vld [vmem:[#allocation13 + $0x18] sm:$0xff]
    %v2369 = vld [vmem:[#allocation13 + $0x20] sm:$0xff]
    %v2370 = vld [vmem:[#allocation13 + $0x28] sm:$0xff]
    %v2371 = vld [vmem:[#allocation13 + $0x30] sm:$0xff]
    %v2372 = vld [vmem:[#allocation13 + $0x38] sm:$0xff]
    %v2373 = vld [vmem:[#allocation13 + $0x40] sm:$0xff]
    %v2374 = vld [vmem:[#allocation13 + $0x48] sm:$0xff]
    %v2375 = vld [vmem:[#allocation13 + $0x50] sm:$0xff]
    %v2376 = vld [vmem:[#allocation13 + $0x58] sm:$0xff]
    %v2377 = vld [vmem:[#allocation13 + $0x60] sm:$0xff]
    %v2378 = vld [vmem:[#allocation13 + $0x68] sm:$0xff]
    %v2379 = vld [vmem:[#allocation13 + $0x70] sm:$0xff]
    %v2380 = vld [vmem:[#allocation13 + $0x78] sm:$0xff]
    %2381 = vmatprep.subr.mxu0 0.0
    %2382 = vmatpush1.msra.mxu0 %v2365
    %2383 = vmatprep.subr.mxu0 0.0
    %2384 = vmatpush1.msra.mxu0 %v2366
    %2385 = vmatprep.subr.mxu0 0.0
    %2386 = vmatpush1.msra.mxu0 %v2367
    %2387 = vmatprep.subr.mxu0 0.0
    %2388 = vmatpush1.msra.mxu0 %v2368
    %2389 = vmatprep.subr.mxu0 0.0
    %2390 = vmatpush1.msra.mxu0 %v2369
    %2391 = vmatprep.subr.mxu0 0.0
    %2392 = vmatpush1.msra.mxu0 %v2370
    %2393 = vmatprep.subr.mxu0 0.0
    %2394 = vmatpush1.msra.mxu0 %v2371
    %2395 = vmatprep.subr.mxu0 0.0
    %2396 = vmatpush1.msra.mxu0 %v2372
    %2397 = vmatprep.subr.mxu0 0.0
    %2398 = vmatpush1.msra.mxu0 %v2373
    %2399 = vmatprep.subr.mxu0 0.0
    %2400 = vmatpush1.msra.mxu0 %v2374
    %2401 = vmatprep.subr.mxu0 0.0
    %2402 = vmatpush1.msra.mxu0 %v2375
    %2403 = vmatprep.subr.mxu0 0.0
    %2404 = vmatpush1.msra.mxu0 %v2376
    %2405 = vmatprep.subr.mxu0 0.0
    %2406 = vmatpush1.msra.mxu0 %v2377
    %2407 = vmatprep.subr.mxu0 0.0
    %2408 = vmatpush1.msra.mxu0 %v2378
    %2409 = vmatprep.subr.mxu0 0.0
    %2410 = vmatpush1.msra.mxu0 %v2379
    %2411 = vmatprep.subr.mxu0 0.0
    %2412 = vmatpush1.msra.mxu0 %v2380
    %2413 = vmatprep.subr.mxu0 0.0
    %2414 = vmatpush1.msra.mxu0 0.0
    %2415 = vmatprep.subr.mxu0 0.0
    %2416 = vmatpush1.msra.mxu0 0.0
    %2417 = vmatprep.subr.mxu0 0.0
    %2418 = vmatpush1.msra.mxu0 0.0
    %2419 = vmatprep.subr.mxu0 0.0
    %2420 = vmatpush1.msra.mxu0 0.0
    %2421 = vmatprep.subr.mxu0 0.0
    %2422 = vmatpush1.msra.mxu0 0.0
    %2423 = vmatprep.subr.mxu0 0.0
    %2424 = vmatpush1.msra.mxu0 0.0
    %2425 = vmatprep.subr.mxu0 0.0
    %2426 = vmatpush1.msra.mxu0 0.0
    %2427 = vmatprep.subr.mxu0 0.0
    %2428 = vmatpush1.msra.mxu0 0.0
    %2429 = vmatprep.subr.mxu0 0.0
    %2430 = vmatpush1.msra.mxu0 0.0
    %2431 = vmatprep.subr.mxu0 0.0
    %2432 = vmatpush1.msra.mxu0 0.0
    %2433 = vmatprep.subr.mxu0 0.0
    %2434 = vmatpush1.msra.mxu0 0.0
    %2435 = vmatprep.subr.mxu0 0.0
    %2436 = vmatpush1.msra.mxu0 0.0
    %2437 = vmatprep.subr.mxu0 0.0
    %2438 = vmatpush1.msra.mxu0 0.0
    %2439 = vmatprep.subr.mxu0 0.0
    %2440 = vmatpush1.msra.mxu0 0.0
    %2441 = vmatprep.subr.mxu0 0.0
    %2442 = vmatpush1.msra.mxu0 0.0
    %2443 = vmatprep.subr.mxu0 0.0
    %2444 = vmatpush1.msra.mxu0 0.0
    %2445 = vmatprep.mubr.f32.mxu0 0.0
    %2446 = vmatmul.mubr.f32.gmra.mrb[0].mxu0 %v2364
    %v2447 = vpop.f32.mrb[0].mxu0
    %v2448 = vadd.f32 %v605, %v2447
    %v2449 = vpop.f32.mrb[0].mxu0
    %2450 = vdwg.mxu0
    %v2451 = vmul.f32 %v680, %v2013
    %v2452 = vmul.f32 %v685, %v2024
    %v2453 = vadd.f32 %v2451, %v2452
    %v2454 = vmul.f32 %v2453, 1.8
    %v2455 = vadd.f32 %v2454, 0.01
    %v2456 = vmul.f32 %v2020, %v693
    %v2457 = vmul.f32 %v698, %v2448
    %v2458 = vadd.f32 %v2456, %v2457
    %v2459 = vmul.f32 %v2455, %v2024
    %v2460 = vsub.f32 %v2458, %v2459
    %v2461 = vsub.f32 %v2460, %v2455
    %vm2462 = vcmp.gt.f32.partialorder %v2461, 0.0
    %v2463 = vsel %vm2462, 1, 0
    %v2464 = vcvt.s32.f32 %v2463
    %v2465 = vadd.f32 %v2025, %v2464
    %s2466 = scalar_lea.vmem [#allocation18], 128
    %2467 = vst [vmem:[%s2466] sm:$0xff] %v2148
    %2468 = vst [vmem:[%s2466 + $0x8] sm:$0xff] %v2264
    %2469 = vst [vmem:[%s2466 + $0x10] sm:$0xff] %v2364
    %2470 = vst [vmem:[%s2466 + $0x18] sm:$0xff] %v2464
    %s2471 = scalar_lea.vmem [#allocation2], 40
    %v2472 = vld [vmem:[%s2471] sm:$0xff]
    %v2473 = vld [vmem:[#allocation5] sm:$0xff]
    %v2474 = vld [vmem:[#allocation5 + $0x8] sm:$0xff]
    %v2475 = vld [vmem:[#allocation5 + $0x10] sm:$0xff]
    %v2476 = vld [vmem:[#allocation5 + $0x18] sm:$0xff]
    %v2477 = vld [vmem:[#allocation5 + $0x20] sm:$0xff]
    %v2478 = vld [vmem:[#allocation5 + $0x28] sm:$0xff]
    %v2479 = vld [vmem:[#allocation5 + $0x30] sm:$0xff]
    %v2480 = vld [vmem:[#allocation5 + $0x38] sm:$0xff]
    %v2481 = vld [vmem:[#allocation5 + $0x40] sm:$0xff]
    %v2482 = vld [vmem:[#allocation5 + $0x48] sm:$0xff]
    %v2483 = vld [vmem:[#allocation5 + $0x50] sm:$0xff]
    %v2484 = vld [vmem:[#allocation5 + $0x58] sm:$0xff]
    %v2485 = vld [vmem:[#allocation5 + $0x60] sm:$0xff]
    %v2486 = vld [vmem:[#allocation5 + $0x68] sm:$0xff]
    %v2487 = vld [vmem:[#allocation5 + $0x70] sm:$0xff]
    %v2488 = vld [vmem:[#allocation5 + $0x78] sm:$0xff]
    %v2489 = vld [vmem:[#allocation5 + $0x80] sm:$0xff]
    %v2490 = vld [vmem:[#allocation5 + $0x88] sm:$0xff]
    %v2491 = vld [vmem:[#allocation5 + $0x90] sm:$0xff]
    %v2492 = vld [vmem:[#allocation5 + $0x98] sm:$0xff]
    %v2493 = vld [vmem:[#allocation5 + $0xa0] sm:$0xff]
    %v2494 = vld [vmem:[#allocation5 + $0xa8] sm:$0xff]
    %v2495 = vld [vmem:[#allocation5 + $0xb0] sm:$0xff]
    %v2496 = vld [vmem:[#allocation5 + $0xb8] sm:$0xff]
    %v2497 = vld [vmem:[#allocation5 + $0xc0] sm:$0xff]
    %v2498 = vld [vmem:[#allocation5 + $0xc8] sm:$0xff]
    %v2499 = vld [vmem:[#allocation5 + $0xd0] sm:$0xff]
    %v2500 = vld [vmem:[#allocation5 + $0xd8] sm:$0xff]
    %v2501 = vld [vmem:[#allocation5 + $0xe0] sm:$0xff]
    %v2502 = vld [vmem:[#allocation5 + $0xe8] sm:$0xff]
    %v2503 = vld [vmem:[#allocation5 + $0xf0] sm:$0xff]
    %v2504 = vld [vmem:[#allocation5 + $0xf8] sm:$0xff]
    %2505 = vmatprep.subr.mxu0 0.0
    %2506 = vmatpush1.msra.mxu0 %v2473
    %2507 = vmatprep.subr.mxu0 0.0
    %2508 = vmatpush1.msra.mxu0 %v2474
    %2509 = vmatprep.subr.mxu0 0.0
    %2510 = vmatpush1.msra.mxu0 %v2475
    %2511 = vmatprep.subr.mxu0 0.0
    %2512 = vmatpush1.msra.mxu0 %v2476
    %2513 = vmatprep.subr.mxu0 0.0
    %2514 = vmatpush1.msra.mxu0 %v2477
    %2515 = vmatprep.subr.mxu0 0.0
    %2516 = vmatpush1.msra.mxu0 %v2478
    %2517 = vmatprep.subr.mxu0 0.0
    %2518 = vmatpush1.msra.mxu0 %v2479
    %2519 = vmatprep.subr.mxu0 0.0
    %2520 = vmatpush1.msra.mxu0 %v2480
    %2521 = vmatprep.subr.mxu0 0.0
    %2522 = vmatpush1.msra.mxu0 %v2481
    %2523 = vmatprep.subr.mxu0 0.0
    %2524 = vmatpush1.msra.mxu0 %v2482
    %2525 = vmatprep.subr.mxu0 0.0
    %2526 = vmatpush1.msra.mxu0 %v2483
    %2527 = vmatprep.subr.mxu0 0.0
    %2528 = vmatpush1.msra.mxu0 %v2484
    %2529 = vmatprep.subr.mxu0 0.0
    %2530 = vmatpush1.msra.mxu0 %v2485
    %2531 = vmatprep.subr.mxu0 0.0
    %2532 = vmatpush1.msra.mxu0 %v2486
    %2533 = vmatprep.subr.mxu0 0.0
    %2534 = vmatpush1.msra.mxu0 %v2487
    %2535 = vmatprep.subr.mxu0 0.0
    %2536 = vmatpush1.msra.mxu0 %v2488
    %2537 = vmatprep.subr.mxu0 0.0
    %2538 = vmatpush1.msra.mxu0 %v2489
    %2539 = vmatprep.subr.mxu0 0.0
    %2540 = vmatpush1.msra.mxu0 %v2490
    %2541 = vmatprep.subr.mxu0 0.0
    %2542 = vmatpush1.msra.mxu0 %v2491
    %2543 = vmatprep.subr.mxu0 0.0
    %2544 = vmatpush1.msra.mxu0 %v2492
    %2545 = vmatprep.subr.mxu0 0.0
    %2546 = vmatpush1.msra.mxu0 %v2493
    %2547 = vmatprep.subr.mxu0 0.0
    %2548 = vmatpush1.msra.mxu0 %v2494
    %2549 = vmatprep.subr.mxu0 0.0
    %2550 = vmatpush1.msra.mxu0 %v2495
    %2551 = vmatprep.subr.mxu0 0.0
    %2552 = vmatpush1.msra.mxu0 %v2496
    %2553 = vmatprep.subr.mxu0 0.0
    %2554 = vmatpush1.msra.mxu0 %v2497
    %2555 = vmatprep.subr.mxu0 0.0
    %2556 = vmatpush1.msra.mxu0 %v2498
    %2557 = vmatprep.subr.mxu0 0.0
    %2558 = vmatpush1.msra.mxu0 %v2499
    %2559 = vmatprep.subr.mxu0 0.0
    %2560 = vmatpush1.msra.mxu0 %v2500
    %2561 = vmatprep.subr.mxu0 0.0
    %2562 = vmatpush1.msra.mxu0 %v2501
    %2563 = vmatprep.subr.mxu0 0.0
    %2564 = vmatpush1.msra.mxu0 %v2502
    %2565 = vmatprep.subr.mxu0 0.0
    %2566 = vmatpush1.msra.mxu0 %v2503
    %2567 = vmatprep.subr.mxu0 0.0
    %2568 = vmatpush1.msra.mxu0 %v2504
    %2569 = vmatprep.mubr.f32.mxu0 %v2148
    %2570 = vmatmul.mubr.f32.gmra.mrb[0].mxu0 %v2472
    %v2571 = vpop.f32.mrb[0].mxu0
    %v2572 = vadd.f32 %v223, %v2571
    %v2573 = vpop.f32.mrb[0].mxu0
    %2574 = vdwg.mxu0
    %v2575 = vmul.f32 %v298, %v2137
    %v2576 = vmul.f32 %v303, %v2148
    %v2577 = vadd.f32 %v2575, %v2576
    %v2578 = vmul.f32 %v2577, 1.8
    %v2579 = vadd.f32 %v2578, 0.01
    %v2580 = vmul.f32 %v2144, %v311
    %v2581 = vmul.f32 %v316, %v2572
    %v2582 = vadd.f32 %v2580, %v2581
    %v2583 = vmul.f32 %v2579, %v2148
    %v2584 = vsub.f32 %v2582, %v2583
    %v2585 = vsub.f32 %v2584, %v2579
    %vm2586 = vcmp.gt.f32.partialorder %v2585, 0.0
    %v2587 = vsel %vm2586, 1, 0
    %v2588 = vcvt.s32.f32 %v2587
    %v2589 = vld [vmem:[#allocation7] sm:$0xff]
    %v2590 = vld [vmem:[#allocation7 + $0x8] sm:$0xff]
    %v2591 = vld [vmem:[#allocation7 + $0x10] sm:$0xff]
    %v2592 = vld [vmem:[#allocation7 + $0x18] sm:$0xff]
    %v2593 = vld [vmem:[#allocation7 + $0x20] sm:$0xff]
    %v2594 = vld [vmem:[#allocation7 + $0x28] sm:$0xff]
    %v2595 = vld [vmem:[#allocation7 + $0x30] sm:$0xff]
    %v2596 = vld [vmem:[#allocation7 + $0x38] sm:$0xff]
    %v2597 = vld [vmem:[#allocation7 + $0x40] sm:$0xff]
    %v2598 = vld [vmem:[#allocation7 + $0x48] sm:$0xff]
    %v2599 = vld [vmem:[#allocation7 + $0x50] sm:$0xff]
    %v2600 = vld [vmem:[#allocation7 + $0x58] sm:$0xff]
    %v2601 = vld [vmem:[#allocation7 + $0x60] sm:$0xff]
    %v2602 = vld [vmem:[#allocation7 + $0x68] sm:$0xff]
    %v2603 = vld [vmem:[#allocation7 + $0x70] sm:$0xff]
    %v2604 = vld [vmem:[#allocation7 + $0x78] sm:$0xff]
    %v2605 = vld [vmem:[#allocation7 + $0x80] sm:$0xff]
    %v2606 = vld [vmem:[#allocation7 + $0x88] sm:$0xff]
    %v2607 = vld [vmem:[#allocation7 + $0x90] sm:$0xff]
    %v2608 = vld [vmem:[#allocation7 + $0x98] sm:$0xff]
    %v2609 = vld [vmem:[#allocation7 + $0xa0] sm:$0xff]
    %v2610 = vld [vmem:[#allocation7 + $0xa8] sm:$0xff]
    %v2611 = vld [vmem:[#allocation7 + $0xb0] sm:$0xff]
    %v2612 = vld [vmem:[#allocation7 + $0xb8] sm:$0xff]
    %v2613 = vld [vmem:[#allocation7 + $0xc0] sm:$0xff]
    %v2614 = vld [vmem:[#allocation7 + $0xc8] sm:$0xff]
    %v2615 = vld [vmem:[#allocation7 + $0xd0] sm:$0xff]
    %v2616 = vld [vmem:[#allocation7 + $0xd8] sm:$0xff]
    %v2617 = vld [vmem:[#allocation7 + $0xe0] sm:$0xff]
    %v2618 = vld [vmem:[#allocation7 + $0xe8] sm:$0xff]
    %v2619 = vld [vmem:[#allocation7 + $0xf0] sm:$0xff]
    %v2620 = vld [vmem:[#allocation7 + $0xf8] sm:$0xff]
    %2621 = vmatprep.subr.mxu0 0.0
    %2622 = vmatpush1.msra.mxu0 %v2589
    %2623 = vmatprep.subr.mxu0 0.0
    %2624 = vmatpush1.msra.mxu0 %v2590
    %2625 = vmatprep.subr.mxu0 0.0
    %2626 = vmatpush1.msra.mxu0 %v2591
    %2627 = vmatprep.subr.mxu0 0.0
    %2628 = vmatpush1.msra.mxu0 %v2592
    %2629 = vmatprep.subr.mxu0 0.0
    %2630 = vmatpush1.msra.mxu0 %v2593
    %2631 = vmatprep.subr.mxu0 0.0
    %2632 = vmatpush1.msra.mxu0 %v2594
    %2633 = vmatprep.subr.mxu0 0.0
    %2634 = vmatpush1.msra.mxu0 %v2595
    %2635 = vmatprep.subr.mxu0 0.0
    %2636 = vmatpush1.msra.mxu0 %v2596
    %2637 = vmatprep.subr.mxu0 0.0
    %2638 = vmatpush1.msra.mxu0 %v2597
    %2639 = vmatprep.subr.mxu0 0.0
    %2640 = vmatpush1.msra.mxu0 %v2598
    %2641 = vmatprep.subr.mxu0 0.0
    %2642 = vmatpush1.msra.mxu0 %v2599
    %2643 = vmatprep.subr.mxu0 0.0
    %2644 = vmatpush1.msra.mxu0 %v2600
    %2645 = vmatprep.subr.mxu0 0.0
    %2646 = vmatpush1.msra.mxu0 %v2601
    %2647 = vmatprep.subr.mxu0 0.0
    %2648 = vmatpush1.msra.mxu0 %v2602
    %2649 = vmatprep.subr.mxu0 0.0
    %2650 = vmatpush1.msra.mxu0 %v2603
    %2651 = vmatprep.subr.mxu0 0.0
    %2652 = vmatpush1.msra.mxu0 %v2604
    %2653 = vmatprep.subr.mxu0 0.0
    %2654 = vmatpush1.msra.mxu0 %v2605
    %2655 = vmatprep.subr.mxu0 0.0
    %2656 = vmatpush1.msra.mxu0 %v2606
    %2657 = vmatprep.subr.mxu0 0.0
    %2658 = vmatpush1.msra.mxu0 %v2607
    %2659 = vmatprep.subr.mxu0 0.0
    %2660 = vmatpush1.msra.mxu0 %v2608
    %2661 = vmatprep.subr.mxu0 0.0
    %2662 = vmatpush1.msra.mxu0 %v2609
    %2663 = vmatprep.subr.mxu0 0.0
    %2664 = vmatpush1.msra.mxu0 %v2610
    %2665 = vmatprep.subr.mxu0 0.0
    %2666 = vmatpush1.msra.mxu0 %v2611
    %2667 = vmatprep.subr.mxu0 0.0
    %2668 = vmatpush1.msra.mxu0 %v2612
    %2669 = vmatprep.subr.mxu0 0.0
    %2670 = vmatpush1.msra.mxu0 %v2613
    %2671 = vmatprep.subr.mxu0 0.0
    %2672 = vmatpush1.msra.mxu0 %v2614
    %2673 = vmatprep.subr.mxu0 0.0
    %2674 = vmatpush1.msra.mxu0 %v2615
    %2675 = vmatprep.subr.mxu0 0.0
    %2676 = vmatpush1.msra.mxu0 %v2616
    %2677 = vmatprep.subr.mxu0 0.0
    %2678 = vmatpush1.msra.mxu0 %v2617
    %2679 = vmatprep.subr.mxu0 0.0
    %2680 = vmatpush1.msra.mxu0 %v2618
    %2681 = vmatprep.subr.mxu0 0.0
    %2682 = vmatpush1.msra.mxu0 %v2619
    %2683 = vmatprep.subr.mxu0 0.0
    %2684 = vmatpush1.msra.mxu0 %v2620
    %2685 = vmatprep.mubr.f32.mxu0 %v2264
    %2686 = vmatmul.mubr.f32.gmra.mrb[0].mxu0 %v2588
    %v2687 = vpop.f32.mrb[0].mxu0
    %v2688 = vadd.f32 %v361, %v2687
    %v2689 = vpop.f32.mrb[0].mxu0
    %2690 = vdwg.mxu0
    %v2691 = vmul.f32 %v436, %v2253
    %v2692 = vmul.f32 %v441, %v2264
    %v2693 = vadd.f32 %v2691, %v2692
    %v2694 = vmul.f32 %v2693, 1.8
    %v2695 = vadd.f32 %v2694, 0.01
    %v2696 = vmul.f32 %v2260, %v449
    %v2697 = vmul.f32 %v454, %v2688
    %v2698 = vadd.f32 %v2696, %v2697
    %v2699 = vmul.f32 %v2695, %v2264
    %v2700 = vsub.f32 %v2698, %v2699
    %v2701 = vsub.f32 %v2700, %v2695
    %vm2702 = vcmp.gt.f32.partialorder %v2701, 0.0
    %v2703 = vsel %vm2702, 1, 0
    %v2704 = vcvt.s32.f32 %v2703
    %v2705 = vld [vmem:[#allocation10] sm:$0xff]
    %v2706 = vld [vmem:[#allocation10 + $0x8] sm:$0xff]
    %v2707 = vld [vmem:[#allocation10 + $0x10] sm:$0xff]
    %v2708 = vld [vmem:[#allocation10 + $0x18] sm:$0xff]
    %v2709 = vld [vmem:[#allocation10 + $0x20] sm:$0xff]
    %v2710 = vld [vmem:[#allocation10 + $0x28] sm:$0xff]
    %v2711 = vld [vmem:[#allocation10 + $0x30] sm:$0xff]
    %v2712 = vld [vmem:[#allocation10 + $0x38] sm:$0xff]
    %v2713 = vld [vmem:[#allocation10 + $0x40] sm:$0xff]
    %v2714 = vld [vmem:[#allocation10 + $0x48] sm:$0xff]
    %v2715 = vld [vmem:[#allocation10 + $0x50] sm:$0xff]
    %v2716 = vld [vmem:[#allocation10 + $0x58] sm:$0xff]
    %v2717 = vld [vmem:[#allocation10 + $0x60] sm:$0xff]
    %v2718 = vld [vmem:[#allocation10 + $0x68] sm:$0xff]
    %v2719 = vld [vmem:[#allocation10 + $0x70] sm:$0xff]
    %v2720 = vld [vmem:[#allocation10 + $0x78] sm:$0xff]
    %2721 = vmatprep.subr.mxu0 0.0
    %2722 = vmatpush1.msra.mxu0 %v2705
    %2723 = vmatprep.subr.mxu0 0.0
    %2724 = vmatpush1.msra.mxu0 %v2706
    %2725 = vmatprep.subr.mxu0 0.0
    %2726 = vmatpush1.msra.mxu0 %v2707
    %2727 = vmatprep.subr.mxu0 0.0
    %2728 = vmatpush1.msra.mxu0 %v2708
    %2729 = vmatprep.subr.mxu0 0.0
    %2730 = vmatpush1.msra.mxu0 %v2709
    %2731 = vmatprep.subr.mxu0 0.0
    %2732 = vmatpush1.msra.mxu0 %v2710
    %2733 = vmatprep.subr.mxu0 0.0
    %2734 = vmatpush1.msra.mxu0 %v2711
    %2735 = vmatprep.subr.mxu0 0.0
    %2736 = vmatpush1.msra.mxu0 %v2712
    %2737 = vmatprep.subr.mxu0 0.0
    %2738 = vmatpush1.msra.mxu0 %v2713
    %2739 = vmatprep.subr.mxu0 0.0
    %2740 = vmatpush1.msra.mxu0 %v2714
    %2741 = vmatprep.subr.mxu0 0.0
    %2742 = vmatpush1.msra.mxu0 %v2715
    %2743 = vmatprep.subr.mxu0 0.0
    %2744 = vmatpush1.msra.mxu0 %v2716
    %2745 = vmatprep.subr.mxu0 0.0
    %2746 = vmatpush1.msra.mxu0 %v2717
    %2747 = vmatprep.subr.mxu0 0.0
    %2748 = vmatpush1.msra.mxu0 %v2718
    %2749 = vmatprep.subr.mxu0 0.0
    %2750 = vmatpush1.msra.mxu0 %v2719
    %2751 = vmatprep.subr.mxu0 0.0
    %2752 = vmatpush1.msra.mxu0 %v2720
    %2753 = vmatprep.subr.mxu0 0.0
    %2754 = vmatpush1.msra.mxu0 0.0
    %2755 = vmatprep.subr.mxu0 0.0
    %2756 = vmatpush1.msra.mxu0 0.0
    %2757 = vmatprep.subr.mxu0 0.0
    %2758 = vmatpush1.msra.mxu0 0.0
    %2759 = vmatprep.subr.mxu0 0.0
    %2760 = vmatpush1.msra.mxu0 0.0
    %2761 = vmatprep.subr.mxu0 0.0
    %2762 = vmatpush1.msra.mxu0 0.0
    %2763 = vmatprep.subr.mxu0 0.0
    %2764 = vmatpush1.msra.mxu0 0.0
    %2765 = vmatprep.subr.mxu0 0.0
    %2766 = vmatpush1.msra.mxu0 0.0
    %2767 = vmatprep.subr.mxu0 0.0
    %2768 = vmatpush1.msra.mxu0 0.0
    %2769 = vmatprep.subr.mxu0 0.0
    %2770 = vmatpush1.msra.mxu0 0.0
    %2771 = vmatprep.subr.mxu0 0.0
    %2772 = vmatpush1.msra.mxu0 0.0
    %2773 = vmatprep.subr.mxu0 0.0
    %2774 = vmatpush1.msra.mxu0 0.0
    %2775 = vmatprep.subr.mxu0 0.0
    %2776 = vmatpush1.msra.mxu0 0.0
    %2777 = vmatprep.subr.mxu0 0.0
    %2778 = vmatpush1.msra.mxu0 0.0
    %2779 = vmatprep.subr.mxu0 0.0
    %2780 = vmatpush1.msra.mxu0 0.0
    %2781 = vmatprep.subr.mxu0 0.0
    %2782 = vmatpush1.msra.mxu0 0.0
    %2783 = vmatprep.subr.mxu0 0.0
    %2784 = vmatpush1.msra.mxu0 0.0
    %2785 = vmatprep.mubr.f32.mxu0 0.0
    %2786 = vmatmul.mubr.f32.gmra.mrb[0].mxu0 %v2704
    %v2787 = vpop.f32.mrb[0].mxu0
    %v2788 = vadd.f32 %v483, %v2787
    %v2789 = vpop.f32.mrb[0].mxu0
    %2790 = vdwg.mxu0
    %v2791 = vmul.f32 %v558, %v2353
    %v2792 = vmul.f32 %v563, %v2364
    %v2793 = vadd.f32 %v2791, %v2792
    %v2794 = vmul.f32 %v2793, 1.8
    %v2795 = vadd.f32 %v2794, 0.01
    %v2796 = vmul.f32 %v2360, %v571
    %v2797 = vmul.f32 %v576, %v2788
    %v2798 = vadd.f32 %v2796, %v2797
    %v2799 = vmul.f32 %v2795, %v2364
    %v2800 = vsub.f32 %v2798, %v2799
    %v2801 = vsub.f32 %v2800, %v2795
    %vm2802 = vcmp.gt.f32.partialorder %v2801, 0.0
    %v2803 = vsel %vm2802, 1, 0
    %v2804 = vcvt.s32.f32 %v2803
    %v2805 = vld [vmem:[#allocation13] sm:$0xff]
    %v2806 = vld [vmem:[#allocation13 + $0x8] sm:$0xff]
    %v2807 = vld [vmem:[#allocation13 + $0x10] sm:$0xff]
    %v2808 = vld [vmem:[#allocation13 + $0x18] sm:$0xff]
    %v2809 = vld [vmem:[#allocation13 + $0x20] sm:$0xff]
    %v2810 = vld [vmem:[#allocation13 + $0x28] sm:$0xff]
    %v2811 = vld [vmem:[#allocation13 + $0x30] sm:$0xff]
    %v2812 = vld [vmem:[#allocation13 + $0x38] sm:$0xff]
    %v2813 = vld [vmem:[#allocation13 + $0x40] sm:$0xff]
    %v2814 = vld [vmem:[#allocation13 + $0x48] sm:$0xff]
    %v2815 = vld [vmem:[#allocation13 + $0x50] sm:$0xff]
    %v2816 = vld [vmem:[#allocation13 + $0x58] sm:$0xff]
    %v2817 = vld [vmem:[#allocation13 + $0x60] sm:$0xff]
    %v2818 = vld [vmem:[#allocation13 + $0x68] sm:$0xff]
    %v2819 = vld [vmem:[#allocation13 + $0x70] sm:$0xff]
    %v2820 = vld [vmem:[#allocation13 + $0x78] sm:$0xff]
    %2821 = vmatprep.subr.mxu0 0.0
    %2822 = vmatpush1.msra.mxu0 %v2805
    %2823 = vmatprep.subr.mxu0 0.0
    %2824 = vmatpush1.msra.mxu0 %v2806
    %2825 = vmatprep.subr.mxu0 0.0
    %2826 = vmatpush1.msra.mxu0 %v2807
    %2827 = vmatprep.subr.mxu0 0.0
    %2828 = vmatpush1.msra.mxu0 %v2808
    %2829 = vmatprep.subr.mxu0 0.0
    %2830 = vmatpush1.msra.mxu0 %v2809
    %2831 = vmatprep.subr.mxu0 0.0
    %2832 = vmatpush1.msra.mxu0 %v2810
    %2833 = vmatprep.subr.mxu0 0.0
    %2834 = vmatpush1.msra.mxu0 %v2811
    %2835 = vmatprep.subr.mxu0 0.0
    %2836 = vmatpush1.msra.mxu0 %v2812
    %2837 = vmatprep.subr.mxu0 0.0
    %2838 = vmatpush1.msra.mxu0 %v2813
    %2839 = vmatprep.subr.mxu0 0.0
    %2840 = vmatpush1.msra.mxu0 %v2814
    %2841 = vmatprep.subr.mxu0 0.0
    %2842 = vmatpush1.msra.mxu0 %v2815
    %2843 = vmatprep.subr.mxu0 0.0
    %2844 = vmatpush1.msra.mxu0 %v2816
    %2845 = vmatprep.subr.mxu0 0.0
    %2846 = vmatpush1.msra.mxu0 %v2817
    %2847 = vmatprep.subr.mxu0 0.0
    %2848 = vmatpush1.msra.mxu0 %v2818
    %2849 = vmatprep.subr.mxu0 0.0
    %2850 = vmatpush1.msra.mxu0 %v2819
    %2851 = vmatprep.subr.mxu0 0.0
    %2852 = vmatpush1.msra.mxu0 %v2820
    %2853 = vmatprep.subr.mxu0 0.0
    %2854 = vmatpush1.msra.mxu0 0.0
    %2855 = vmatprep.subr.mxu0 0.0
    %2856 = vmatpush1.msra.mxu0 0.0
    %2857 = vmatprep.subr.mxu0 0.0
    %2858 = vmatpush1.msra.mxu0 0.0
    %2859 = vmatprep.subr.mxu0 0.0
    %2860 = vmatpush1.msra.mxu0 0.0
    %2861 = vmatprep.subr.mxu0 0.0
    %2862 = vmatpush1.msra.mxu0 0.0
    %2863 = vmatprep.subr.mxu0 0.0
    %2864 = vmatpush1.msra.mxu0 0.0
    %2865 = vmatprep.subr.mxu0 0.0
    %2866 = vmatpush1.msra.mxu0 0.0
    %2867 = vmatprep.subr.mxu0 0.0
    %2868 = vmatpush1.msra.mxu0 0.0
    %2869 = vmatprep.subr.mxu0 0.0
    %2870 = vmatpush1.msra.mxu0 0.0
    %2871 = vmatprep.subr.mxu0 0.0
    %2872 = vmatpush1.msra.mxu0 0.0
    %2873 = vmatprep.subr.mxu0 0.0
    %2874 = vmatpush1.msra.mxu0 0.0
    %2875 = vmatprep.subr.mxu0 0.0
    %2876 = vmatpush1.msra.mxu0 0.0
    %2877 = vmatprep.subr.mxu0 0.0
    %2878 = vmatpush1.msra.mxu0 0.0
    %2879 = vmatprep.subr.mxu0 0.0
    %2880 = vmatpush1.msra.mxu0 0.0
    %2881 = vmatprep.subr.mxu0 0.0
    %2882 = vmatpush1.msra.mxu0 0.0
    %2883 = vmatprep.subr.mxu0 0.0
    %2884 = vmatpush1.msra.mxu0 0.0
    %2885 = vmatprep.mubr.f32.mxu0 0.0
    %2886 = vmatmul.mubr.f32.gmra.mrb[0].mxu0 %v2804
    %v2887 = vpop.f32.mrb[0].mxu0
    %v2888 = vadd.f32 %v605, %v2887
    %v2889 = vpop.f32.mrb[0].mxu0
    %2890 = vdwg.mxu0
    %v2891 = vmul.f32 %v680, %v2453
    %v2892 = vmul.f32 %v685, %v2464
    %v2893 = vadd.f32 %v2891, %v2892
    %v2894 = vmul.f32 %v2893, 1.8
    %v2895 = vadd.f32 %v2894, 0.01
    %v2896 = vmul.f32 %v2460, %v693
    %v2897 = vmul.f32 %v698, %v2888
    %v2898 = vadd.f32 %v2896, %v2897
    %v2899 = vmul.f32 %v2895, %v2464
    %v2900 = vsub.f32 %v2898, %v2899
    %v2901 = vsub.f32 %v2900, %v2895
    %vm2902 = vcmp.gt.f32.partialorder %v2901, 0.0
    %v2903 = vsel %vm2902, 1, 0
    %v2904 = vcvt.s32.f32 %v2903
    %v2905 = vadd.f32 %v2465, %v2904
    %s2906 = scalar_lea.vmem [#allocation18], 160
    %2907 = vst [vmem:[%s2906] sm:$0xff] %v2588
    %2908 = vst [vmem:[%s2906 + $0x8] sm:$0xff] %v2704
    %2909 = vst [vmem:[%s2906 + $0x10] sm:$0xff] %v2804
    %2910 = vst [vmem:[%s2906 + $0x18] sm:$0xff] %v2904
    %s2911 = scalar_lea.vmem [#allocation2], 48
    %v2912 = vld [vmem:[%s2911] sm:$0xff]
    %v2913 = vld [vmem:[#allocation5] sm:$0xff]
    %v2914 = vld [vmem:[#allocation5 + $0x8] sm:$0xff]
    %v2915 = vld [vmem:[#allocation5 + $0x10] sm:$0xff]
    %v2916 = vld [vmem:[#allocation5 + $0x18] sm:$0xff]
    %v2917 = vld [vmem:[#allocation5 + $0x20] sm:$0xff]
    %v2918 = vld [vmem:[#allocation5 + $0x28] sm:$0xff]
    %v2919 = vld [vmem:[#allocation5 + $0x30] sm:$0xff]
    %v2920 = vld [vmem:[#allocation5 + $0x38] sm:$0xff]
    %v2921 = vld [vmem:[#allocation5 + $0x40] sm:$0xff]
    %v2922 = vld [vmem:[#allocation5 + $0x48] sm:$0xff]
    %v2923 = vld [vmem:[#allocation5 + $0x50] sm:$0xff]
    %v2924 = vld [vmem:[#allocation5 + $0x58] sm:$0xff]
    %v2925 = vld [vmem:[#allocation5 + $0x60] sm:$0xff]
    %v2926 = vld [vmem:[#allocation5 + $0x68] sm:$0xff]
    %v2927 = vld [vmem:[#allocation5 + $0x70] sm:$0xff]
    %v2928 = vld [vmem:[#allocation5 + $0x78] sm:$0xff]
    %v2929 = vld [vmem:[#allocation5 + $0x80] sm:$0xff]
    %v2930 = vld [vmem:[#allocation5 + $0x88] sm:$0xff]
    %v2931 = vld [vmem:[#allocation5 + $0x90] sm:$0xff]
    %v2932 = vld [vmem:[#allocation5 + $0x98] sm:$0xff]
    %v2933 = vld [vmem:[#allocation5 + $0xa0] sm:$0xff]
    %v2934 = vld [vmem:[#allocation5 + $0xa8] sm:$0xff]
    %v2935 = vld [vmem:[#allocation5 + $0xb0] sm:$0xff]
    %v2936 = vld [vmem:[#allocation5 + $0xb8] sm:$0xff]
    %v2937 = vld [vmem:[#allocation5 + $0xc0] sm:$0xff]
    %v2938 = vld [vmem:[#allocation5 + $0xc8] sm:$0xff]
    %v2939 = vld [vmem:[#allocation5 + $0xd0] sm:$0xff]
    %v2940 = vld [vmem:[#allocation5 + $0xd8] sm:$0xff]
    %v2941 = vld [vmem:[#allocation5 + $0xe0] sm:$0xff]
    %v2942 = vld [vmem:[#allocation5 + $0xe8] sm:$0xff]
    %v2943 = vld [vmem:[#allocation5 + $0xf0] sm:$0xff]
    %v2944 = vld [vmem:[#allocation5 + $0xf8] sm:$0xff]
    %2945 = vmatprep.subr.mxu0 0.0
    %2946 = vmatpush1.msra.mxu0 %v2913
    %2947 = vmatprep.subr.mxu0 0.0
    %2948 = vmatpush1.msra.mxu0 %v2914
    %2949 = vmatprep.subr.mxu0 0.0
    %2950 = vmatpush1.msra.mxu0 %v2915
    %2951 = vmatprep.subr.mxu0 0.0
    %2952 = vmatpush1.msra.mxu0 %v2916
    %2953 = vmatprep.subr.mxu0 0.0
    %2954 = vmatpush1.msra.mxu0 %v2917
    %2955 = vmatprep.subr.mxu0 0.0
    %2956 = vmatpush1.msra.mxu0 %v2918
    %2957 = vmatprep.subr.mxu0 0.0
    %2958 = vmatpush1.msra.mxu0 %v2919
    %2959 = vmatprep.subr.mxu0 0.0
    %2960 = vmatpush1.msra.mxu0 %v2920
    %2961 = vmatprep.subr.mxu0 0.0
    %2962 = vmatpush1.msra.mxu0 %v2921
    %2963 = vmatprep.subr.mxu0 0.0
    %2964 = vmatpush1.msra.mxu0 %v2922
    %2965 = vmatprep.subr.mxu0 0.0
    %2966 = vmatpush1.msra.mxu0 %v2923
    %2967 = vmatprep.subr.mxu0 0.0
    %2968 = vmatpush1.msra.mxu0 %v2924
    %2969 = vmatprep.subr.mxu0 0.0
    %2970 = vmatpush1.msra.mxu0 %v2925
    %2971 = vmatprep.subr.mxu0 0.0
    %2972 = vmatpush1.msra.mxu0 %v2926
    %2973 = vmatprep.subr.mxu0 0.0
    %2974 = vmatpush1.msra.mxu0 %v2927
    %2975 = vmatprep.subr.mxu0 0.0
    %2976 = vmatpush1.msra.mxu0 %v2928
    %2977 = vmatprep.subr.mxu0 0.0
    %2978 = vmatpush1.msra.mxu0 %v2929
    %2979 = vmatprep.subr.mxu0 0.0
    %2980 = vmatpush1.msra.mxu0 %v2930
    %2981 = vmatprep.subr.mxu0 0.0
    %2982 = vmatpush1.msra.mxu0 %v2931
    %2983 = vmatprep.subr.mxu0 0.0
    %2984 = vmatpush1.msra.mxu0 %v2932
    %2985 = vmatprep.subr.mxu0 0.0
    %2986 = vmatpush1.msra.mxu0 %v2933
    %2987 = vmatprep.subr.mxu0 0.0
    %2988 = vmatpush1.msra.mxu0 %v2934
    %2989 = vmatprep.subr.mxu0 0.0
    %2990 = vmatpush1.msra.mxu0 %v2935
    %2991 = vmatprep.subr.mxu0 0.0
    %2992 = vmatpush1.msra.mxu0 %v2936
    %2993 = vmatprep.subr.mxu0 0.0
    %2994 = vmatpush1.msra.mxu0 %v2937
    %2995 = vmatprep.subr.mxu0 0.0
    %2996 = vmatpush1.msra.mxu0 %v2938
    %2997 = vmatprep.subr.mxu0 0.0
    %2998 = vmatpush1.msra.mxu0 %v2939
    %2999 = vmatprep.subr.mxu0 0.0
    %3000 = vmatpush1.msra.mxu0 %v2940
    %3001 = vmatprep.subr.mxu0 0.0
    %3002 = vmatpush1.msra.mxu0 %v2941
    %3003 = vmatprep.subr.mxu0 0.0
    %3004 = vmatpush1.msra.mxu0 %v2942
    %3005 = vmatprep.subr.mxu0 0.0
    %3006 = vmatpush1.msra.mxu0 %v2943
    %3007 = vmatprep.subr.mxu0 0.0
    %3008 = vmatpush1.msra.mxu0 %v2944
    %3009 = vmatprep.mubr.f32.mxu0 %v2588
    %3010 = vmatmul.mubr.f32.gmra.mrb[0].mxu0 %v2912
    %v3011 = vpop.f32.mrb[0].mxu0
    %v3012 = vadd.f32 %v223, %v3011
    %v3013 = vpop.f32.mrb[0].mxu0
    %3014 = vdwg.mxu0
    %v3015 = vmul.f32 %v298, %v2577
    %v3016 = vmul.f32 %v303, %v2588
    %v3017 = vadd.f32 %v3015, %v3016
    %v3018 = vmul.f32 %v3017, 1.8
    %v3019 = vadd.f32 %v3018, 0.01
    %v3020 = vmul.f32 %v2584, %v311
    %v3021 = vmul.f32 %v316, %v3012
    %v3022 = vadd.f32 %v3020, %v3021
    %v3023 = vmul.f32 %v3019, %v2588
    %v3024 = vsub.f32 %v3022, %v3023
    %v3025 = vsub.f32 %v3024, %v3019
    %vm3026 = vcmp.gt.f32.partialorder %v3025, 0.0
    %v3027 = vsel %vm3026, 1, 0
    %v3028 = vcvt.s32.f32 %v3027
    %v3029 = vld [vmem:[#allocation7] sm:$0xff]
    %v3030 = vld [vmem:[#allocation7 + $0x8] sm:$0xff]
    %v3031 = vld [vmem:[#allocation7 + $0x10] sm:$0xff]
    %v3032 = vld [vmem:[#allocation7 + $0x18] sm:$0xff]
    %v3033 = vld [vmem:[#allocation7 + $0x20] sm:$0xff]
    %v3034 = vld [vmem:[#allocation7 + $0x28] sm:$0xff]
    %v3035 = vld [vmem:[#allocation7 + $0x30] sm:$0xff]
    %v3036 = vld [vmem:[#allocation7 + $0x38] sm:$0xff]
    %v3037 = vld [vmem:[#allocation7 + $0x40] sm:$0xff]
    %v3038 = vld [vmem:[#allocation7 + $0x48] sm:$0xff]
    %v3039 = vld [vmem:[#allocation7 + $0x50] sm:$0xff]
    %v3040 = vld [vmem:[#allocation7 + $0x58] sm:$0xff]
    %v3041 = vld [vmem:[#allocation7 + $0x60] sm:$0xff]
    %v3042 = vld [vmem:[#allocation7 + $0x68] sm:$0xff]
    %v3043 = vld [vmem:[#allocation7 + $0x70] sm:$0xff]
    %v3044 = vld [vmem:[#allocation7 + $0x78] sm:$0xff]
    %v3045 = vld [vmem:[#allocation7 + $0x80] sm:$0xff]
    %v3046 = vld [vmem:[#allocation7 + $0x88] sm:$0xff]
    %v3047 = vld [vmem:[#allocation7 + $0x90] sm:$0xff]
    %v3048 = vld [vmem:[#allocation7 + $0x98] sm:$0xff]
    %v3049 = vld [vmem:[#allocation7 + $0xa0] sm:$0xff]
    %v3050 = vld [vmem:[#allocation7 + $0xa8] sm:$0xff]
    %v3051 = vld [vmem:[#allocation7 + $0xb0] sm:$0xff]
    %v3052 = vld [vmem:[#allocation7 + $0xb8] sm:$0xff]
    %v3053 = vld [vmem:[#allocation7 + $0xc0] sm:$0xff]
    %v3054 = vld [vmem:[#allocation7 + $0xc8] sm:$0xff]
    %v3055 = vld [vmem:[#allocation7 + $0xd0] sm:$0xff]
    %v3056 = vld [vmem:[#allocation7 + $0xd8] sm:$0xff]
    %v3057 = vld [vmem:[#allocation7 + $0xe0] sm:$0xff]
    %v3058 = vld [vmem:[#allocation7 + $0xe8] sm:$0xff]
    %v3059 = vld [vmem:[#allocation7 + $0xf0] sm:$0xff]
    %v3060 = vld [vmem:[#allocation7 + $0xf8] sm:$0xff]
    %3061 = vmatprep.subr.mxu0 0.0
    %3062 = vmatpush1.msra.mxu0 %v3029
    %3063 = vmatprep.subr.mxu0 0.0
    %3064 = vmatpush1.msra.mxu0 %v3030
    %3065 = vmatprep.subr.mxu0 0.0
    %3066 = vmatpush1.msra.mxu0 %v3031
    %3067 = vmatprep.subr.mxu0 0.0
    %3068 = vmatpush1.msra.mxu0 %v3032
    %3069 = vmatprep.subr.mxu0 0.0
    %3070 = vmatpush1.msra.mxu0 %v3033
    %3071 = vmatprep.subr.mxu0 0.0
    %3072 = vmatpush1.msra.mxu0 %v3034
    %3073 = vmatprep.subr.mxu0 0.0
    %3074 = vmatpush1.msra.mxu0 %v3035
    %3075 = vmatprep.subr.mxu0 0.0
    %3076 = vmatpush1.msra.mxu0 %v3036
    %3077 = vmatprep.subr.mxu0 0.0
    %3078 = vmatpush1.msra.mxu0 %v3037
    %3079 = vmatprep.subr.mxu0 0.0
    %3080 = vmatpush1.msra.mxu0 %v3038
    %3081 = vmatprep.subr.mxu0 0.0
    %3082 = vmatpush1.msra.mxu0 %v3039
    %3083 = vmatprep.subr.mxu0 0.0
    %3084 = vmatpush1.msra.mxu0 %v3040
    %3085 = vmatprep.subr.mxu0 0.0
    %3086 = vmatpush1.msra.mxu0 %v3041
    %3087 = vmatprep.subr.mxu0 0.0
    %3088 = vmatpush1.msra.mxu0 %v3042
    %3089 = vmatprep.subr.mxu0 0.0
    %3090 = vmatpush1.msra.mxu0 %v3043
    %3091 = vmatprep.subr.mxu0 0.0
    %3092 = vmatpush1.msra.mxu0 %v3044
    %3093 = vmatprep.subr.mxu0 0.0
    %3094 = vmatpush1.msra.mxu0 %v3045
    %3095 = vmatprep.subr.mxu0 0.0
    %3096 = vmatpush1.msra.mxu0 %v3046
    %3097 = vmatprep.subr.mxu0 0.0
    %3098 = vmatpush1.msra.mxu0 %v3047
    %3099 = vmatprep.subr.mxu0 0.0
    %3100 = vmatpush1.msra.mxu0 %v3048
    %3101 = vmatprep.subr.mxu0 0.0
    %3102 = vmatpush1.msra.mxu0 %v3049
    %3103 = vmatprep.subr.mxu0 0.0
    %3104 = vmatpush1.msra.mxu0 %v3050
    %3105 = vmatprep.subr.mxu0 0.0
    %3106 = vmatpush1.msra.mxu0 %v3051
    %3107 = vmatprep.subr.mxu0 0.0
    %3108 = vmatpush1.msra.mxu0 %v3052
    %3109 = vmatprep.subr.mxu0 0.0
    %3110 = vmatpush1.msra.mxu0 %v3053
    %3111 = vmatprep.subr.mxu0 0.0
    %3112 = vmatpush1.msra.mxu0 %v3054
    %3113 = vmatprep.subr.mxu0 0.0
    %3114 = vmatpush1.msra.mxu0 %v3055
    %3115 = vmatprep.subr.mxu0 0.0
    %3116 = vmatpush1.msra.mxu0 %v3056
    %3117 = vmatprep.subr.mxu0 0.0
    %3118 = vmatpush1.msra.mxu0 %v3057
    %3119 = vmatprep.subr.mxu0 0.0
    %3120 = vmatpush1.msra.mxu0 %v3058
    %3121 = vmatprep.subr.mxu0 0.0
    %3122 = vmatpush1.msra.mxu0 %v3059
    %3123 = vmatprep.subr.mxu0 0.0
    %3124 = vmatpush1.msra.mxu0 %v3060
    %3125 = vmatprep.mubr.f32.mxu0 %v2704
    %3126 = vmatmul.mubr.f32.gmra.mrb[0].mxu0 %v3028
    %v3127 = vpop.f32.mrb[0].mxu0
    %v3128 = vadd.f32 %v361, %v3127
    %v3129 = vpop.f32.mrb[0].mxu0
    %3130 = vdwg.mxu0
    %v3131 = vmul.f32 %v436, %v2693
    %v3132 = vmul.f32 %v441, %v2704
    %v3133 = vadd.f32 %v3131, %v3132
    %v3134 = vmul.f32 %v3133, 1.8
    %v3135 = vadd.f32 %v3134, 0.01
    %v3136 = vmul.f32 %v2700, %v449
    %v3137 = vmul.f32 %v454, %v3128
    %v3138 = vadd.f32 %v3136, %v3137
    %v3139 = vmul.f32 %v3135, %v2704
    %v3140 = vsub.f32 %v3138, %v3139
    %v3141 = vsub.f32 %v3140, %v3135
    %vm3142 = vcmp.gt.f32.partialorder %v3141, 0.0
    %v3143 = vsel %vm3142, 1, 0
    %v3144 = vcvt.s32.f32 %v3143
    %v3145 = vld [vmem:[#allocation10] sm:$0xff]
    %v3146 = vld [vmem:[#allocation10 + $0x8] sm:$0xff]
    %v3147 = vld [vmem:[#allocation10 + $0x10] sm:$0xff]
    %v3148 = vld [vmem:[#allocation10 + $0x18] sm:$0xff]
    %v3149 = vld [vmem:[#allocation10 + $0x20] sm:$0xff]
    %v3150 = vld [vmem:[#allocation10 + $0x28] sm:$0xff]
    %v3151 = vld [vmem:[#allocation10 + $0x30] sm:$0xff]
    %v3152 = vld [vmem:[#allocation10 + $0x38] sm:$0xff]
    %v3153 = vld [vmem:[#allocation10 + $0x40] sm:$0xff]
    %v3154 = vld [vmem:[#allocation10 + $0x48] sm:$0xff]
    %v3155 = vld [vmem:[#allocation10 + $0x50] sm:$0xff]
    %v3156 = vld [vmem:[#allocation10 + $0x58] sm:$0xff]
    %v3157 = vld [vmem:[#allocation10 + $0x60] sm:$0xff]
    %v3158 = vld [vmem:[#allocation10 + $0x68] sm:$0xff]
    %v3159 = vld [vmem:[#allocation10 + $0x70] sm:$0xff]
    %v3160 = vld [vmem:[#allocation10 + $0x78] sm:$0xff]
    %3161 = vmatprep.subr.mxu0 0.0
    %3162 = vmatpush1.msra.mxu0 %v3145
    %3163 = vmatprep.subr.mxu0 0.0
    %3164 = vmatpush1.msra.mxu0 %v3146
    %3165 = vmatprep.subr.mxu0 0.0
    %3166 = vmatpush1.msra.mxu0 %v3147
    %3167 = vmatprep.subr.mxu0 0.0
    %3168 = vmatpush1.msra.mxu0 %v3148
    %3169 = vmatprep.subr.mxu0 0.0
    %3170 = vmatpush1.msra.mxu0 %v3149
    %3171 = vmatprep.subr.mxu0 0.0
    %3172 = vmatpush1.msra.mxu0 %v3150
    %3173 = vmatprep.subr.mxu0 0.0
    %3174 = vmatpush1.msra.mxu0 %v3151
    %3175 = vmatprep.subr.mxu0 0.0
    %3176 = vmatpush1.msra.mxu0 %v3152
    %3177 = vmatprep.subr.mxu0 0.0
    %3178 = vmatpush1.msra.mxu0 %v3153
    %3179 = vmatprep.subr.mxu0 0.0
    %3180 = vmatpush1.msra.mxu0 %v3154
    %3181 = vmatprep.subr.mxu0 0.0
    %3182 = vmatpush1.msra.mxu0 %v3155
    %3183 = vmatprep.subr.mxu0 0.0
    %3184 = vmatpush1.msra.mxu0 %v3156
    %3185 = vmatprep.subr.mxu0 0.0
    %3186 = vmatpush1.msra.mxu0 %v3157
    %3187 = vmatprep.subr.mxu0 0.0
    %3188 = vmatpush1.msra.mxu0 %v3158
    %3189 = vmatprep.subr.mxu0 0.0
    %3190 = vmatpush1.msra.mxu0 %v3159
    %3191 = vmatprep.subr.mxu0 0.0
    %3192 = vmatpush1.msra.mxu0 %v3160
    %3193 = vmatprep.subr.mxu0 0.0
    %3194 = vmatpush1.msra.mxu0 0.0
    %3195 = vmatprep.subr.mxu0 0.0
    %3196 = vmatpush1.msra.mxu0 0.0
    %3197 = vmatprep.subr.mxu0 0.0
    %3198 = vmatpush1.msra.mxu0 0.0
    %3199 = vmatprep.subr.mxu0 0.0
    %3200 = vmatpush1.msra.mxu0 0.0
    %3201 = vmatprep.subr.mxu0 0.0
    %3202 = vmatpush1.msra.mxu0 0.0
    %3203 = vmatprep.subr.mxu0 0.0
    %3204 = vmatpush1.msra.mxu0 0.0
    %3205 = vmatprep.subr.mxu0 0.0
    %3206 = vmatpush1.msra.mxu0 0.0
    %3207 = vmatprep.subr.mxu0 0.0
    %3208 = vmatpush1.msra.mxu0 0.0
    %3209 = vmatprep.subr.mxu0 0.0
    %3210 = vmatpush1.msra.mxu0 0.0
    %3211 = vmatprep.subr.mxu0 0.0
    %3212 = vmatpush1.msra.mxu0 0.0
    %3213 = vmatprep.subr.mxu0 0.0
    %3214 = vmatpush1.msra.mxu0 0.0
    %3215 = vmatprep.subr.mxu0 0.0
    %3216 = vmatpush1.msra.mxu0 0.0
    %3217 = vmatprep.subr.mxu0 0.0
    %3218 = vmatpush1.msra.mxu0 0.0
    %3219 = vmatprep.subr.mxu0 0.0
    %3220 = vmatpush1.msra.mxu0 0.0
    %3221 = vmatprep.subr.mxu0 0.0
    %3222 = vmatpush1.msra.mxu0 0.0
    %3223 = vmatprep.subr.mxu0 0.0
    %3224 = vmatpush1.msra.mxu0 0.0
    %3225 = vmatprep.mubr.f32.mxu0 0.0
    %3226 = vmatmul.mubr.f32.gmra.mrb[0].mxu0 %v3144
    %v3227 = vpop.f32.mrb[0].mxu0
    %v3228 = vadd.f32 %v483, %v3227
    %v3229 = vpop.f32.mrb[0].mxu0
    %3230 = vdwg.mxu0
    %v3231 = vmul.f32 %v558, %v2793
    %v3232 = vmul.f32 %v563, %v2804
    %v3233 = vadd.f32 %v3231, %v3232
    %v3234 = vmul.f32 %v3233, 1.8
    %v3235 = vadd.f32 %v3234, 0.01
    %v3236 = vmul.f32 %v2800, %v571
    %v3237 = vmul.f32 %v576, %v3228
    %v3238 = vadd.f32 %v3236, %v3237
    %v3239 = vmul.f32 %v3235, %v2804
    %v3240 = vsub.f32 %v3238, %v3239
    %v3241 = vsub.f32 %v3240, %v3235
    %vm3242 = vcmp.gt.f32.partialorder %v3241, 0.0
    %v3243 = vsel %vm3242, 1, 0
    %v3244 = vcvt.s32.f32 %v3243
    %v3245 = vld [vmem:[#allocation13] sm:$0xff]
    %v3246 = vld [vmem:[#allocation13 + $0x8] sm:$0xff]
    %v3247 = vld [vmem:[#allocation13 + $0x10] sm:$0xff]
    %v3248 = vld [vmem:[#allocation13 + $0x18] sm:$0xff]
    %v3249 = vld [vmem:[#allocation13 + $0x20] sm:$0xff]
    %v3250 = vld [vmem:[#allocation13 + $0x28] sm:$0xff]
    %v3251 = vld [vmem:[#allocation13 + $0x30] sm:$0xff]
    %v3252 = vld [vmem:[#allocation13 + $0x38] sm:$0xff]
    %v3253 = vld [vmem:[#allocation13 + $0x40] sm:$0xff]
    %v3254 = vld [vmem:[#allocation13 + $0x48] sm:$0xff]
    %v3255 = vld [vmem:[#allocation13 + $0x50] sm:$0xff]
    %v3256 = vld [vmem:[#allocation13 + $0x58] sm:$0xff]
    %v3257 = vld [vmem:[#allocation13 + $0x60] sm:$0xff]
    %v3258 = vld [vmem:[#allocation13 + $0x68] sm:$0xff]
    %v3259 = vld [vmem:[#allocation13 + $0x70] sm:$0xff]
    %v3260 = vld [vmem:[#allocation13 + $0x78] sm:$0xff]
    %3261 = vmatprep.subr.mxu0 0.0
    %3262 = vmatpush1.msra.mxu0 %v3245
    %3263 = vmatprep.subr.mxu0 0.0
    %3264 = vmatpush1.msra.mxu0 %v3246
    %3265 = vmatprep.subr.mxu0 0.0
    %3266 = vmatpush1.msra.mxu0 %v3247
    %3267 = vmatprep.subr.mxu0 0.0
    %3268 = vmatpush1.msra.mxu0 %v3248
    %3269 = vmatprep.subr.mxu0 0.0
    %3270 = vmatpush1.msra.mxu0 %v3249
    %3271 = vmatprep.subr.mxu0 0.0
    %3272 = vmatpush1.msra.mxu0 %v3250
    %3273 = vmatprep.subr.mxu0 0.0
    %3274 = vmatpush1.msra.mxu0 %v3251
    %3275 = vmatprep.subr.mxu0 0.0
    %3276 = vmatpush1.msra.mxu0 %v3252
    %3277 = vmatprep.subr.mxu0 0.0
    %3278 = vmatpush1.msra.mxu0 %v3253
    %3279 = vmatprep.subr.mxu0 0.0
    %3280 = vmatpush1.msra.mxu0 %v3254
    %3281 = vmatprep.subr.mxu0 0.0
    %3282 = vmatpush1.msra.mxu0 %v3255
    %3283 = vmatprep.subr.mxu0 0.0
    %3284 = vmatpush1.msra.mxu0 %v3256
    %3285 = vmatprep.subr.mxu0 0.0
    %3286 = vmatpush1.msra.mxu0 %v3257
    %3287 = vmatprep.subr.mxu0 0.0
    %3288 = vmatpush1.msra.mxu0 %v3258
    %3289 = vmatprep.subr.mxu0 0.0
    %3290 = vmatpush1.msra.mxu0 %v3259
    %3291 = vmatprep.subr.mxu0 0.0
    %3292 = vmatpush1.msra.mxu0 %v3260
    %3293 = vmatprep.subr.mxu0 0.0
    %3294 = vmatpush1.msra.mxu0 0.0
    %3295 = vmatprep.subr.mxu0 0.0
    %3296 = vmatpush1.msra.mxu0 0.0
    %3297 = vmatprep.subr.mxu0 0.0
    %3298 = vmatpush1.msra.mxu0 0.0
    %3299 = vmatprep.subr.mxu0 0.0
    %3300 = vmatpush1.msra.mxu0 0.0
    %3301 = vmatprep.subr.mxu0 0.0
    %3302 = vmatpush1.msra.mxu0 0.0
    %3303 = vmatprep.subr.mxu0 0.0
    %3304 = vmatpush1.msra.mxu0 0.0
    %3305 = vmatprep.subr.mxu0 0.0
    %3306 = vmatpush1.msra.mxu0 0.0
    %3307 = vmatprep.subr.mxu0 0.0
    %3308 = vmatpush1.msra.mxu0 0.0
    %3309 = vmatprep.subr.mxu0 0.0
    %3310 = vmatpush1.msra.mxu0 0.0
    %3311 = vmatprep.subr.mxu0 0.0
    %3312 = vmatpush1.msra.mxu0 0.0
    %3313 = vmatprep.subr.mxu0 0.0
    %3314 = vmatpush1.msra.mxu0 0.0
    %3315 = vmatprep.subr.mxu0 0.0
    %3316 = vmatpush1.msra.mxu0 0.0
    %3317 = vmatprep.subr.mxu0 0.0
    %3318 = vmatpush1.msra.mxu0 0.0
    %3319 = vmatprep.subr.mxu0 0.0
    %3320 = vmatpush1.msra.mxu0 0.0
    %3321 = vmatprep.subr.mxu0 0.0
    %3322 = vmatpush1.msra.mxu0 0.0
    %3323 = vmatprep.subr.mxu0 0.0
    %3324 = vmatpush1.msra.mxu0 0.0
    %3325 = vmatprep.mubr.f32.mxu0 0.0
    %3326 = vmatmul.mubr.f32.gmra.mrb[0].mxu0 %v3244
    %v3327 = vpop.f32.mrb[0].mxu0
    %v3328 = vadd.f32 %v605, %v3327
    %v3329 = vpop.f32.mrb[0].mxu0
    %3330 = vdwg.mxu0
    %v3331 = vmul.f32 %v680, %v2893
    %v3332 = vmul.f32 %v685, %v2904
    %v3333 = vadd.f32 %v3331, %v3332
    %v3334 = vmul.f32 %v3333, 1.8
    %v3335 = vadd.f32 %v3334, 0.01
    %v3336 = vmul.f32 %v2900, %v693
    %v3337 = vmul.f32 %v698, %v3328
    %v3338 = vadd.f32 %v3336, %v3337
    %v3339 = vmul.f32 %v3335, %v2904
    %v3340 = vsub.f32 %v3338, %v3339
    %v3341 = vsub.f32 %v3340, %v3335
    %vm3342 = vcmp.gt.f32.partialorder %v3341, 0.0
    %v3343 = vsel %vm3342, 1, 0
    %v3344 = vcvt.s32.f32 %v3343
    %v3345 = vadd.f32 %v2905, %v3344
    %s3346 = scalar_lea.vmem [#allocation18], 192
    %3347 = vst [vmem:[%s3346] sm:$0xff] %v3028
    %3348 = vst [vmem:[%s3346 + $0x8] sm:$0xff] %v3144
    %3349 = vst [vmem:[%s3346 + $0x10] sm:$0xff] %v3244
    %3350 = vst [vmem:[%s3346 + $0x18] sm:$0xff] %v3344
    %s3351 = scalar_lea.vmem [#allocation2], 56
    %v3352 = vld [vmem:[%s3351] sm:$0xff]
    %v3353 = vld [vmem:[#allocation5] sm:$0xff]
    %v3354 = vld [vmem:[#allocation5 + $0x8] sm:$0xff]
    %v3355 = vld [vmem:[#allocation5 + $0x10] sm:$0xff]
    %v3356 = vld [vmem:[#allocation5 + $0x18] sm:$0xff]
    %v3357 = vld [vmem:[#allocation5 + $0x20] sm:$0xff]
    %v3358 = vld [vmem:[#allocation5 + $0x28] sm:$0xff]
    %v3359 = vld [vmem:[#allocation5 + $0x30] sm:$0xff]
    %v3360 = vld [vmem:[#allocation5 + $0x38] sm:$0xff]
    %v3361 = vld [vmem:[#allocation5 + $0x40] sm:$0xff]
    %v3362 = vld [vmem:[#allocation5 + $0x48] sm:$0xff]
    %v3363 = vld [vmem:[#allocation5 + $0x50] sm:$0xff]
    %v3364 = vld [vmem:[#allocation5 + $0x58] sm:$0xff]
    %v3365 = vld [vmem:[#allocation5 + $0x60] sm:$0xff]
    %v3366 = vld [vmem:[#allocation5 + $0x68] sm:$0xff]
    %v3367 = vld [vmem:[#allocation5 + $0x70] sm:$0xff]
    %v3368 = vld [vmem:[#allocation5 + $0x78] sm:$0xff]
    %v3369 = vld [vmem:[#allocation5 + $0x80] sm:$0xff]
    %v3370 = vld [vmem:[#allocation5 + $0x88] sm:$0xff]
    %v3371 = vld [vmem:[#allocation5 + $0x90] sm:$0xff]
    %v3372 = vld [vmem:[#allocation5 + $0x98] sm:$0xff]
    %v3373 = vld [vmem:[#allocation5 + $0xa0] sm:$0xff]
    %v3374 = vld [vmem:[#allocation5 + $0xa8] sm:$0xff]
    %v3375 = vld [vmem:[#allocation5 + $0xb0] sm:$0xff]
    %v3376 = vld [vmem:[#allocation5 + $0xb8] sm:$0xff]
    %v3377 = vld [vmem:[#allocation5 + $0xc0] sm:$0xff]
    %v3378 = vld [vmem:[#allocation5 + $0xc8] sm:$0xff]
    %v3379 = vld [vmem:[#allocation5 + $0xd0] sm:$0xff]
    %v3380 = vld [vmem:[#allocation5 + $0xd8] sm:$0xff]
    %v3381 = vld [vmem:[#allocation5 + $0xe0] sm:$0xff]
    %v3382 = vld [vmem:[#allocation5 + $0xe8] sm:$0xff]
    %v3383 = vld [vmem:[#allocation5 + $0xf0] sm:$0xff]
    %v3384 = vld [vmem:[#allocation5 + $0xf8] sm:$0xff]
    %3385 = vmatprep.subr.mxu0 0.0
    %3386 = vmatpush1.msra.mxu0 %v3353
    %3387 = vmatprep.subr.mxu0 0.0
    %3388 = vmatpush1.msra.mxu0 %v3354
    %3389 = vmatprep.subr.mxu0 0.0
    %3390 = vmatpush1.msra.mxu0 %v3355
    %3391 = vmatprep.subr.mxu0 0.0
    %3392 = vmatpush1.msra.mxu0 %v3356
    %3393 = vmatprep.subr.mxu0 0.0
    %3394 = vmatpush1.msra.mxu0 %v3357
    %3395 = vmatprep.subr.mxu0 0.0
    %3396 = vmatpush1.msra.mxu0 %v3358
    %3397 = vmatprep.subr.mxu0 0.0
    %3398 = vmatpush1.msra.mxu0 %v3359
    %3399 = vmatprep.subr.mxu0 0.0
    %3400 = vmatpush1.msra.mxu0 %v3360
    %3401 = vmatprep.subr.mxu0 0.0
    %3402 = vmatpush1.msra.mxu0 %v3361
    %3403 = vmatprep.subr.mxu0 0.0
    %3404 = vmatpush1.msra.mxu0 %v3362
    %3405 = vmatprep.subr.mxu0 0.0
    %3406 = vmatpush1.msra.mxu0 %v3363
    %3407 = vmatprep.subr.mxu0 0.0
    %3408 = vmatpush1.msra.mxu0 %v3364
    %3409 = vmatprep.subr.mxu0 0.0
    %3410 = vmatpush1.msra.mxu0 %v3365
    %3411 = vmatprep.subr.mxu0 0.0
    %3412 = vmatpush1.msra.mxu0 %v3366
    %3413 = vmatprep.subr.mxu0 0.0
    %3414 = vmatpush1.msra.mxu0 %v3367
    %3415 = vmatprep.subr.mxu0 0.0
    %3416 = vmatpush1.msra.mxu0 %v3368
    %3417 = vmatprep.subr.mxu0 0.0
    %3418 = vmatpush1.msra.mxu0 %v3369
    %3419 = vmatprep.subr.mxu0 0.0
    %3420 = vmatpush1.msra.mxu0 %v3370
    %3421 = vmatprep.subr.mxu0 0.0
    %3422 = vmatpush1.msra.mxu0 %v3371
    %3423 = vmatprep.subr.mxu0 0.0
    %3424 = vmatpush1.msra.mxu0 %v3372
    %3425 = vmatprep.subr.mxu0 0.0
    %3426 = vmatpush1.msra.mxu0 %v3373
    %3427 = vmatprep.subr.mxu0 0.0
    %3428 = vmatpush1.msra.mxu0 %v3374
    %3429 = vmatprep.subr.mxu0 0.0
    %3430 = vmatpush1.msra.mxu0 %v3375
    %3431 = vmatprep.subr.mxu0 0.0
    %3432 = vmatpush1.msra.mxu0 %v3376
    %3433 = vmatprep.subr.mxu0 0.0
    %3434 = vmatpush1.msra.mxu0 %v3377
    %3435 = vmatprep.subr.mxu0 0.0
    %3436 = vmatpush1.msra.mxu0 %v3378
    %3437 = vmatprep.subr.mxu0 0.0
    %3438 = vmatpush1.msra.mxu0 %v3379
    %3439 = vmatprep.subr.mxu0 0.0
    %3440 = vmatpush1.msra.mxu0 %v3380
    %3441 = vmatprep.subr.mxu0 0.0
    %3442 = vmatpush1.msra.mxu0 %v3381
    %3443 = vmatprep.subr.mxu0 0.0
    %3444 = vmatpush1.msra.mxu0 %v3382
    %3445 = vmatprep.subr.mxu0 0.0
    %3446 = vmatpush1.msra.mxu0 %v3383
    %3447 = vmatprep.subr.mxu0 0.0
    %3448 = vmatpush1.msra.mxu0 %v3384
    %3449 = vmatprep.mubr.f32.mxu0 %v3028
    %3450 = vmatmul.mubr.f32.gmra.mrb[0].mxu0 %v3352
    %v3451 = vpop.f32.mrb[0].mxu0
    %v3452 = vadd.f32 %v223, %v3451
    %v3453 = vpop.f32.mrb[0].mxu0
    %3454 = vdwg.mxu0
    %v3455 = vmul.f32 %v298, %v3017
    %v3456 = vmul.f32 %v303, %v3028
    %v3457 = vadd.f32 %v3455, %v3456
    %v3458 = vmul.f32 %v3457, 1.8
    %v3459 = vadd.f32 %v3458, 0.01
    %v3460 = vmul.f32 %v3024, %v311
    %v3461 = vmul.f32 %v316, %v3452
    %v3462 = vadd.f32 %v3460, %v3461
    %v3463 = vmul.f32 %v3459, %v3028
    %v3464 = vsub.f32 %v3462, %v3463
    %v3465 = vsub.f32 %v3464, %v3459
    %vm3466 = vcmp.gt.f32.partialorder %v3465, 0.0
    %v3467 = vsel %vm3466, 1, 0
    %v3468 = vcvt.s32.f32 %v3467
    %v3469 = vld [vmem:[#allocation7] sm:$0xff]
    %v3470 = vld [vmem:[#allocation7 + $0x8] sm:$0xff]
    %v3471 = vld [vmem:[#allocation7 + $0x10] sm:$0xff]
    %v3472 = vld [vmem:[#allocation7 + $0x18] sm:$0xff]
    %v3473 = vld [vmem:[#allocation7 + $0x20] sm:$0xff]
    %v3474 = vld [vmem:[#allocation7 + $0x28] sm:$0xff]
    %v3475 = vld [vmem:[#allocation7 + $0x30] sm:$0xff]
    %v3476 = vld [vmem:[#allocation7 + $0x38] sm:$0xff]
    %v3477 = vld [vmem:[#allocation7 + $0x40] sm:$0xff]
    %v3478 = vld [vmem:[#allocation7 + $0x48] sm:$0xff]
    %v3479 = vld [vmem:[#allocation7 + $0x50] sm:$0xff]
    %v3480 = vld [vmem:[#allocation7 + $0x58] sm:$0xff]
    %v3481 = vld [vmem:[#allocation7 + $0x60] sm:$0xff]
    %v3482 = vld [vmem:[#allocation7 + $0x68] sm:$0xff]
    %v3483 = vld [vmem:[#allocation7 + $0x70] sm:$0xff]
    %v3484 = vld [vmem:[#allocation7 + $0x78] sm:$0xff]
    %v3485 = vld [vmem:[#allocation7 + $0x80] sm:$0xff]
    %v3486 = vld [vmem:[#allocation7 + $0x88] sm:$0xff]
    %v3487 = vld [vmem:[#allocation7 + $0x90] sm:$0xff]
    %v3488 = vld [vmem:[#allocation7 + $0x98] sm:$0xff]
    %v3489 = vld [vmem:[#allocation7 + $0xa0] sm:$0xff]
    %v3490 = vld [vmem:[#allocation7 + $0xa8] sm:$0xff]
    %v3491 = vld [vmem:[#allocation7 + $0xb0] sm:$0xff]
    %v3492 = vld [vmem:[#allocation7 + $0xb8] sm:$0xff]
    %v3493 = vld [vmem:[#allocation7 + $0xc0] sm:$0xff]
    %v3494 = vld [vmem:[#allocation7 + $0xc8] sm:$0xff]
    %v3495 = vld [vmem:[#allocation7 + $0xd0] sm:$0xff]
    %v3496 = vld [vmem:[#allocation7 + $0xd8] sm:$0xff]
    %v3497 = vld [vmem:[#allocation7 + $0xe0] sm:$0xff]
    %v3498 = vld [vmem:[#allocation7 + $0xe8] sm:$0xff]
    %v3499 = vld [vmem:[#allocation7 + $0xf0] sm:$0xff]
    %v3500 = vld [vmem:[#allocation7 + $0xf8] sm:$0xff]
    %3501 = vmatprep.subr.mxu0 0.0
    %3502 = vmatpush1.msra.mxu0 %v3469
    %3503 = vmatprep.subr.mxu0 0.0
    %3504 = vmatpush1.msra.mxu0 %v3470
    %3505 = vmatprep.subr.mxu0 0.0
    %3506 = vmatpush1.msra.mxu0 %v3471
    %3507 = vmatprep.subr.mxu0 0.0
    %3508 = vmatpush1.msra.mxu0 %v3472
    %3509 = vmatprep.subr.mxu0 0.0
    %3510 = vmatpush1.msra.mxu0 %v3473
    %3511 = vmatprep.subr.mxu0 0.0
    %3512 = vmatpush1.msra.mxu0 %v3474
    %3513 = vmatprep.subr.mxu0 0.0
    %3514 = vmatpush1.msra.mxu0 %v3475
    %3515 = vmatprep.subr.mxu0 0.0
    %3516 = vmatpush1.msra.mxu0 %v3476
    %3517 = vmatprep.subr.mxu0 0.0
    %3518 = vmatpush1.msra.mxu0 %v3477
    %3519 = vmatprep.subr.mxu0 0.0
    %3520 = vmatpush1.msra.mxu0 %v3478
    %3521 = vmatprep.subr.mxu0 0.0
    %3522 = vmatpush1.msra.mxu0 %v3479
    %3523 = vmatprep.subr.mxu0 0.0
    %3524 = vmatpush1.msra.mxu0 %v3480
    %3525 = vmatprep.subr.mxu0 0.0
    %3526 = vmatpush1.msra.mxu0 %v3481
    %3527 = vmatprep.subr.mxu0 0.0
    %3528 = vmatpush1.msra.mxu0 %v3482
    %3529 = vmatprep.subr.mxu0 0.0
    %3530 = vmatpush1.msra.mxu0 %v3483
    %3531 = vmatprep.subr.mxu0 0.0
    %3532 = vmatpush1.msra.mxu0 %v3484
    %3533 = vmatprep.subr.mxu0 0.0
    %3534 = vmatpush1.msra.mxu0 %v3485
    %3535 = vmatprep.subr.mxu0 0.0
    %3536 = vmatpush1.msra.mxu0 %v3486
    %3537 = vmatprep.subr.mxu0 0.0
    %3538 = vmatpush1.msra.mxu0 %v3487
    %3539 = vmatprep.subr.mxu0 0.0
    %3540 = vmatpush1.msra.mxu0 %v3488
    %3541 = vmatprep.subr.mxu0 0.0
    %3542 = vmatpush1.msra.mxu0 %v3489
    %3543 = vmatprep.subr.mxu0 0.0
    %3544 = vmatpush1.msra.mxu0 %v3490
    %3545 = vmatprep.subr.mxu0 0.0
    %3546 = vmatpush1.msra.mxu0 %v3491
    %3547 = vmatprep.subr.mxu0 0.0
    %3548 = vmatpush1.msra.mxu0 %v3492
    %3549 = vmatprep.subr.mxu0 0.0
    %3550 = vmatpush1.msra.mxu0 %v3493
    %3551 = vmatprep.subr.mxu0 0.0
    %3552 = vmatpush1.msra.mxu0 %v3494
    %3553 = vmatprep.subr.mxu0 0.0
    %3554 = vmatpush1.msra.mxu0 %v3495
    %3555 = vmatprep.subr.mxu0 0.0
    %3556 = vmatpush1.msra.mxu0 %v3496
    %3557 = vmatprep.subr.mxu0 0.0
    %3558 = vmatpush1.msra.mxu0 %v3497
    %3559 = vmatprep.subr.mxu0 0.0
    %3560 = vmatpush1.msra.mxu0 %v3498
    %3561 = vmatprep.subr.mxu0 0.0
    %3562 = vmatpush1.msra.mxu0 %v3499
    %3563 = vmatprep.subr.mxu0 0.0
    %3564 = vmatpush1.msra.mxu0 %v3500
    %3565 = vmatprep.mubr.f32.mxu0 %v3144
    %3566 = vmatmul.mubr.f32.gmra.mrb[0].mxu0 %v3468
    %v3567 = vpop.f32.mrb[0].mxu0
    %v3568 = vadd.f32 %v361, %v3567
    %v3569 = vpop.f32.mrb[0].mxu0
    %3570 = vdwg.mxu0
    %v3571 = vmul.f32 %v436, %v3133
    %v3572 = vmul.f32 %v441, %v3144
    %v3573 = vadd.f32 %v3571, %v3572
    %v3574 = vmul.f32 %v3573, 1.8
    %v3575 = vadd.f32 %v3574, 0.01
    %v3576 = vmul.f32 %v3140, %v449
    %v3577 = vmul.f32 %v454, %v3568
    %v3578 = vadd.f32 %v3576, %v3577
    %v3579 = vmul.f32 %v3575, %v3144
    %v3580 = vsub.f32 %v3578, %v3579
    %v3581 = vsub.f32 %v3580, %v3575
    %vm3582 = vcmp.gt.f32.partialorder %v3581, 0.0
    %v3583 = vsel %vm3582, 1, 0
    %v3584 = vcvt.s32.f32 %v3583
    %v3585 = vld [vmem:[#allocation10] sm:$0xff]
    %v3586 = vld [vmem:[#allocation10 + $0x8] sm:$0xff]
    %v3587 = vld [vmem:[#allocation10 + $0x10] sm:$0xff]
    %v3588 = vld [vmem:[#allocation10 + $0x18] sm:$0xff]
    %v3589 = vld [vmem:[#allocation10 + $0x20] sm:$0xff]
    %v3590 = vld [vmem:[#allocation10 + $0x28] sm:$0xff]
    %v3591 = vld [vmem:[#allocation10 + $0x30] sm:$0xff]
    %v3592 = vld [vmem:[#allocation10 + $0x38] sm:$0xff]
    %v3593 = vld [vmem:[#allocation10 + $0x40] sm:$0xff]
    %v3594 = vld [vmem:[#allocation10 + $0x48] sm:$0xff]
    %v3595 = vld [vmem:[#allocation10 + $0x50] sm:$0xff]
    %v3596 = vld [vmem:[#allocation10 + $0x58] sm:$0xff]
    %v3597 = vld [vmem:[#allocation10 + $0x60] sm:$0xff]
    %v3598 = vld [vmem:[#allocation10 + $0x68] sm:$0xff]
    %v3599 = vld [vmem:[#allocation10 + $0x70] sm:$0xff]
    %v3600 = vld [vmem:[#allocation10 + $0x78] sm:$0xff]
    %3601 = vmatprep.subr.mxu0 0.0
    %3602 = vmatpush1.msra.mxu0 %v3585
    %3603 = vmatprep.subr.mxu0 0.0
    %3604 = vmatpush1.msra.mxu0 %v3586
    %3605 = vmatprep.subr.mxu0 0.0
    %3606 = vmatpush1.msra.mxu0 %v3587
    %3607 = vmatprep.subr.mxu0 0.0
    %3608 = vmatpush1.msra.mxu0 %v3588
    %3609 = vmatprep.subr.mxu0 0.0
    %3610 = vmatpush1.msra.mxu0 %v3589
    %3611 = vmatprep.subr.mxu0 0.0
    %3612 = vmatpush1.msra.mxu0 %v3590
    %3613 = vmatprep.subr.mxu0 0.0
    %3614 = vmatpush1.msra.mxu0 %v3591
    %3615 = vmatprep.subr.mxu0 0.0
    %3616 = vmatpush1.msra.mxu0 %v3592
    %3617 = vmatprep.subr.mxu0 0.0
    %3618 = vmatpush1.msra.mxu0 %v3593
    %3619 = vmatprep.subr.mxu0 0.0
    %3620 = vmatpush1.msra.mxu0 %v3594
    %3621 = vmatprep.subr.mxu0 0.0
    %3622 = vmatpush1.msra.mxu0 %v3595
    %3623 = vmatprep.subr.mxu0 0.0
    %3624 = vmatpush1.msra.mxu0 %v3596
    %3625 = vmatprep.subr.mxu0 0.0
    %3626 = vmatpush1.msra.mxu0 %v3597
    %3627 = vmatprep.subr.mxu0 0.0
    %3628 = vmatpush1.msra.mxu0 %v3598
    %3629 = vmatprep.subr.mxu0 0.0
    %3630 = vmatpush1.msra.mxu0 %v3599
    %3631 = vmatprep.subr.mxu0 0.0
    %3632 = vmatpush1.msra.mxu0 %v3600
    %3633 = vmatprep.subr.mxu0 0.0
    %3634 = vmatpush1.msra.mxu0 0.0
    %3635 = vmatprep.subr.mxu0 0.0
    %3636 = vmatpush1.msra.mxu0 0.0
    %3637 = vmatprep.subr.mxu0 0.0
    %3638 = vmatpush1.msra.mxu0 0.0
    %3639 = vmatprep.subr.mxu0 0.0
    %3640 = vmatpush1.msra.mxu0 0.0
    %3641 = vmatprep.subr.mxu0 0.0
    %3642 = vmatpush1.msra.mxu0 0.0
    %3643 = vmatprep.subr.mxu0 0.0
    %3644 = vmatpush1.msra.mxu0 0.0
    %3645 = vmatprep.subr.mxu0 0.0
    %3646 = vmatpush1.msra.mxu0 0.0
    %3647 = vmatprep.subr.mxu0 0.0
    %3648 = vmatpush1.msra.mxu0 0.0
    %3649 = vmatprep.subr.mxu0 0.0
    %3650 = vmatpush1.msra.mxu0 0.0
    %3651 = vmatprep.subr.mxu0 0.0
    %3652 = vmatpush1.msra.mxu0 0.0
    %3653 = vmatprep.subr.mxu0 0.0
    %3654 = vmatpush1.msra.mxu0 0.0
    %3655 = vmatprep.subr.mxu0 0.0
    %3656 = vmatpush1.msra.mxu0 0.0
    %3657 = vmatprep.subr.mxu0 0.0
    %3658 = vmatpush1.msra.mxu0 0.0
    %3659 = vmatprep.subr.mxu0 0.0
    %3660 = vmatpush1.msra.mxu0 0.0
    %3661 = vmatprep.subr.mxu0 0.0
    %3662 = vmatpush1.msra.mxu0 0.0
    %3663 = vmatprep.subr.mxu0 0.0
    %3664 = vmatpush1.msra.mxu0 0.0
    %3665 = vmatprep.mubr.f32.mxu0 0.0
    %3666 = vmatmul.mubr.f32.gmra.mrb[0].mxu0 %v3584
    %v3667 = vpop.f32.mrb[0].mxu0
    %v3668 = vadd.f32 %v483, %v3667
    %v3669 = vpop.f32.mrb[0].mxu0
    %3670 = vdwg.mxu0
    %v3671 = vmul.f32 %v558, %v3233
    %v3672 = vmul.f32 %v563, %v3244
    %v3673 = vadd.f32 %v3671, %v3672
    %v3674 = vmul.f32 %v3673, 1.8
    %v3675 = vadd.f32 %v3674, 0.01
    %v3676 = vmul.f32 %v3240, %v571
    %v3677 = vmul.f32 %v576, %v3668
    %v3678 = vadd.f32 %v3676, %v3677
    %v3679 = vmul.f32 %v3675, %v3244
    %v3680 = vsub.f32 %v3678, %v3679
    %v3681 = vsub.f32 %v3680, %v3675
    %vm3682 = vcmp.gt.f32.partialorder %v3681, 0.0
    %v3683 = vsel %vm3682, 1, 0
    %v3684 = vcvt.s32.f32 %v3683
    %v3685 = vld [vmem:[#allocation13] sm:$0xff]
    %v3686 = vld [vmem:[#allocation13 + $0x8] sm:$0xff]
    %v3687 = vld [vmem:[#allocation13 + $0x10] sm:$0xff]
    %v3688 = vld [vmem:[#allocation13 + $0x18] sm:$0xff]
    %v3689 = vld [vmem:[#allocation13 + $0x20] sm:$0xff]
    %v3690 = vld [vmem:[#allocation13 + $0x28] sm:$0xff]
    %v3691 = vld [vmem:[#allocation13 + $0x30] sm:$0xff]
    %v3692 = vld [vmem:[#allocation13 + $0x38] sm:$0xff]
    %v3693 = vld [vmem:[#allocation13 + $0x40] sm:$0xff]
    %v3694 = vld [vmem:[#allocation13 + $0x48] sm:$0xff]
    %v3695 = vld [vmem:[#allocation13 + $0x50] sm:$0xff]
    %v3696 = vld [vmem:[#allocation13 + $0x58] sm:$0xff]
    %v3697 = vld [vmem:[#allocation13 + $0x60] sm:$0xff]
    %v3698 = vld [vmem:[#allocation13 + $0x68] sm:$0xff]
    %v3699 = vld [vmem:[#allocation13 + $0x70] sm:$0xff]
    %v3700 = vld [vmem:[#allocation13 + $0x78] sm:$0xff]
    %3701 = vmatprep.subr.mxu0 0.0
    %3702 = vmatpush1.msra.mxu0 %v3685
    %3703 = vmatprep.subr.mxu0 0.0
    %3704 = vmatpush1.msra.mxu0 %v3686
    %3705 = vmatprep.subr.mxu0 0.0
    %3706 = vmatpush1.msra.mxu0 %v3687
    %3707 = vmatprep.subr.mxu0 0.0
    %3708 = vmatpush1.msra.mxu0 %v3688
    %3709 = vmatprep.subr.mxu0 0.0
    %3710 = vmatpush1.msra.mxu0 %v3689
    %3711 = vmatprep.subr.mxu0 0.0
    %3712 = vmatpush1.msra.mxu0 %v3690
    %3713 = vmatprep.subr.mxu0 0.0
    %3714 = vmatpush1.msra.mxu0 %v3691
    %3715 = vmatprep.subr.mxu0 0.0
    %3716 = vmatpush1.msra.mxu0 %v3692
    %3717 = vmatprep.subr.mxu0 0.0
    %3718 = vmatpush1.msra.mxu0 %v3693
    %3719 = vmatprep.subr.mxu0 0.0
    %3720 = vmatpush1.msra.mxu0 %v3694
    %3721 = vmatprep.subr.mxu0 0.0
    %3722 = vmatpush1.msra.mxu0 %v3695
    %3723 = vmatprep.subr.mxu0 0.0
    %3724 = vmatpush1.msra.mxu0 %v3696
    %3725 = vmatprep.subr.mxu0 0.0
    %3726 = vmatpush1.msra.mxu0 %v3697
    %3727 = vmatprep.subr.mxu0 0.0
    %3728 = vmatpush1.msra.mxu0 %v3698
    %3729 = vmatprep.subr.mxu0 0.0
    %3730 = vmatpush1.msra.mxu0 %v3699
    %3731 = vmatprep.subr.mxu0 0.0
    %3732 = vmatpush1.msra.mxu0 %v3700
    %3733 = vmatprep.subr.mxu0 0.0
    %3734 = vmatpush1.msra.mxu0 0.0
    %3735 = vmatprep.subr.mxu0 0.0
    %3736 = vmatpush1.msra.mxu0 0.0
    %3737 = vmatprep.subr.mxu0 0.0
    %3738 = vmatpush1.msra.mxu0 0.0
    %3739 = vmatprep.subr.mxu0 0.0
    %3740 = vmatpush1.msra.mxu0 0.0
    %3741 = vmatprep.subr.mxu0 0.0
    %3742 = vmatpush1.msra.mxu0 0.0
    %3743 = vmatprep.subr.mxu0 0.0
    %3744 = vmatpush1.msra.mxu0 0.0
    %3745 = vmatprep.subr.mxu0 0.0
    %3746 = vmatpush1.msra.mxu0 0.0
    %3747 = vmatprep.subr.mxu0 0.0
    %3748 = vmatpush1.msra.mxu0 0.0
    %3749 = vmatprep.subr.mxu0 0.0
    %3750 = vmatpush1.msra.mxu0 0.0
    %3751 = vmatprep.subr.mxu0 0.0
    %3752 = vmatpush1.msra.mxu0 0.0
    %3753 = vmatprep.subr.mxu0 0.0
    %3754 = vmatpush1.msra.mxu0 0.0
    %3755 = vmatprep.subr.mxu0 0.0
    %3756 = vmatpush1.msra.mxu0 0.0
    %3757 = vmatprep.subr.mxu0 0.0
    %3758 = vmatpush1.msra.mxu0 0.0
    %3759 = vmatprep.subr.mxu0 0.0
    %3760 = vmatpush1.msra.mxu0 0.0
    %3761 = vmatprep.subr.mxu0 0.0
    %3762 = vmatpush1.msra.mxu0 0.0
    %3763 = vmatprep.subr.mxu0 0.0
    %3764 = vmatpush1.msra.mxu0 0.0
    %3765 = vmatprep.mubr.f32.mxu0 0.0
    %3766 = vmatmul.mubr.f32.gmra.mrb[0].mxu0 %v3684
    %v3767 = vpop.f32.mrb[0].mxu0
    %v3768 = vadd.f32 %v605, %v3767
    %v3769 = vpop.f32.mrb[0].mxu0
    %3770 = vdwg.mxu0
    %v3771 = vmul.f32 %v680, %v3333
    %v3772 = vmul.f32 %v685, %v3344
    %v3773 = vadd.f32 %v3771, %v3772
    %v3774 = vmul.f32 %v3773, 1.8
    %v3775 = vadd.f32 %v3774, 0.01
    %v3776 = vmul.f32 %v3340, %v693
    %v3777 = vmul.f32 %v698, %v3768
    %v3778 = vadd.f32 %v3776, %v3777
    %v3779 = vmul.f32 %v3775, %v3344
    %v3780 = vsub.f32 %v3778, %v3779
    %v3781 = vsub.f32 %v3780, %v3775
    %vm3782 = vcmp.gt.f32.partialorder %v3781, 0.0
    %v3783 = vsel %vm3782, 1, 0
    %v3784 = vcvt.s32.f32 %v3783
    %v3785 = vadd.f32 %v3345, %v3784
    %s3786 = scalar_lea.vmem [#allocation18], 224
    %3787 = vst [vmem:[%s3786] sm:$0xff] %v3468
    %3788 = vst [vmem:[%s3786 + $0x8] sm:$0xff] %v3584
    %3789 = vst [vmem:[%s3786 + $0x10] sm:$0xff] %v3684
    %3790 = vst [vmem:[%s3786 + $0x18] sm:$0xff] %v3784
    %3791 = vst [vmem:[#allocation17] sm:$0xff] %v3785
    // Predicated region
    $region106: #{tpu_custom_call.1} parent=1 // pred_check
      _
    $region107: #{tpu_custom_call.1} parent=1 // pred_check_branch
      %3793 = sbr.rel (0) target = $region109
    $region108: #{tpu_custom_call.1} parent=1 // pred_region
      %s3795 = ssub.s32 128, 128
      %3796 = vsyncadd [#allocation4], %s3795
      %s3798 = sshll.u32 [#allocation17], 4
      %s3799 = int_to_ptr.vmem [resolvable:$true] %s3798
      %3801 = dma.vmem_to_hbm [thread:$0]  %s3799, 128, %s17, [#allocation4]
    $region109: #{tpu_custom_call.1} parent=1 // pred_fallthru
      _
    // Predicated region
    $region110: #{tpu_custom_call.1} parent=1 // pred_check
      _
    $region111: #{tpu_custom_call.1} parent=1 // pred_check_branch
      %3803 = sbr.rel (0) target = $region113
    $region112: #{tpu_custom_call.1} parent=1 // pred_region
      %s3805 = ssub.s32 4096, 4096
      %3806 = vsyncadd [#allocation19], %s3805
      %s3807 = sshll.u32 [#allocation18], 4
      %s3808 = int_to_ptr.vmem [resolvable:$true] %s3807
      %3813 = dma.vmem_to_hbm [thread:$0]  %s3808, 4096, %s18, [#allocation19], 512, 512, 32
    $region113: #{tpu_custom_call.1} parent=1 // pred_fallthru
      _
    // Predicated region
    $region114: #{tpu_custom_call.1} parent=1 // pred_check
      _
    $region115: #{tpu_custom_call.1} parent=1 // pred_check_branch
      %3815 = sbr.rel (0) target = $region117
    $region116: #{tpu_custom_call.1} parent=1 // pred_region
      %3816 = dma.done [#allocation4], 128
    $region117: #{tpu_custom_call.1} parent=1 // pred_fallthru
      _
    // Predicated region
    $region118: #{tpu_custom_call.1} parent=1 // pred_check
      _
    $region119: #{tpu_custom_call.1} parent=1 // pred_check_branch
      %3818 = sbr.rel (0) target = $region121
    $region120: #{tpu_custom_call.1} parent=1 // pred_region
      %3819 = dma.done [#allocation19], 4096
    $region121: #{tpu_custom_call.1} parent=1 // pred_fallthru
      _
    %3820 = vsyncpa [#allocation3], 1
    %3821 = vsyncpa [#allocation6], 1
    %3822 = vsyncpa [#allocation9], 1
    %3823 = vsyncpa [#allocation12], 1
    %3824 = vsyncpa [#allocation15], 1
    %3825 = vsyncpa [#allocation4], 1
    %3826 = vsyncpa [#allocation19], 1

</llo_original>
